<compile_context>
chip_gen: v7x
topology: tpu7x:2x2x1
jax: 0.10.0
libtpu: 0.0.40
codegen_flags: <defaults>
</compile_context>

<pallas_src>
import functools
import math

import jax
import jax.numpy as jnp
from jax.experimental import pallas as pl
from jax.experimental.pallas import tpu as pltpu


def _layer_norm(v, g, b, eps=1e-6):
    mu = jnp.mean(v, axis=-1, keepdims=True)
    var = jnp.mean(jnp.square(v - mu), axis=-1, keepdims=True)
    return (v - mu) * jax.lax.rsqrt(var + eps) * g + b


def _feature_encoder_kernel(
    x_ref, mask_ref,
    ln_g_ref, ln_b_ref, dw_w_ref, pw_wt_ref, pw_b_ref,
    ln1_g_ref, ln1_b_ref,
    wq_ref, bq_ref, wk_ref, bk_ref, wv_ref, bv_ref,
    ln2_g_ref, ln2_b_ref, wo_ref, bo_ref,
    out_ref,
    *, num_layers, kernel_size, num_heads, use_mask):
    x = x_ref[0].astype(jnp.float32)                         # (L, D)
    L, D = x.shape
    pad = kernel_size // 2
    row_ids = jax.lax.broadcasted_iota(jnp.int32, (L, 1), 0)

    # ---------------- DepthwiseSeparableConvBlock ----------------
    out = x
    for layer in range(num_layers):
        residual = out
        g = ln_g_ref[pl.ds(layer, 1), :].astype(jnp.float32)       # (1, D)
        b = ln_b_ref[pl.ds(layer, 1), :].astype(jnp.float32)       # (1, D)
        h = _layer_norm(out, g, b)

        dww = dw_w_ref[layer].astype(jnp.float32)                  # (K, D)
        dw = jnp.zeros((L, D), jnp.float32)
        for t in range(kernel_size):
            shift = t - pad                                        # want h[l + shift, :]
            if shift == 0:
                shifted = h
            else:
                shifted = pltpu.roll(h, shift=(-shift) % L, axis=0)
            valid = (row_ids + shift >= 0) & (row_ids + shift < L)
            shifted = jnp.where(valid, shifted, 0.0)               # zero padding
            dw = dw + shifted * dww[t:t + 1, :]

        pw = pw_wt_ref[layer].astype(jnp.float32)                  # (D, D) in -> out
        pb = pw_b_ref[pl.ds(layer, 1), :].astype(jnp.float32)      # (1, D)
        y = jnp.dot(dw, pw, preferred_element_type=jnp.float32) + pb
        y = jnp.maximum(y, 0.0)                                    # ReLU
        out = y + residual                                         # dropout = identity

    # ---------------- MultiHeadAttentionBlock ----------------
    xa = out
    h1 = _layer_norm(xa, ln1_g_ref[...].astype(jnp.float32),
                     ln1_b_ref[...].astype(jnp.float32))
    q = jnp.dot(h1, wq_ref[...].astype(jnp.float32),
                preferred_element_type=jnp.float32) + bq_ref[...].astype(jnp.float32)
    k = jnp.dot(h1, wk_ref[...].astype(jnp.float32),
                preferred_element_type=jnp.float32) + bk_ref[...].astype(jnp.float32)
    v = jnp.dot(h1, wv_ref[...].astype(jnp.float32),
                preferred_element_type=jnp.float32) + bv_ref[...].astype(jnp.float32)

    head_dim = D // num_heads
    scale = 1.0 / math.sqrt(head_dim)
    if use_mask:
        m = mask_ref[0].astype(jnp.float32)                        # (1, L), per-key mask
        neg = (1.0 - m) * (-1e30)

    ctx_parts = []
    for hh in range(num_heads):
        sl = slice(hh * head_dim, (hh + 1) * head_dim)
        qh, kh, vh = q[:, sl], k[:, sl], v[:, sl]
        s = jax.lax.dot_general(qh, kh, (((1,), (1,)), ((), ())),
                                preferred_element_type=jnp.float32) * scale   # (L, L)
        if use_mask:
            s = s + neg                                            # broadcast over query rows
        s_max = jnp.max(s, axis=-1, keepdims=True)
        e = jnp.exp(s - s_max)
        p = e / jnp.sum(e, axis=-1, keepdims=True)
        ctx_parts.append(jnp.dot(p, vh, preferred_element_type=jnp.float32))
    ctx = jnp.concatenate(ctx_parts, axis=-1)                      # (L, D)

    residual = ctx + xa
    h2 = _layer_norm(residual, ln2_g_ref[...].astype(jnp.float32),
                     ln2_b_ref[...].astype(jnp.float32))
    o = jnp.dot(h2, wo_ref[...].astype(jnp.float32),
                preferred_element_type=jnp.float32) + bo_ref[...].astype(jnp.float32)
    out_ref[0] = (o + residual).astype(out_ref.dtype)


def feature_encoder(x, mask, params, *, num_heads, kernel_size):
    """x: (B, L, D) float; mask: (B, L) {0,1} or None -> (B, L, D)."""
    B, L, D = x.shape
    NL, K, _ = params["dw_w"].shape
    use_mask = mask is not None
    mask3 = (mask.reshape(B, 1, L).astype(x.dtype) if use_mask
             else jnp.ones((B, 1, L), x.dtype))

    kernel = functools.partial(
        _feature_encoder_kernel, num_layers=NL, kernel_size=kernel_size,
        num_heads=num_heads, use_mask=use_mask)

    def full_spec(shape):
        zeros = (0,) * len(shape)
        return pl.BlockSpec(shape, lambda b, _z=zeros: _z)

    in_specs = [
        pl.BlockSpec((1, L, D), lambda b: (b, 0, 0)),   # x
        pl.BlockSpec((1, 1, L), lambda b: (b, 0, 0)),   # mask
        full_spec((NL, D)), full_spec((NL, D)),          # conv layer norms
        full_spec((NL, K, D)),                           # depthwise weights
        full_spec((NL, D, D)), full_spec((NL, D)),       # pointwise weights/bias
        full_spec((1, D)), full_spec((1, D)),            # attn ln1
        full_spec((D, D)), full_spec((1, D)),            # Wq, bq
        full_spec((D, D)), full_spec((1, D)),            # Wk, bk
        full_spec((D, D)), full_spec((1, D)),            # Wv, bv
        full_spec((1, D)), full_spec((1, D)),            # attn ln2
        full_spec((D, D)), full_spec((1, D)),            # Wo, bo
    ]

    return pl.pallas_call(
        kernel,
        out_shape=jax.ShapeDtypeStruct((B, L, D), x.dtype),
        grid=(B,),
        in_specs=in_specs,
        out_specs=pl.BlockSpec((1, L, D), lambda b: (b, 0, 0)),
        compiler_params=pltpu.CompilerParams(dimension_semantics=("parallel",)),
    )(x, mask3,
      params["ln_g"], params["ln_b"], params["dw_w"], params["pw_wt"], params["pw_b"],
      params["ln1_g"], params["ln1_b"],
      params["wq"], params["bq"], params["wk"], params["bk"], params["wv"], params["bv"],
      params["ln2_g"], params["ln2_b"], params["wo"], params["bo"])


# ---------------- pure-JAX reference (mirrors the PyTorch module) ----------------
def _feature_encoder_ref(x, mask, params, *, num_heads, kernel_size):
    B, L, D = x.shape
    NL = params["ln_g"].shape[0]
    pad = kernel_size // 2

    def ln(v, g, b, eps=1e-6):
        mu = jnp.mean(v, -1, keepdims=True)
        var = jnp.mean(jnp.square(v - mu), -1, keepdims=True)
        return (v - mu) / jnp.sqrt(var + eps) * g + b

    out = x
    for layer in range(NL):
        residual = out
        h = ln(out, params["ln_g"][layer], params["ln_b"][layer])
        hp = jnp.pad(h, ((0, 0), (pad, kernel_size - 1 - pad), (0, 0)))
        dw = jnp.zeros_like(h)
        for t in range(kernel_size):
            dw = dw + hp[:, t:t + L, :] * params["dw_w"][layer, t]
        y = jnp.einsum("bld,de->ble", dw, params["pw_wt"][layer]) + params["pw_b"][layer]
        out = jnp.maximum(y, 0.0) + residual

    xa = out
    h1 = ln(xa, params["ln1_g"], params["ln1_b"])
    q = h1 @ params["wq"] + params["bq"]
    k = h1 @ params["wk"] + params["bk"]
    v = h1 @ params["wv"] + params["bv"]
    H, Dh = num_heads, D // num_heads
    qh = q.reshape(B, L, H, Dh).transpose(0, 2, 1, 3)
    kh = k.reshape(B, L, H, Dh).transpose(0, 2, 1, 3)
    vh = v.reshape(B, L, H, Dh).transpose(0, 2, 1, 3)
    s = jnp.einsum("bhld,bhmd->bhlm", qh, kh) / math.sqrt(Dh)
    if mask is not None:
        s = s + (1.0 - mask)[:, None, None, :] * (-1e30)
    p = jax.nn.softmax(s, axis=-1)
    ctx = jnp.einsum("bhlm,bhmd->bhld", p, vh).transpose(0, 2, 1, 3).reshape(B, L, D)
    residual = ctx + xa
    h2 = ln(residual, params["ln2_g"], params["ln2_b"])
    return h2 @ params["wo"] + params["bo"] + residual


if __name__ == "__main__":
    B, L, D, H, K, NL = 2, 16, 32, 4, 7, 4
    keys = jax.random.split(jax.random.PRNGKey(0), 20)

    x = jax.random.normal(keys[0], (B, L, D), jnp.float32)
    mask = jnp.stack([
        jnp.ones((L,), jnp.float32),
        jnp.concatenate([jnp.ones((10,), jnp.float32), jnp.zeros((6,), jnp.float32)]),
    ])  # (B, L)

    sc = 1.0 / math.sqrt(D)
    params = dict(
        ln_g=1.0 + 0.1 * jax.random.normal(keys[1], (NL, D), jnp.float32),
        ln_b=0.1 * jax.random.normal(keys[2], (NL, D), jnp.float32),
        dw_w=0.3 * jax.random.normal(keys[3], (NL, K, D), jnp.float32),
        pw_wt=sc * jax.random.normal(keys[4], (NL, D, D), jnp.float32),   # (in, out) = torch W[:, :, 0].T
        pw_b=0.1 * jax.random.normal(keys[5], (NL, D), jnp.float32),
        ln1_g=1.0 + 0.1 * jax.random.normal(keys[6], (1, D), jnp.float32),
        ln1_b=0.1 * jax.random.normal(keys[7], (1, D), jnp.float32),
        wq=sc * jax.random.normal(keys[8], (D, D), jnp.float32),
        bq=0.1 * jax.random.normal(keys[9], (1, D), jnp.float32),
        wk=sc * jax.random.normal(keys[10], (D, D), jnp.float32),
        bk=0.1 * jax.random.normal(keys[11], (1, D), jnp.float32),
        wv=sc * jax.random.normal(keys[12], (D, D), jnp.float32),
        bv=0.1 * jax.random.normal(keys[13], (1, D), jnp.float32),
        ln2_g=1.0 + 0.1 * jax.random.normal(keys[14], (1, D), jnp.float32),
        ln2_b=0.1 * jax.random.normal(keys[15], (1, D), jnp.float32),
        wo=sc * jax.random.normal(keys[16], (D, D), jnp.float32),
        bo=0.1 * jax.random.normal(keys[17], (1, D), jnp.float32),
    )

    out = jax.block_until_ready(
        feature_encoder(x, mask, params, num_heads=H, kernel_size=K))
    ref = jax.block_until_ready(
        _feature_encoder_ref(x, mask, params, num_heads=H, kernel_size=K))

    err = jnp.max(jnp.abs(out - ref)) / (jnp.max(jnp.abs(ref)) + 1e-6)
    assert out.shape == (B, L, D)
    assert bool(err < 2e-2), f"relative error too large: {err}"
    print("KERNEL_OK")
</pallas_src>

<mosaic_0001>
module attributes {stable_mosaic.version = 11 : i64} {
  func.func @_feature_encoder_kernel(%arg0: i32, %arg1: memref<1x16x32xf32, #tpu.memory_space<vmem>>, %arg2: memref<1x1x16xf32, #tpu.memory_space<vmem>>, %arg3: memref<4x32xf32, #tpu.memory_space<vmem>>, %arg4: memref<4x32xf32, #tpu.memory_space<vmem>>, %arg5: memref<4x7x32xf32, #tpu.memory_space<vmem>>, %arg6: memref<4x32x32xf32, #tpu.memory_space<vmem>>, %arg7: memref<4x32xf32, #tpu.memory_space<vmem>>, %arg8: memref<1x32xf32, #tpu.memory_space<vmem>>, %arg9: memref<1x32xf32, #tpu.memory_space<vmem>>, %arg10: memref<32x32xf32, #tpu.memory_space<vmem>>, %arg11: memref<1x32xf32, #tpu.memory_space<vmem>>, %arg12: memref<32x32xf32, #tpu.memory_space<vmem>>, %arg13: memref<1x32xf32, #tpu.memory_space<vmem>>, %arg14: memref<32x32xf32, #tpu.memory_space<vmem>>, %arg15: memref<1x32xf32, #tpu.memory_space<vmem>>, %arg16: memref<1x32xf32, #tpu.memory_space<vmem>>, %arg17: memref<1x32xf32, #tpu.memory_space<vmem>>, %arg18: memref<32x32xf32, #tpu.memory_space<vmem>>, %arg19: memref<1x32xf32, #tpu.memory_space<vmem>>, %arg20: memref<1x16x32xf32, #tpu.memory_space<vmem>>) attributes {dimension_semantics = [#tpu.dimension_semantics<parallel>], iteration_bounds = array<i64: 2>, scalar_prefetch = 0 : i64, scratch_operands = 0 : i64, tpu.core_type = #tpu.core_type<tc>, window_params = [{transform_indices = @transform_0, window_bounds = array<i64: 1, 16, 32>}, {transform_indices = @transform_1, window_bounds = array<i64: 1, 1, 16>}, {pipeline_mode = #tpu.pipeline_mode<synchronous>, transform_indices = @transform_2, window_bounds = array<i64: 4, 32>}, {pipeline_mode = #tpu.pipeline_mode<synchronous>, transform_indices = @transform_3, window_bounds = array<i64: 4, 32>}, {pipeline_mode = #tpu.pipeline_mode<synchronous>, transform_indices = @transform_4, window_bounds = array<i64: 4, 7, 32>}, {pipeline_mode = #tpu.pipeline_mode<synchronous>, transform_indices = @transform_5, window_bounds = array<i64: 4, 32, 32>}, {pipeline_mode = #tpu.pipeline_mode<synchronous>, transform_indices = @transform_6, window_bounds = array<i64: 4, 32>}, {pipeline_mode = #tpu.pipeline_mode<synchronous>, transform_indices = @transform_7, window_bounds = array<i64: 1, 32>}, {pipeline_mode = #tpu.pipeline_mode<synchronous>, transform_indices = @transform_8, window_bounds = array<i64: 1, 32>}, {pipeline_mode = #tpu.pipeline_mode<synchronous>, transform_indices = @transform_9, window_bounds = array<i64: 32, 32>}, {pipeline_mode = #tpu.pipeline_mode<synchronous>, transform_indices = @transform_10, window_bounds = array<i64: 1, 32>}, {pipeline_mode = #tpu.pipeline_mode<synchronous>, transform_indices = @transform_11, window_bounds = array<i64: 32, 32>}, {pipeline_mode = #tpu.pipeline_mode<synchronous>, transform_indices = @transform_12, window_bounds = array<i64: 1, 32>}, {pipeline_mode = #tpu.pipeline_mode<synchronous>, transform_indices = @transform_13, window_bounds = array<i64: 32, 32>}, {pipeline_mode = #tpu.pipeline_mode<synchronous>, transform_indices = @transform_14, window_bounds = array<i64: 1, 32>}, {pipeline_mode = #tpu.pipeline_mode<synchronous>, transform_indices = @transform_15, window_bounds = array<i64: 1, 32>}, {pipeline_mode = #tpu.pipeline_mode<synchronous>, transform_indices = @transform_16, window_bounds = array<i64: 1, 32>}, {pipeline_mode = #tpu.pipeline_mode<synchronous>, transform_indices = @transform_17, window_bounds = array<i64: 32, 32>}, {pipeline_mode = #tpu.pipeline_mode<synchronous>, transform_indices = @transform_18, window_bounds = array<i64: 1, 32>}, {transform_indices = @transform_19, window_bounds = array<i64: 1, 16, 32>}]} {
    %c0 = arith.constant 0 : index
    %c0_0 = arith.constant 0 : index
    %c0_1 = arith.constant 0 : index
    %0 = vector.load %arg1[%c0, %c0_0, %c0_1] : memref<1x16x32xf32, #tpu.memory_space<vmem>>, vector<1x16x32xf32>
    %1 = vector.shape_cast %0 : vector<1x16x32xf32> to vector<16x32xf32>
    %2 = tpu.iota {dimensions = array<i32: 0>} : vector<16x1xi32>
    %c0_2 = arith.constant 0 : index
    %c0_3 = arith.constant 0 : index
    %3 = vector.load %arg3[%c0_2, %c0_3] : memref<4x32xf32, #tpu.memory_space<vmem>>, vector<1x32xf32>
    %c0_4 = arith.constant 0 : index
    %c0_5 = arith.constant 0 : index
    %4 = vector.load %arg4[%c0_4, %c0_5] : memref<4x32xf32, #tpu.memory_space<vmem>>, vector<1x32xf32>
    %cst = arith.constant dense<0.000000e+00> : vector<16xf32>
    %5 = vector.multi_reduction <add>, %1, %cst [1] : vector<16x32xf32> to vector<16xf32>
    %6 = vector.shape_cast %5 : vector<16xf32> to vector<16x1xf32>
    %cst_6 = arith.constant 3.200000e+01 : f32
    %7 = vector.broadcast %cst_6 : f32 to vector<16x1xf32>
    %8 = arith.divf %6, %7 : vector<16x1xf32>
    %9 = vector.broadcast %8 : vector<16x1xf32> to vector<16x32xf32>
    %10 = arith.subf %1, %9 : vector<16x32xf32>
    %11 = arith.mulf %10, %10 : vector<16x32xf32>
    %cst_7 = arith.constant dense<0.000000e+00> : vector<16xf32>
    %12 = vector.multi_reduction <add>, %11, %cst_7 [1] : vector<16x32xf32> to vector<16xf32>
    %13 = vector.shape_cast %12 : vector<16xf32> to vector<16x1xf32>
    %cst_8 = arith.constant 3.200000e+01 : f32
    %14 = vector.broadcast %cst_8 : f32 to vector<16x1xf32>
    %15 = arith.divf %13, %14 : vector<16x1xf32>
    %16 = vector.broadcast %8 : vector<16x1xf32> to vector<16x32xf32>
    %17 = arith.subf %1, %16 : vector<16x32xf32>
    %cst_9 = arith.constant 9.99999997E-7 : f32
    %18 = vector.broadcast %cst_9 : f32 to vector<16x1xf32>
    %19 = arith.addf %15, %18 : vector<16x1xf32>
    %20 = math.rsqrt %19 : vector<16x1xf32>
    %21 = vector.broadcast %20 : vector<16x1xf32> to vector<16x32xf32>
    %22 = arith.mulf %17, %21 : vector<16x32xf32>
    %23 = vector.broadcast %3 : vector<1x32xf32> to vector<16x32xf32>
    %24 = arith.mulf %22, %23 : vector<16x32xf32>
    %25 = vector.broadcast %4 : vector<1x32xf32> to vector<16x32xf32>
    %26 = arith.addf %24, %25 : vector<16x32xf32>
    %c0_10 = arith.constant 0 : index
    %c0_11 = arith.constant 0 : index
    %c0_12 = arith.constant 0 : index
    %27 = vector.load %arg5[%c0_10, %c0_11, %c0_12] : memref<4x7x32xf32, #tpu.memory_space<vmem>>, vector<1x7x32xf32>
    %28 = vector.shape_cast %27 : vector<1x7x32xf32> to vector<7x32xf32>
    %cst_13 = arith.constant 0.000000e+00 : f32
    %29 = vector.broadcast %cst_13 : f32 to vector<16x32xf32>
    %c3_i32 = arith.constant 3 : i32
    %30 = tpu.dynamic_rotate %26 by %c3_i32 dim 0 : vector<16x32xf32>, i32 -> vector<16x32xf32>
    %c-3_i32 = arith.constant -3 : i32
    %31 = vector.broadcast %c-3_i32 : i32 to vector<16x1xi32>
    %32 = arith.addi %2, %31 : vector<16x1xi32>
    %c0_i32 = arith.constant 0 : i32
    %33 = vector.broadcast %c0_i32 : i32 to vector<16x1xi32>
    %34 = arith.cmpi sge, %32, %33 : vector<16x1xi32>
    %c-3_i32_14 = arith.constant -3 : i32
    %35 = vector.broadcast %c-3_i32_14 : i32 to vector<16x1xi32>
    %36 = arith.addi %2, %35 : vector<16x1xi32>
    %c16_i32 = arith.constant 16 : i32
    %37 = vector.broadcast %c16_i32 : i32 to vector<16x1xi32>
    %38 = arith.cmpi slt, %36, %37 : vector<16x1xi32>
    %39 = arith.andi %34, %38 : vector<16x1xi1>
    %cst_15 = arith.constant 0.000000e+00 : f32
    %40 = vector.shape_cast %39 : vector<16x1xi1> to vector<16x1xi1>
    %41 = vector.broadcast %40 : vector<16x1xi1> to vector<16x32xi1>
    %42 = vector.broadcast %cst_15 : f32 to vector<16x32xf32>
    %43 = arith.select %41, %30, %42 : vector<16x32xi1>, vector<16x32xf32>
    %44 = vector.extract_strided_slice %28 {offsets = [0, 0], sizes = [1, 32], strides = [1, 1]} : vector<7x32xf32> to vector<1x32xf32>
    %45 = vector.broadcast %44 : vector<1x32xf32> to vector<16x32xf32>
    %46 = arith.mulf %43, %45 : vector<16x32xf32>
    %47 = arith.addf %29, %46 : vector<16x32xf32>
    %c2_i32 = arith.constant 2 : i32
    %48 = tpu.dynamic_rotate %26 by %c2_i32 dim 0 : vector<16x32xf32>, i32 -> vector<16x32xf32>
    %c-2_i32 = arith.constant -2 : i32
    %49 = vector.broadcast %c-2_i32 : i32 to vector<16x1xi32>
    %50 = arith.addi %2, %49 : vector<16x1xi32>
    %c0_i32_16 = arith.constant 0 : i32
    %51 = vector.broadcast %c0_i32_16 : i32 to vector<16x1xi32>
    %52 = arith.cmpi sge, %50, %51 : vector<16x1xi32>
    %c-2_i32_17 = arith.constant -2 : i32
    %53 = vector.broadcast %c-2_i32_17 : i32 to vector<16x1xi32>
    %54 = arith.addi %2, %53 : vector<16x1xi32>
    %c16_i32_18 = arith.constant 16 : i32
    %55 = vector.broadcast %c16_i32_18 : i32 to vector<16x1xi32>
    %56 = arith.cmpi slt, %54, %55 : vector<16x1xi32>
    %57 = arith.andi %52, %56 : vector<16x1xi1>
    %cst_19 = arith.constant 0.000000e+00 : f32
    %58 = vector.shape_cast %57 : vector<16x1xi1> to vector<16x1xi1>
    %59 = vector.broadcast %58 : vector<16x1xi1> to vector<16x32xi1>
    %60 = vector.broadcast %cst_19 : f32 to vector<16x32xf32>
    %61 = arith.select %59, %48, %60 : vector<16x32xi1>, vector<16x32xf32>
    %62 = vector.extract_strided_slice %28 {offsets = [1, 0], sizes = [1, 32], strides = [1, 1]} : vector<7x32xf32> to vector<1x32xf32>
    %63 = vector.broadcast %62 : vector<1x32xf32> to vector<16x32xf32>
    %64 = arith.mulf %61, %63 : vector<16x32xf32>
    %65 = arith.addf %47, %64 : vector<16x32xf32>
    %c1_i32 = arith.constant 1 : i32
    %66 = tpu.dynamic_rotate %26 by %c1_i32 dim 0 : vector<16x32xf32>, i32 -> vector<16x32xf32>
    %c-1_i32 = arith.constant -1 : i32
    %67 = vector.broadcast %c-1_i32 : i32 to vector<16x1xi32>
    %68 = arith.addi %2, %67 : vector<16x1xi32>
    %c0_i32_20 = arith.constant 0 : i32
    %69 = vector.broadcast %c0_i32_20 : i32 to vector<16x1xi32>
    %70 = arith.cmpi sge, %68, %69 : vector<16x1xi32>
    %c-1_i32_21 = arith.constant -1 : i32
    %71 = vector.broadcast %c-1_i32_21 : i32 to vector<16x1xi32>
    %72 = arith.addi %2, %71 : vector<16x1xi32>
    %c16_i32_22 = arith.constant 16 : i32
    %73 = vector.broadcast %c16_i32_22 : i32 to vector<16x1xi32>
    %74 = arith.cmpi slt, %72, %73 : vector<16x1xi32>
    %75 = arith.andi %70, %74 : vector<16x1xi1>
    %cst_23 = arith.constant 0.000000e+00 : f32
    %76 = vector.shape_cast %75 : vector<16x1xi1> to vector<16x1xi1>
    %77 = vector.broadcast %76 : vector<16x1xi1> to vector<16x32xi1>
    %78 = vector.broadcast %cst_23 : f32 to vector<16x32xf32>
    %79 = arith.select %77, %66, %78 : vector<16x32xi1>, vector<16x32xf32>
    %80 = vector.extract_strided_slice %28 {offsets = [2, 0], sizes = [1, 32], strides = [1, 1]} : vector<7x32xf32> to vector<1x32xf32>
    %81 = vector.broadcast %80 : vector<1x32xf32> to vector<16x32xf32>
    %82 = arith.mulf %79, %81 : vector<16x32xf32>
    %83 = arith.addf %65, %82 : vector<16x32xf32>
    %c0_i32_24 = arith.constant 0 : i32
    %84 = vector.broadcast %c0_i32_24 : i32 to vector<16x1xi32>
    %85 = arith.addi %2, %84 : vector<16x1xi32>
    %c0_i32_25 = arith.constant 0 : i32
    %86 = vector.broadcast %c0_i32_25 : i32 to vector<16x1xi32>
    %87 = arith.cmpi sge, %85, %86 : vector<16x1xi32>
    %c0_i32_26 = arith.constant 0 : i32
    %88 = vector.broadcast %c0_i32_26 : i32 to vector<16x1xi32>
    %89 = arith.addi %2, %88 : vector<16x1xi32>
    %c16_i32_27 = arith.constant 16 : i32
    %90 = vector.broadcast %c16_i32_27 : i32 to vector<16x1xi32>
    %91 = arith.cmpi slt, %89, %90 : vector<16x1xi32>
    %92 = arith.andi %87, %91 : vector<16x1xi1>
    %cst_28 = arith.constant 0.000000e+00 : f32
    %93 = vector.shape_cast %92 : vector<16x1xi1> to vector<16x1xi1>
    %94 = vector.broadcast %93 : vector<16x1xi1> to vector<16x32xi1>
    %95 = vector.broadcast %cst_28 : f32 to vector<16x32xf32>
    %96 = arith.select %94, %26, %95 : vector<16x32xi1>, vector<16x32xf32>
    %97 = vector.extract_strided_slice %28 {offsets = [3, 0], sizes = [1, 32], strides = [1, 1]} : vector<7x32xf32> to vector<1x32xf32>
    %98 = vector.broadcast %97 : vector<1x32xf32> to vector<16x32xf32>
    %99 = arith.mulf %96, %98 : vector<16x32xf32>
    %100 = arith.addf %83, %99 : vector<16x32xf32>
    %c15_i32 = arith.constant 15 : i32
    %101 = tpu.dynamic_rotate %26 by %c15_i32 dim 0 : vector<16x32xf32>, i32 -> vector<16x32xf32>
    %c1_i32_29 = arith.constant 1 : i32
    %102 = vector.broadcast %c1_i32_29 : i32 to vector<16x1xi32>
    %103 = arith.addi %2, %102 : vector<16x1xi32>
    %c0_i32_30 = arith.constant 0 : i32
    %104 = vector.broadcast %c0_i32_30 : i32 to vector<16x1xi32>
    %105 = arith.cmpi sge, %103, %104 : vector<16x1xi32>
    %c1_i32_31 = arith.constant 1 : i32
    %106 = vector.broadcast %c1_i32_31 : i32 to vector<16x1xi32>
    %107 = arith.addi %2, %106 : vector<16x1xi32>
    %c16_i32_32 = arith.constant 16 : i32
    %108 = vector.broadcast %c16_i32_32 : i32 to vector<16x1xi32>
    %109 = arith.cmpi slt, %107, %108 : vector<16x1xi32>
    %110 = arith.andi %105, %109 : vector<16x1xi1>
    %cst_33 = arith.constant 0.000000e+00 : f32
    %111 = vector.shape_cast %110 : vector<16x1xi1> to vector<16x1xi1>
    %112 = vector.broadcast %111 : vector<16x1xi1> to vector<16x32xi1>
    %113 = vector.broadcast %cst_33 : f32 to vector<16x32xf32>
    %114 = arith.select %112, %101, %113 : vector<16x32xi1>, vector<16x32xf32>
    %115 = vector.extract_strided_slice %28 {offsets = [4, 0], sizes = [1, 32], strides = [1, 1]} : vector<7x32xf32> to vector<1x32xf32>
    %116 = vector.broadcast %115 : vector<1x32xf32> to vector<16x32xf32>
    %117 = arith.mulf %114, %116 : vector<16x32xf32>
    %118 = arith.addf %100, %117 : vector<16x32xf32>
    %c14_i32 = arith.constant 14 : i32
    %119 = tpu.dynamic_rotate %26 by %c14_i32 dim 0 : vector<16x32xf32>, i32 -> vector<16x32xf32>
    %c2_i32_34 = arith.constant 2 : i32
    %120 = vector.broadcast %c2_i32_34 : i32 to vector<16x1xi32>
    %121 = arith.addi %2, %120 : vector<16x1xi32>
    %c0_i32_35 = arith.constant 0 : i32
    %122 = vector.broadcast %c0_i32_35 : i32 to vector<16x1xi32>
    %123 = arith.cmpi sge, %121, %122 : vector<16x1xi32>
    %c2_i32_36 = arith.constant 2 : i32
    %124 = vector.broadcast %c2_i32_36 : i32 to vector<16x1xi32>
    %125 = arith.addi %2, %124 : vector<16x1xi32>
    %c16_i32_37 = arith.constant 16 : i32
    %126 = vector.broadcast %c16_i32_37 : i32 to vector<16x1xi32>
    %127 = arith.cmpi slt, %125, %126 : vector<16x1xi32>
    %128 = arith.andi %123, %127 : vector<16x1xi1>
    %cst_38 = arith.constant 0.000000e+00 : f32
    %129 = vector.shape_cast %128 : vector<16x1xi1> to vector<16x1xi1>
    %130 = vector.broadcast %129 : vector<16x1xi1> to vector<16x32xi1>
    %131 = vector.broadcast %cst_38 : f32 to vector<16x32xf32>
    %132 = arith.select %130, %119, %131 : vector<16x32xi1>, vector<16x32xf32>
    %133 = vector.extract_strided_slice %28 {offsets = [5, 0], sizes = [1, 32], strides = [1, 1]} : vector<7x32xf32> to vector<1x32xf32>
    %134 = vector.broadcast %133 : vector<1x32xf32> to vector<16x32xf32>
    %135 = arith.mulf %132, %134 : vector<16x32xf32>
    %136 = arith.addf %118, %135 : vector<16x32xf32>
    %c13_i32 = arith.constant 13 : i32
    %137 = tpu.dynamic_rotate %26 by %c13_i32 dim 0 : vector<16x32xf32>, i32 -> vector<16x32xf32>
    %c3_i32_39 = arith.constant 3 : i32
    %138 = vector.broadcast %c3_i32_39 : i32 to vector<16x1xi32>
    %139 = arith.addi %2, %138 : vector<16x1xi32>
    %c0_i32_40 = arith.constant 0 : i32
    %140 = vector.broadcast %c0_i32_40 : i32 to vector<16x1xi32>
    %141 = arith.cmpi sge, %139, %140 : vector<16x1xi32>
    %c3_i32_41 = arith.constant 3 : i32
    %142 = vector.broadcast %c3_i32_41 : i32 to vector<16x1xi32>
    %143 = arith.addi %2, %142 : vector<16x1xi32>
    %c16_i32_42 = arith.constant 16 : i32
    %144 = vector.broadcast %c16_i32_42 : i32 to vector<16x1xi32>
    %145 = arith.cmpi slt, %143, %144 : vector<16x1xi32>
    %146 = arith.andi %141, %145 : vector<16x1xi1>
    %cst_43 = arith.constant 0.000000e+00 : f32
    %147 = vector.shape_cast %146 : vector<16x1xi1> to vector<16x1xi1>
    %148 = vector.broadcast %147 : vector<16x1xi1> to vector<16x32xi1>
    %149 = vector.broadcast %cst_43 : f32 to vector<16x32xf32>
    %150 = arith.select %148, %137, %149 : vector<16x32xi1>, vector<16x32xf32>
    %151 = vector.extract_strided_slice %28 {offsets = [6, 0], sizes = [1, 32], strides = [1, 1]} : vector<7x32xf32> to vector<1x32xf32>
    %152 = vector.broadcast %151 : vector<1x32xf32> to vector<16x32xf32>
    %153 = arith.mulf %150, %152 : vector<16x32xf32>
    %154 = arith.addf %136, %153 : vector<16x32xf32>
    %c0_44 = arith.constant 0 : index
    %c0_45 = arith.constant 0 : index
    %c0_46 = arith.constant 0 : index
    %155 = vector.load %arg6[%c0_44, %c0_45, %c0_46] : memref<4x32x32xf32, #tpu.memory_space<vmem>>, vector<1x32x32xf32>
    %156 = vector.shape_cast %155 : vector<1x32x32xf32> to vector<32x32xf32>
    %c0_47 = arith.constant 0 : index
    %c0_48 = arith.constant 0 : index
    %157 = vector.load %arg7[%c0_47, %c0_48] : memref<4x32xf32, #tpu.memory_space<vmem>>, vector<1x32xf32>
    %cst_49 = arith.constant dense<0.000000e+00> : vector<16x32xf32>
    %158 = tpu.matmul %154, %156, %cst_49 {dimension_numbers = #tpu.dot_dimension_numbers<[1], [0], [0], [1], [0, 0, 1, 1], [], []>} : vector<16x32xf32>, vector<32x32xf32>, vector<16x32xf32> -> vector<16x32xf32>
    %159 = vector.broadcast %157 : vector<1x32xf32> to vector<16x32xf32>
    %160 = arith.addf %158, %159 : vector<16x32xf32>
    %cst_50 = arith.constant 0.000000e+00 : f32
    %161 = vector.broadcast %cst_50 : f32 to vector<16x32xf32>
    %162 = arith.maximumf %160, %161 : vector<16x32xf32>
    %163 = arith.addf %162, %1 : vector<16x32xf32>
    %c1 = arith.constant 1 : index
    %c0_51 = arith.constant 0 : index
    %164 = vector.load %arg3[%c1, %c0_51] : memref<4x32xf32, #tpu.memory_space<vmem>>, vector<1x32xf32>
    %c1_52 = arith.constant 1 : index
    %c0_53 = arith.constant 0 : index
    %165 = vector.load %arg4[%c1_52, %c0_53] : memref<4x32xf32, #tpu.memory_space<vmem>>, vector<1x32xf32>
    %cst_54 = arith.constant dense<0.000000e+00> : vector<16xf32>
    %166 = vector.multi_reduction <add>, %163, %cst_54 [1] : vector<16x32xf32> to vector<16xf32>
    %167 = vector.shape_cast %166 : vector<16xf32> to vector<16x1xf32>
    %cst_55 = arith.constant 3.200000e+01 : f32
    %168 = vector.broadcast %cst_55 : f32 to vector<16x1xf32>
    %169 = arith.divf %167, %168 : vector<16x1xf32>
    %170 = vector.broadcast %169 : vector<16x1xf32> to vector<16x32xf32>
    %171 = arith.subf %163, %170 : vector<16x32xf32>
    %172 = arith.mulf %171, %171 : vector<16x32xf32>
    %cst_56 = arith.constant dense<0.000000e+00> : vector<16xf32>
    %173 = vector.multi_reduction <add>, %172, %cst_56 [1] : vector<16x32xf32> to vector<16xf32>
    %174 = vector.shape_cast %173 : vector<16xf32> to vector<16x1xf32>
    %cst_57 = arith.constant 3.200000e+01 : f32
    %175 = vector.broadcast %cst_57 : f32 to vector<16x1xf32>
    %176 = arith.divf %174, %175 : vector<16x1xf32>
    %177 = vector.broadcast %169 : vector<16x1xf32> to vector<16x32xf32>
    %178 = arith.subf %163, %177 : vector<16x32xf32>
    %cst_58 = arith.constant 9.99999997E-7 : f32
    %179 = vector.broadcast %cst_58 : f32 to vector<16x1xf32>
    %180 = arith.addf %176, %179 : vector<16x1xf32>
    %181 = math.rsqrt %180 : vector<16x1xf32>
    %182 = vector.broadcast %181 : vector<16x1xf32> to vector<16x32xf32>
    %183 = arith.mulf %178, %182 : vector<16x32xf32>
    %184 = vector.broadcast %164 : vector<1x32xf32> to vector<16x32xf32>
    %185 = arith.mulf %183, %184 : vector<16x32xf32>
    %186 = vector.broadcast %165 : vector<1x32xf32> to vector<16x32xf32>
    %187 = arith.addf %185, %186 : vector<16x32xf32>
    %c1_59 = arith.constant 1 : index
    %c0_60 = arith.constant 0 : index
    %c0_61 = arith.constant 0 : index
    %188 = vector.load %arg5[%c1_59, %c0_60, %c0_61] : memref<4x7x32xf32, #tpu.memory_space<vmem>>, vector<1x7x32xf32>
    %189 = vector.shape_cast %188 : vector<1x7x32xf32> to vector<7x32xf32>
    %cst_62 = arith.constant 0.000000e+00 : f32
    %190 = vector.broadcast %cst_62 : f32 to vector<16x32xf32>
    %c3_i32_63 = arith.constant 3 : i32
    %191 = tpu.dynamic_rotate %187 by %c3_i32_63 dim 0 : vector<16x32xf32>, i32 -> vector<16x32xf32>
    %c-3_i32_64 = arith.constant -3 : i32
    %192 = vector.broadcast %c-3_i32_64 : i32 to vector<16x1xi32>
    %193 = arith.addi %2, %192 : vector<16x1xi32>
    %c0_i32_65 = arith.constant 0 : i32
    %194 = vector.broadcast %c0_i32_65 : i32 to vector<16x1xi32>
    %195 = arith.cmpi sge, %193, %194 : vector<16x1xi32>
    %c-3_i32_66 = arith.constant -3 : i32
    %196 = vector.broadcast %c-3_i32_66 : i32 to vector<16x1xi32>
    %197 = arith.addi %2, %196 : vector<16x1xi32>
    %c16_i32_67 = arith.constant 16 : i32
    %198 = vector.broadcast %c16_i32_67 : i32 to vector<16x1xi32>
    %199 = arith.cmpi slt, %197, %198 : vector<16x1xi32>
    %200 = arith.andi %195, %199 : vector<16x1xi1>
    %cst_68 = arith.constant 0.000000e+00 : f32
    %201 = vector.shape_cast %200 : vector<16x1xi1> to vector<16x1xi1>
    %202 = vector.broadcast %201 : vector<16x1xi1> to vector<16x32xi1>
    %203 = vector.broadcast %cst_68 : f32 to vector<16x32xf32>
    %204 = arith.select %202, %191, %203 : vector<16x32xi1>, vector<16x32xf32>
    %205 = vector.extract_strided_slice %189 {offsets = [0, 0], sizes = [1, 32], strides = [1, 1]} : vector<7x32xf32> to vector<1x32xf32>
    %206 = vector.broadcast %205 : vector<1x32xf32> to vector<16x32xf32>
    %207 = arith.mulf %204, %206 : vector<16x32xf32>
    %208 = arith.addf %190, %207 : vector<16x32xf32>
    %c2_i32_69 = arith.constant 2 : i32
    %209 = tpu.dynamic_rotate %187 by %c2_i32_69 dim 0 : vector<16x32xf32>, i32 -> vector<16x32xf32>
    %c-2_i32_70 = arith.constant -2 : i32
    %210 = vector.broadcast %c-2_i32_70 : i32 to vector<16x1xi32>
    %211 = arith.addi %2, %210 : vector<16x1xi32>
    %c0_i32_71 = arith.constant 0 : i32
    %212 = vector.broadcast %c0_i32_71 : i32 to vector<16x1xi32>
    %213 = arith.cmpi sge, %211, %212 : vector<16x1xi32>
    %c-2_i32_72 = arith.constant -2 : i32
    %214 = vector.broadcast %c-2_i32_72 : i32 to vector<16x1xi32>
    %215 = arith.addi %2, %214 : vector<16x1xi32>
    %c16_i32_73 = arith.constant 16 : i32
    %216 = vector.broadcast %c16_i32_73 : i32 to vector<16x1xi32>
    %217 = arith.cmpi slt, %215, %216 : vector<16x1xi32>
    %218 = arith.andi %213, %217 : vector<16x1xi1>
    %cst_74 = arith.constant 0.000000e+00 : f32
    %219 = vector.shape_cast %218 : vector<16x1xi1> to vector<16x1xi1>
    %220 = vector.broadcast %219 : vector<16x1xi1> to vector<16x32xi1>
    %221 = vector.broadcast %cst_74 : f32 to vector<16x32xf32>
    %222 = arith.select %220, %209, %221 : vector<16x32xi1>, vector<16x32xf32>
    %223 = vector.extract_strided_slice %189 {offsets = [1, 0], sizes = [1, 32], strides = [1, 1]} : vector<7x32xf32> to vector<1x32xf32>
    %224 = vector.broadcast %223 : vector<1x32xf32> to vector<16x32xf32>
    %225 = arith.mulf %222, %224 : vector<16x32xf32>
    %226 = arith.addf %208, %225 : vector<16x32xf32>
    %c1_i32_75 = arith.constant 1 : i32
    %227 = tpu.dynamic_rotate %187 by %c1_i32_75 dim 0 : vector<16x32xf32>, i32 -> vector<16x32xf32>
    %c-1_i32_76 = arith.constant -1 : i32
    %228 = vector.broadcast %c-1_i32_76 : i32 to vector<16x1xi32>
    %229 = arith.addi %2, %228 : vector<16x1xi32>
    %c0_i32_77 = arith.constant 0 : i32
    %230 = vector.broadcast %c0_i32_77 : i32 to vector<16x1xi32>
    %231 = arith.cmpi sge, %229, %230 : vector<16x1xi32>
    %c-1_i32_78 = arith.constant -1 : i32
    %232 = vector.broadcast %c-1_i32_78 : i32 to vector<16x1xi32>
    %233 = arith.addi %2, %232 : vector<16x1xi32>
    %c16_i32_79 = arith.constant 16 : i32
    %234 = vector.broadcast %c16_i32_79 : i32 to vector<16x1xi32>
    %235 = arith.cmpi slt, %233, %234 : vector<16x1xi32>
    %236 = arith.andi %231, %235 : vector<16x1xi1>
    %cst_80 = arith.constant 0.000000e+00 : f32
    %237 = vector.shape_cast %236 : vector<16x1xi1> to vector<16x1xi1>
    %238 = vector.broadcast %237 : vector<16x1xi1> to vector<16x32xi1>
    %239 = vector.broadcast %cst_80 : f32 to vector<16x32xf32>
    %240 = arith.select %238, %227, %239 : vector<16x32xi1>, vector<16x32xf32>
    %241 = vector.extract_strided_slice %189 {offsets = [2, 0], sizes = [1, 32], strides = [1, 1]} : vector<7x32xf32> to vector<1x32xf32>
    %242 = vector.broadcast %241 : vector<1x32xf32> to vector<16x32xf32>
    %243 = arith.mulf %240, %242 : vector<16x32xf32>
    %244 = arith.addf %226, %243 : vector<16x32xf32>
    %c0_i32_81 = arith.constant 0 : i32
    %245 = vector.broadcast %c0_i32_81 : i32 to vector<16x1xi32>
    %246 = arith.addi %2, %245 : vector<16x1xi32>
    %c0_i32_82 = arith.constant 0 : i32
    %247 = vector.broadcast %c0_i32_82 : i32 to vector<16x1xi32>
    %248 = arith.cmpi sge, %246, %247 : vector<16x1xi32>
    %c0_i32_83 = arith.constant 0 : i32
    %249 = vector.broadcast %c0_i32_83 : i32 to vector<16x1xi32>
    %250 = arith.addi %2, %249 : vector<16x1xi32>
    %c16_i32_84 = arith.constant 16 : i32
    %251 = vector.broadcast %c16_i32_84 : i32 to vector<16x1xi32>
    %252 = arith.cmpi slt, %250, %251 : vector<16x1xi32>
    %253 = arith.andi %248, %252 : vector<16x1xi1>
    %cst_85 = arith.constant 0.000000e+00 : f32
    %254 = vector.shape_cast %253 : vector<16x1xi1> to vector<16x1xi1>
    %255 = vector.broadcast %254 : vector<16x1xi1> to vector<16x32xi1>
    %256 = vector.broadcast %cst_85 : f32 to vector<16x32xf32>
    %257 = arith.select %255, %187, %256 : vector<16x32xi1>, vector<16x32xf32>
    %258 = vector.extract_strided_slice %189 {offsets = [3, 0], sizes = [1, 32], strides = [1, 1]} : vector<7x32xf32> to vector<1x32xf32>
    %259 = vector.broadcast %258 : vector<1x32xf32> to vector<16x32xf32>
    %260 = arith.mulf %257, %259 : vector<16x32xf32>
    %261 = arith.addf %244, %260 : vector<16x32xf32>
    %c15_i32_86 = arith.constant 15 : i32
    %262 = tpu.dynamic_rotate %187 by %c15_i32_86 dim 0 : vector<16x32xf32>, i32 -> vector<16x32xf32>
    %c1_i32_87 = arith.constant 1 : i32
    %263 = vector.broadcast %c1_i32_87 : i32 to vector<16x1xi32>
    %264 = arith.addi %2, %263 : vector<16x1xi32>
    %c0_i32_88 = arith.constant 0 : i32
    %265 = vector.broadcast %c0_i32_88 : i32 to vector<16x1xi32>
    %266 = arith.cmpi sge, %264, %265 : vector<16x1xi32>
    %c1_i32_89 = arith.constant 1 : i32
    %267 = vector.broadcast %c1_i32_89 : i32 to vector<16x1xi32>
    %268 = arith.addi %2, %267 : vector<16x1xi32>
    %c16_i32_90 = arith.constant 16 : i32
    %269 = vector.broadcast %c16_i32_90 : i32 to vector<16x1xi32>
    %270 = arith.cmpi slt, %268, %269 : vector<16x1xi32>
    %271 = arith.andi %266, %270 : vector<16x1xi1>
    %cst_91 = arith.constant 0.000000e+00 : f32
    %272 = vector.shape_cast %271 : vector<16x1xi1> to vector<16x1xi1>
    %273 = vector.broadcast %272 : vector<16x1xi1> to vector<16x32xi1>
    %274 = vector.broadcast %cst_91 : f32 to vector<16x32xf32>
    %275 = arith.select %273, %262, %274 : vector<16x32xi1>, vector<16x32xf32>
    %276 = vector.extract_strided_slice %189 {offsets = [4, 0], sizes = [1, 32], strides = [1, 1]} : vector<7x32xf32> to vector<1x32xf32>
    %277 = vector.broadcast %276 : vector<1x32xf32> to vector<16x32xf32>
    %278 = arith.mulf %275, %277 : vector<16x32xf32>
    %279 = arith.addf %261, %278 : vector<16x32xf32>
    %c14_i32_92 = arith.constant 14 : i32
    %280 = tpu.dynamic_rotate %187 by %c14_i32_92 dim 0 : vector<16x32xf32>, i32 -> vector<16x32xf32>
    %c2_i32_93 = arith.constant 2 : i32
    %281 = vector.broadcast %c2_i32_93 : i32 to vector<16x1xi32>
    %282 = arith.addi %2, %281 : vector<16x1xi32>
    %c0_i32_94 = arith.constant 0 : i32
    %283 = vector.broadcast %c0_i32_94 : i32 to vector<16x1xi32>
    %284 = arith.cmpi sge, %282, %283 : vector<16x1xi32>
    %c2_i32_95 = arith.constant 2 : i32
    %285 = vector.broadcast %c2_i32_95 : i32 to vector<16x1xi32>
    %286 = arith.addi %2, %285 : vector<16x1xi32>
    %c16_i32_96 = arith.constant 16 : i32
    %287 = vector.broadcast %c16_i32_96 : i32 to vector<16x1xi32>
    %288 = arith.cmpi slt, %286, %287 : vector<16x1xi32>
    %289 = arith.andi %284, %288 : vector<16x1xi1>
    %cst_97 = arith.constant 0.000000e+00 : f32
    %290 = vector.shape_cast %289 : vector<16x1xi1> to vector<16x1xi1>
    %291 = vector.broadcast %290 : vector<16x1xi1> to vector<16x32xi1>
    %292 = vector.broadcast %cst_97 : f32 to vector<16x32xf32>
    %293 = arith.select %291, %280, %292 : vector<16x32xi1>, vector<16x32xf32>
    %294 = vector.extract_strided_slice %189 {offsets = [5, 0], sizes = [1, 32], strides = [1, 1]} : vector<7x32xf32> to vector<1x32xf32>
    %295 = vector.broadcast %294 : vector<1x32xf32> to vector<16x32xf32>
    %296 = arith.mulf %293, %295 : vector<16x32xf32>
    %297 = arith.addf %279, %296 : vector<16x32xf32>
    %c13_i32_98 = arith.constant 13 : i32
    %298 = tpu.dynamic_rotate %187 by %c13_i32_98 dim 0 : vector<16x32xf32>, i32 -> vector<16x32xf32>
    %c3_i32_99 = arith.constant 3 : i32
    %299 = vector.broadcast %c3_i32_99 : i32 to vector<16x1xi32>
    %300 = arith.addi %2, %299 : vector<16x1xi32>
    %c0_i32_100 = arith.constant 0 : i32
    %301 = vector.broadcast %c0_i32_100 : i32 to vector<16x1xi32>
    %302 = arith.cmpi sge, %300, %301 : vector<16x1xi32>
    %c3_i32_101 = arith.constant 3 : i32
    %303 = vector.broadcast %c3_i32_101 : i32 to vector<16x1xi32>
    %304 = arith.addi %2, %303 : vector<16x1xi32>
    %c16_i32_102 = arith.constant 16 : i32
    %305 = vector.broadcast %c16_i32_102 : i32 to vector<16x1xi32>
    %306 = arith.cmpi slt, %304, %305 : vector<16x1xi32>
    %307 = arith.andi %302, %306 : vector<16x1xi1>
    %cst_103 = arith.constant 0.000000e+00 : f32
    %308 = vector.shape_cast %307 : vector<16x1xi1> to vector<16x1xi1>
    %309 = vector.broadcast %308 : vector<16x1xi1> to vector<16x32xi1>
    %310 = vector.broadcast %cst_103 : f32 to vector<16x32xf32>
    %311 = arith.select %309, %298, %310 : vector<16x32xi1>, vector<16x32xf32>
    %312 = vector.extract_strided_slice %189 {offsets = [6, 0], sizes = [1, 32], strides = [1, 1]} : vector<7x32xf32> to vector<1x32xf32>
    %313 = vector.broadcast %312 : vector<1x32xf32> to vector<16x32xf32>
    %314 = arith.mulf %311, %313 : vector<16x32xf32>
    %315 = arith.addf %297, %314 : vector<16x32xf32>
    %c1_104 = arith.constant 1 : index
    %c0_105 = arith.constant 0 : index
    %c0_106 = arith.constant 0 : index
    %316 = vector.load %arg6[%c1_104, %c0_105, %c0_106] : memref<4x32x32xf32, #tpu.memory_space<vmem>>, vector<1x32x32xf32>
    %317 = vector.shape_cast %316 : vector<1x32x32xf32> to vector<32x32xf32>
    %c1_107 = arith.constant 1 : index
    %c0_108 = arith.constant 0 : index
    %318 = vector.load %arg7[%c1_107, %c0_108] : memref<4x32xf32, #tpu.memory_space<vmem>>, vector<1x32xf32>
    %cst_109 = arith.constant dense<0.000000e+00> : vector<16x32xf32>
    %319 = tpu.matmul %315, %317, %cst_109 {dimension_numbers = #tpu.dot_dimension_numbers<[1], [0], [0], [1], [0, 0, 1, 1], [], []>} : vector<16x32xf32>, vector<32x32xf32>, vector<16x32xf32> -> vector<16x32xf32>
    %320 = vector.broadcast %318 : vector<1x32xf32> to vector<16x32xf32>
    %321 = arith.addf %319, %320 : vector<16x32xf32>
    %cst_110 = arith.constant 0.000000e+00 : f32
    %322 = vector.broadcast %cst_110 : f32 to vector<16x32xf32>
    %323 = arith.maximumf %321, %322 : vector<16x32xf32>
    %324 = arith.addf %323, %163 : vector<16x32xf32>
    %c2 = arith.constant 2 : index
    %c0_111 = arith.constant 0 : index
    %325 = vector.load %arg3[%c2, %c0_111] : memref<4x32xf32, #tpu.memory_space<vmem>>, vector<1x32xf32>
    %c2_112 = arith.constant 2 : index
    %c0_113 = arith.constant 0 : index
    %326 = vector.load %arg4[%c2_112, %c0_113] : memref<4x32xf32, #tpu.memory_space<vmem>>, vector<1x32xf32>
    %cst_114 = arith.constant dense<0.000000e+00> : vector<16xf32>
    %327 = vector.multi_reduction <add>, %324, %cst_114 [1] : vector<16x32xf32> to vector<16xf32>
    %328 = vector.shape_cast %327 : vector<16xf32> to vector<16x1xf32>
    %cst_115 = arith.constant 3.200000e+01 : f32
    %329 = vector.broadcast %cst_115 : f32 to vector<16x1xf32>
    %330 = arith.divf %328, %329 : vector<16x1xf32>
    %331 = vector.broadcast %330 : vector<16x1xf32> to vector<16x32xf32>
    %332 = arith.subf %324, %331 : vector<16x32xf32>
    %333 = arith.mulf %332, %332 : vector<16x32xf32>
    %cst_116 = arith.constant dense<0.000000e+00> : vector<16xf32>
    %334 = vector.multi_reduction <add>, %333, %cst_116 [1] : vector<16x32xf32> to vector<16xf32>
    %335 = vector.shape_cast %334 : vector<16xf32> to vector<16x1xf32>
    %cst_117 = arith.constant 3.200000e+01 : f32
    %336 = vector.broadcast %cst_117 : f32 to vector<16x1xf32>
    %337 = arith.divf %335, %336 : vector<16x1xf32>
    %338 = vector.broadcast %330 : vector<16x1xf32> to vector<16x32xf32>
    %339 = arith.subf %324, %338 : vector<16x32xf32>
    %cst_118 = arith.constant 9.99999997E-7 : f32
    %340 = vector.broadcast %cst_118 : f32 to vector<16x1xf32>
    %341 = arith.addf %337, %340 : vector<16x1xf32>
    %342 = math.rsqrt %341 : vector<16x1xf32>
    %343 = vector.broadcast %342 : vector<16x1xf32> to vector<16x32xf32>
    %344 = arith.mulf %339, %343 : vector<16x32xf32>
    %345 = vector.broadcast %325 : vector<1x32xf32> to vector<16x32xf32>
    %346 = arith.mulf %344, %345 : vector<16x32xf32>
    %347 = vector.broadcast %326 : vector<1x32xf32> to vector<16x32xf32>
    %348 = arith.addf %346, %347 : vector<16x32xf32>
    %c2_119 = arith.constant 2 : index
    %c0_120 = arith.constant 0 : index
    %c0_121 = arith.constant 0 : index
    %349 = vector.load %arg5[%c2_119, %c0_120, %c0_121] : memref<4x7x32xf32, #tpu.memory_space<vmem>>, vector<1x7x32xf32>
    %350 = vector.shape_cast %349 : vector<1x7x32xf32> to vector<7x32xf32>
    %cst_122 = arith.constant 0.000000e+00 : f32
    %351 = vector.broadcast %cst_122 : f32 to vector<16x32xf32>
    %c3_i32_123 = arith.constant 3 : i32
    %352 = tpu.dynamic_rotate %348 by %c3_i32_123 dim 0 : vector<16x32xf32>, i32 -> vector<16x32xf32>
    %c-3_i32_124 = arith.constant -3 : i32
    %353 = vector.broadcast %c-3_i32_124 : i32 to vector<16x1xi32>
    %354 = arith.addi %2, %353 : vector<16x1xi32>
    %c0_i32_125 = arith.constant 0 : i32
    %355 = vector.broadcast %c0_i32_125 : i32 to vector<16x1xi32>
    %356 = arith.cmpi sge, %354, %355 : vector<16x1xi32>
    %c-3_i32_126 = arith.constant -3 : i32
    %357 = vector.broadcast %c-3_i32_126 : i32 to vector<16x1xi32>
    %358 = arith.addi %2, %357 : vector<16x1xi32>
    %c16_i32_127 = arith.constant 16 : i32
    %359 = vector.broadcast %c16_i32_127 : i32 to vector<16x1xi32>
    %360 = arith.cmpi slt, %358, %359 : vector<16x1xi32>
    %361 = arith.andi %356, %360 : vector<16x1xi1>
    %cst_128 = arith.constant 0.000000e+00 : f32
    %362 = vector.shape_cast %361 : vector<16x1xi1> to vector<16x1xi1>
    %363 = vector.broadcast %362 : vector<16x1xi1> to vector<16x32xi1>
    %364 = vector.broadcast %cst_128 : f32 to vector<16x32xf32>
    %365 = arith.select %363, %352, %364 : vector<16x32xi1>, vector<16x32xf32>
    %366 = vector.extract_strided_slice %350 {offsets = [0, 0], sizes = [1, 32], strides = [1, 1]} : vector<7x32xf32> to vector<1x32xf32>
    %367 = vector.broadcast %366 : vector<1x32xf32> to vector<16x32xf32>
    %368 = arith.mulf %365, %367 : vector<16x32xf32>
    %369 = arith.addf %351, %368 : vector<16x32xf32>
    %c2_i32_129 = arith.constant 2 : i32
    %370 = tpu.dynamic_rotate %348 by %c2_i32_129 dim 0 : vector<16x32xf32>, i32 -> vector<16x32xf32>
    %c-2_i32_130 = arith.constant -2 : i32
    %371 = vector.broadcast %c-2_i32_130 : i32 to vector<16x1xi32>
    %372 = arith.addi %2, %371 : vector<16x1xi32>
    %c0_i32_131 = arith.constant 0 : i32
    %373 = vector.broadcast %c0_i32_131 : i32 to vector<16x1xi32>
    %374 = arith.cmpi sge, %372, %373 : vector<16x1xi32>
    %c-2_i32_132 = arith.constant -2 : i32
    %375 = vector.broadcast %c-2_i32_132 : i32 to vector<16x1xi32>
    %376 = arith.addi %2, %375 : vector<16x1xi32>
    %c16_i32_133 = arith.constant 16 : i32
    %377 = vector.broadcast %c16_i32_133 : i32 to vector<16x1xi32>
    %378 = arith.cmpi slt, %376, %377 : vector<16x1xi32>
    %379 = arith.andi %374, %378 : vector<16x1xi1>
    %cst_134 = arith.constant 0.000000e+00 : f32
    %380 = vector.shape_cast %379 : vector<16x1xi1> to vector<16x1xi1>
    %381 = vector.broadcast %380 : vector<16x1xi1> to vector<16x32xi1>
    %382 = vector.broadcast %cst_134 : f32 to vector<16x32xf32>
    %383 = arith.select %381, %370, %382 : vector<16x32xi1>, vector<16x32xf32>
    %384 = vector.extract_strided_slice %350 {offsets = [1, 0], sizes = [1, 32], strides = [1, 1]} : vector<7x32xf32> to vector<1x32xf32>
    %385 = vector.broadcast %384 : vector<1x32xf32> to vector<16x32xf32>
    %386 = arith.mulf %383, %385 : vector<16x32xf32>
    %387 = arith.addf %369, %386 : vector<16x32xf32>
    %c1_i32_135 = arith.constant 1 : i32
    %388 = tpu.dynamic_rotate %348 by %c1_i32_135 dim 0 : vector<16x32xf32>, i32 -> vector<16x32xf32>
    %c-1_i32_136 = arith.constant -1 : i32
    %389 = vector.broadcast %c-1_i32_136 : i32 to vector<16x1xi32>
    %390 = arith.addi %2, %389 : vector<16x1xi32>
    %c0_i32_137 = arith.constant 0 : i32
    %391 = vector.broadcast %c0_i32_137 : i32 to vector<16x1xi32>
    %392 = arith.cmpi sge, %390, %391 : vector<16x1xi32>
    %c-1_i32_138 = arith.constant -1 : i32
    %393 = vector.broadcast %c-1_i32_138 : i32 to vector<16x1xi32>
    %394 = arith.addi %2, %393 : vector<16x1xi32>
    %c16_i32_139 = arith.constant 16 : i32
    %395 = vector.broadcast %c16_i32_139 : i32 to vector<16x1xi32>
    %396 = arith.cmpi slt, %394, %395 : vector<16x1xi32>
    %397 = arith.andi %392, %396 : vector<16x1xi1>
    %cst_140 = arith.constant 0.000000e+00 : f32
    %398 = vector.shape_cast %397 : vector<16x1xi1> to vector<16x1xi1>
    %399 = vector.broadcast %398 : vector<16x1xi1> to vector<16x32xi1>
    %400 = vector.broadcast %cst_140 : f32 to vector<16x32xf32>
    %401 = arith.select %399, %388, %400 : vector<16x32xi1>, vector<16x32xf32>
    %402 = vector.extract_strided_slice %350 {offsets = [2, 0], sizes = [1, 32], strides = [1, 1]} : vector<7x32xf32> to vector<1x32xf32>
    %403 = vector.broadcast %402 : vector<1x32xf32> to vector<16x32xf32>
    %404 = arith.mulf %401, %403 : vector<16x32xf32>
    %405 = arith.addf %387, %404 : vector<16x32xf32>
    %c0_i32_141 = arith.constant 0 : i32
    %406 = vector.broadcast %c0_i32_141 : i32 to vector<16x1xi32>
    %407 = arith.addi %2, %406 : vector<16x1xi32>
    %c0_i32_142 = arith.constant 0 : i32
    %408 = vector.broadcast %c0_i32_142 : i32 to vector<16x1xi32>
    %409 = arith.cmpi sge, %407, %408 : vector<16x1xi32>
    %c0_i32_143 = arith.constant 0 : i32
    %410 = vector.broadcast %c0_i32_143 : i32 to vector<16x1xi32>
    %411 = arith.addi %2, %410 : vector<16x1xi32>
    %c16_i32_144 = arith.constant 16 : i32
    %412 = vector.broadcast %c16_i32_144 : i32 to vector<16x1xi32>
    %413 = arith.cmpi slt, %411, %412 : vector<16x1xi32>
    %414 = arith.andi %409, %413 : vector<16x1xi1>
    %cst_145 = arith.constant 0.000000e+00 : f32
    %415 = vector.shape_cast %414 : vector<16x1xi1> to vector<16x1xi1>
    %416 = vector.broadcast %415 : vector<16x1xi1> to vector<16x32xi1>
    %417 = vector.broadcast %cst_145 : f32 to vector<16x32xf32>
    %418 = arith.select %416, %348, %417 : vector<16x32xi1>, vector<16x32xf32>
    %419 = vector.extract_strided_slice %350 {offsets = [3, 0], sizes = [1, 32], strides = [1, 1]} : vector<7x32xf32> to vector<1x32xf32>
    %420 = vector.broadcast %419 : vector<1x32xf32> to vector<16x32xf32>
    %421 = arith.mulf %418, %420 : vector<16x32xf32>
    %422 = arith.addf %405, %421 : vector<16x32xf32>
    %c15_i32_146 = arith.constant 15 : i32
    %423 = tpu.dynamic_rotate %348 by %c15_i32_146 dim 0 : vector<16x32xf32>, i32 -> vector<16x32xf32>
    %c1_i32_147 = arith.constant 1 : i32
    %424 = vector.broadcast %c1_i32_147 : i32 to vector<16x1xi32>
    %425 = arith.addi %2, %424 : vector<16x1xi32>
    %c0_i32_148 = arith.constant 0 : i32
    %426 = vector.broadcast %c0_i32_148 : i32 to vector<16x1xi32>
    %427 = arith.cmpi sge, %425, %426 : vector<16x1xi32>
    %c1_i32_149 = arith.constant 1 : i32
    %428 = vector.broadcast %c1_i32_149 : i32 to vector<16x1xi32>
    %429 = arith.addi %2, %428 : vector<16x1xi32>
    %c16_i32_150 = arith.constant 16 : i32
    %430 = vector.broadcast %c16_i32_150 : i32 to vector<16x1xi32>
    %431 = arith.cmpi slt, %429, %430 : vector<16x1xi32>
    %432 = arith.andi %427, %431 : vector<16x1xi1>
    %cst_151 = arith.constant 0.000000e+00 : f32
    %433 = vector.shape_cast %432 : vector<16x1xi1> to vector<16x1xi1>
    %434 = vector.broadcast %433 : vector<16x1xi1> to vector<16x32xi1>
    %435 = vector.broadcast %cst_151 : f32 to vector<16x32xf32>
    %436 = arith.select %434, %423, %435 : vector<16x32xi1>, vector<16x32xf32>
    %437 = vector.extract_strided_slice %350 {offsets = [4, 0], sizes = [1, 32], strides = [1, 1]} : vector<7x32xf32> to vector<1x32xf32>
    %438 = vector.broadcast %437 : vector<1x32xf32> to vector<16x32xf32>
    %439 = arith.mulf %436, %438 : vector<16x32xf32>
    %440 = arith.addf %422, %439 : vector<16x32xf32>
    %c14_i32_152 = arith.constant 14 : i32
    %441 = tpu.dynamic_rotate %348 by %c14_i32_152 dim 0 : vector<16x32xf32>, i32 -> vector<16x32xf32>
    %c2_i32_153 = arith.constant 2 : i32
    %442 = vector.broadcast %c2_i32_153 : i32 to vector<16x1xi32>
    %443 = arith.addi %2, %442 : vector<16x1xi32>
    %c0_i32_154 = arith.constant 0 : i32
    %444 = vector.broadcast %c0_i32_154 : i32 to vector<16x1xi32>
    %445 = arith.cmpi sge, %443, %444 : vector<16x1xi32>
    %c2_i32_155 = arith.constant 2 : i32
    %446 = vector.broadcast %c2_i32_155 : i32 to vector<16x1xi32>
    %447 = arith.addi %2, %446 : vector<16x1xi32>
    %c16_i32_156 = arith.constant 16 : i32
    %448 = vector.broadcast %c16_i32_156 : i32 to vector<16x1xi32>
    %449 = arith.cmpi slt, %447, %448 : vector<16x1xi32>
    %450 = arith.andi %445, %449 : vector<16x1xi1>
    %cst_157 = arith.constant 0.000000e+00 : f32
    %451 = vector.shape_cast %450 : vector<16x1xi1> to vector<16x1xi1>
    %452 = vector.broadcast %451 : vector<16x1xi1> to vector<16x32xi1>
    %453 = vector.broadcast %cst_157 : f32 to vector<16x32xf32>
    %454 = arith.select %452, %441, %453 : vector<16x32xi1>, vector<16x32xf32>
    %455 = vector.extract_strided_slice %350 {offsets = [5, 0], sizes = [1, 32], strides = [1, 1]} : vector<7x32xf32> to vector<1x32xf32>
    %456 = vector.broadcast %455 : vector<1x32xf32> to vector<16x32xf32>
    %457 = arith.mulf %454, %456 : vector<16x32xf32>
    %458 = arith.addf %440, %457 : vector<16x32xf32>
    %c13_i32_158 = arith.constant 13 : i32
    %459 = tpu.dynamic_rotate %348 by %c13_i32_158 dim 0 : vector<16x32xf32>, i32 -> vector<16x32xf32>
    %c3_i32_159 = arith.constant 3 : i32
    %460 = vector.broadcast %c3_i32_159 : i32 to vector<16x1xi32>
    %461 = arith.addi %2, %460 : vector<16x1xi32>
    %c0_i32_160 = arith.constant 0 : i32
    %462 = vector.broadcast %c0_i32_160 : i32 to vector<16x1xi32>
    %463 = arith.cmpi sge, %461, %462 : vector<16x1xi32>
    %c3_i32_161 = arith.constant 3 : i32
    %464 = vector.broadcast %c3_i32_161 : i32 to vector<16x1xi32>
    %465 = arith.addi %2, %464 : vector<16x1xi32>
    %c16_i32_162 = arith.constant 16 : i32
    %466 = vector.broadcast %c16_i32_162 : i32 to vector<16x1xi32>
    %467 = arith.cmpi slt, %465, %466 : vector<16x1xi32>
    %468 = arith.andi %463, %467 : vector<16x1xi1>
    %cst_163 = arith.constant 0.000000e+00 : f32
    %469 = vector.shape_cast %468 : vector<16x1xi1> to vector<16x1xi1>
    %470 = vector.broadcast %469 : vector<16x1xi1> to vector<16x32xi1>
    %471 = vector.broadcast %cst_163 : f32 to vector<16x32xf32>
    %472 = arith.select %470, %459, %471 : vector<16x32xi1>, vector<16x32xf32>
    %473 = vector.extract_strided_slice %350 {offsets = [6, 0], sizes = [1, 32], strides = [1, 1]} : vector<7x32xf32> to vector<1x32xf32>
    %474 = vector.broadcast %473 : vector<1x32xf32> to vector<16x32xf32>
    %475 = arith.mulf %472, %474 : vector<16x32xf32>
    %476 = arith.addf %458, %475 : vector<16x32xf32>
    %c2_164 = arith.constant 2 : index
    %c0_165 = arith.constant 0 : index
    %c0_166 = arith.constant 0 : index
    %477 = vector.load %arg6[%c2_164, %c0_165, %c0_166] : memref<4x32x32xf32, #tpu.memory_space<vmem>>, vector<1x32x32xf32>
    %478 = vector.shape_cast %477 : vector<1x32x32xf32> to vector<32x32xf32>
    %c2_167 = arith.constant 2 : index
    %c0_168 = arith.constant 0 : index
    %479 = vector.load %arg7[%c2_167, %c0_168] : memref<4x32xf32, #tpu.memory_space<vmem>>, vector<1x32xf32>
    %cst_169 = arith.constant dense<0.000000e+00> : vector<16x32xf32>
    %480 = tpu.matmul %476, %478, %cst_169 {dimension_numbers = #tpu.dot_dimension_numbers<[1], [0], [0], [1], [0, 0, 1, 1], [], []>} : vector<16x32xf32>, vector<32x32xf32>, vector<16x32xf32> -> vector<16x32xf32>
    %481 = vector.broadcast %479 : vector<1x32xf32> to vector<16x32xf32>
    %482 = arith.addf %480, %481 : vector<16x32xf32>
    %cst_170 = arith.constant 0.000000e+00 : f32
    %483 = vector.broadcast %cst_170 : f32 to vector<16x32xf32>
    %484 = arith.maximumf %482, %483 : vector<16x32xf32>
    %485 = arith.addf %484, %324 : vector<16x32xf32>
    %c3 = arith.constant 3 : index
    %c0_171 = arith.constant 0 : index
    %486 = vector.load %arg3[%c3, %c0_171] : memref<4x32xf32, #tpu.memory_space<vmem>>, vector<1x32xf32>
    %c3_172 = arith.constant 3 : index
    %c0_173 = arith.constant 0 : index
    %487 = vector.load %arg4[%c3_172, %c0_173] : memref<4x32xf32, #tpu.memory_space<vmem>>, vector<1x32xf32>
    %cst_174 = arith.constant dense<0.000000e+00> : vector<16xf32>
    %488 = vector.multi_reduction <add>, %485, %cst_174 [1] : vector<16x32xf32> to vector<16xf32>
    %489 = vector.shape_cast %488 : vector<16xf32> to vector<16x1xf32>
    %cst_175 = arith.constant 3.200000e+01 : f32
    %490 = vector.broadcast %cst_175 : f32 to vector<16x1xf32>
    %491 = arith.divf %489, %490 : vector<16x1xf32>
    %492 = vector.broadcast %491 : vector<16x1xf32> to vector<16x32xf32>
    %493 = arith.subf %485, %492 : vector<16x32xf32>
    %494 = arith.mulf %493, %493 : vector<16x32xf32>
    %cst_176 = arith.constant dense<0.000000e+00> : vector<16xf32>
    %495 = vector.multi_reduction <add>, %494, %cst_176 [1] : vector<16x32xf32> to vector<16xf32>
    %496 = vector.shape_cast %495 : vector<16xf32> to vector<16x1xf32>
    %cst_177 = arith.constant 3.200000e+01 : f32
    %497 = vector.broadcast %cst_177 : f32 to vector<16x1xf32>
    %498 = arith.divf %496, %497 : vector<16x1xf32>
    %499 = vector.broadcast %491 : vector<16x1xf32> to vector<16x32xf32>
    %500 = arith.subf %485, %499 : vector<16x32xf32>
    %cst_178 = arith.constant 9.99999997E-7 : f32
    %501 = vector.broadcast %cst_178 : f32 to vector<16x1xf32>
    %502 = arith.addf %498, %501 : vector<16x1xf32>
    %503 = math.rsqrt %502 : vector<16x1xf32>
    %504 = vector.broadcast %503 : vector<16x1xf32> to vector<16x32xf32>
    %505 = arith.mulf %500, %504 : vector<16x32xf32>
    %506 = vector.broadcast %486 : vector<1x32xf32> to vector<16x32xf32>
    %507 = arith.mulf %505, %506 : vector<16x32xf32>
    %508 = vector.broadcast %487 : vector<1x32xf32> to vector<16x32xf32>
    %509 = arith.addf %507, %508 : vector<16x32xf32>
    %c3_179 = arith.constant 3 : index
    %c0_180 = arith.constant 0 : index
    %c0_181 = arith.constant 0 : index
    %510 = vector.load %arg5[%c3_179, %c0_180, %c0_181] : memref<4x7x32xf32, #tpu.memory_space<vmem>>, vector<1x7x32xf32>
    %511 = vector.shape_cast %510 : vector<1x7x32xf32> to vector<7x32xf32>
    %cst_182 = arith.constant 0.000000e+00 : f32
    %512 = vector.broadcast %cst_182 : f32 to vector<16x32xf32>
    %c3_i32_183 = arith.constant 3 : i32
    %513 = tpu.dynamic_rotate %509 by %c3_i32_183 dim 0 : vector<16x32xf32>, i32 -> vector<16x32xf32>
    %c-3_i32_184 = arith.constant -3 : i32
    %514 = vector.broadcast %c-3_i32_184 : i32 to vector<16x1xi32>
    %515 = arith.addi %2, %514 : vector<16x1xi32>
    %c0_i32_185 = arith.constant 0 : i32
    %516 = vector.broadcast %c0_i32_185 : i32 to vector<16x1xi32>
    %517 = arith.cmpi sge, %515, %516 : vector<16x1xi32>
    %c-3_i32_186 = arith.constant -3 : i32
    %518 = vector.broadcast %c-3_i32_186 : i32 to vector<16x1xi32>
    %519 = arith.addi %2, %518 : vector<16x1xi32>
    %c16_i32_187 = arith.constant 16 : i32
    %520 = vector.broadcast %c16_i32_187 : i32 to vector<16x1xi32>
    %521 = arith.cmpi slt, %519, %520 : vector<16x1xi32>
    %522 = arith.andi %517, %521 : vector<16x1xi1>
    %cst_188 = arith.constant 0.000000e+00 : f32
    %523 = vector.shape_cast %522 : vector<16x1xi1> to vector<16x1xi1>
    %524 = vector.broadcast %523 : vector<16x1xi1> to vector<16x32xi1>
    %525 = vector.broadcast %cst_188 : f32 to vector<16x32xf32>
    %526 = arith.select %524, %513, %525 : vector<16x32xi1>, vector<16x32xf32>
    %527 = vector.extract_strided_slice %511 {offsets = [0, 0], sizes = [1, 32], strides = [1, 1]} : vector<7x32xf32> to vector<1x32xf32>
    %528 = vector.broadcast %527 : vector<1x32xf32> to vector<16x32xf32>
    %529 = arith.mulf %526, %528 : vector<16x32xf32>
    %530 = arith.addf %512, %529 : vector<16x32xf32>
    %c2_i32_189 = arith.constant 2 : i32
    %531 = tpu.dynamic_rotate %509 by %c2_i32_189 dim 0 : vector<16x32xf32>, i32 -> vector<16x32xf32>
    %c-2_i32_190 = arith.constant -2 : i32
    %532 = vector.broadcast %c-2_i32_190 : i32 to vector<16x1xi32>
    %533 = arith.addi %2, %532 : vector<16x1xi32>
    %c0_i32_191 = arith.constant 0 : i32
    %534 = vector.broadcast %c0_i32_191 : i32 to vector<16x1xi32>
    %535 = arith.cmpi sge, %533, %534 : vector<16x1xi32>
    %c-2_i32_192 = arith.constant -2 : i32
    %536 = vector.broadcast %c-2_i32_192 : i32 to vector<16x1xi32>
    %537 = arith.addi %2, %536 : vector<16x1xi32>
    %c16_i32_193 = arith.constant 16 : i32
    %538 = vector.broadcast %c16_i32_193 : i32 to vector<16x1xi32>
    %539 = arith.cmpi slt, %537, %538 : vector<16x1xi32>
    %540 = arith.andi %535, %539 : vector<16x1xi1>
    %cst_194 = arith.constant 0.000000e+00 : f32
    %541 = vector.shape_cast %540 : vector<16x1xi1> to vector<16x1xi1>
    %542 = vector.broadcast %541 : vector<16x1xi1> to vector<16x32xi1>
    %543 = vector.broadcast %cst_194 : f32 to vector<16x32xf32>
    %544 = arith.select %542, %531, %543 : vector<16x32xi1>, vector<16x32xf32>
    %545 = vector.extract_strided_slice %511 {offsets = [1, 0], sizes = [1, 32], strides = [1, 1]} : vector<7x32xf32> to vector<1x32xf32>
    %546 = vector.broadcast %545 : vector<1x32xf32> to vector<16x32xf32>
    %547 = arith.mulf %544, %546 : vector<16x32xf32>
    %548 = arith.addf %530, %547 : vector<16x32xf32>
    %c1_i32_195 = arith.constant 1 : i32
    %549 = tpu.dynamic_rotate %509 by %c1_i32_195 dim 0 : vector<16x32xf32>, i32 -> vector<16x32xf32>
    %c-1_i32_196 = arith.constant -1 : i32
    %550 = vector.broadcast %c-1_i32_196 : i32 to vector<16x1xi32>
    %551 = arith.addi %2, %550 : vector<16x1xi32>
    %c0_i32_197 = arith.constant 0 : i32
    %552 = vector.broadcast %c0_i32_197 : i32 to vector<16x1xi32>
    %553 = arith.cmpi sge, %551, %552 : vector<16x1xi32>
    %c-1_i32_198 = arith.constant -1 : i32
    %554 = vector.broadcast %c-1_i32_198 : i32 to vector<16x1xi32>
    %555 = arith.addi %2, %554 : vector<16x1xi32>
    %c16_i32_199 = arith.constant 16 : i32
    %556 = vector.broadcast %c16_i32_199 : i32 to vector<16x1xi32>
    %557 = arith.cmpi slt, %555, %556 : vector<16x1xi32>
    %558 = arith.andi %553, %557 : vector<16x1xi1>
    %cst_200 = arith.constant 0.000000e+00 : f32
    %559 = vector.shape_cast %558 : vector<16x1xi1> to vector<16x1xi1>
    %560 = vector.broadcast %559 : vector<16x1xi1> to vector<16x32xi1>
    %561 = vector.broadcast %cst_200 : f32 to vector<16x32xf32>
    %562 = arith.select %560, %549, %561 : vector<16x32xi1>, vector<16x32xf32>
    %563 = vector.extract_strided_slice %511 {offsets = [2, 0], sizes = [1, 32], strides = [1, 1]} : vector<7x32xf32> to vector<1x32xf32>
    %564 = vector.broadcast %563 : vector<1x32xf32> to vector<16x32xf32>
    %565 = arith.mulf %562, %564 : vector<16x32xf32>
    %566 = arith.addf %548, %565 : vector<16x32xf32>
    %c0_i32_201 = arith.constant 0 : i32
    %567 = vector.broadcast %c0_i32_201 : i32 to vector<16x1xi32>
    %568 = arith.addi %2, %567 : vector<16x1xi32>
    %c0_i32_202 = arith.constant 0 : i32
    %569 = vector.broadcast %c0_i32_202 : i32 to vector<16x1xi32>
    %570 = arith.cmpi sge, %568, %569 : vector<16x1xi32>
    %c0_i32_203 = arith.constant 0 : i32
    %571 = vector.broadcast %c0_i32_203 : i32 to vector<16x1xi32>
    %572 = arith.addi %2, %571 : vector<16x1xi32>
    %c16_i32_204 = arith.constant 16 : i32
    %573 = vector.broadcast %c16_i32_204 : i32 to vector<16x1xi32>
    %574 = arith.cmpi slt, %572, %573 : vector<16x1xi32>
    %575 = arith.andi %570, %574 : vector<16x1xi1>
    %cst_205 = arith.constant 0.000000e+00 : f32
    %576 = vector.shape_cast %575 : vector<16x1xi1> to vector<16x1xi1>
    %577 = vector.broadcast %576 : vector<16x1xi1> to vector<16x32xi1>
    %578 = vector.broadcast %cst_205 : f32 to vector<16x32xf32>
    %579 = arith.select %577, %509, %578 : vector<16x32xi1>, vector<16x32xf32>
    %580 = vector.extract_strided_slice %511 {offsets = [3, 0], sizes = [1, 32], strides = [1, 1]} : vector<7x32xf32> to vector<1x32xf32>
    %581 = vector.broadcast %580 : vector<1x32xf32> to vector<16x32xf32>
    %582 = arith.mulf %579, %581 : vector<16x32xf32>
    %583 = arith.addf %566, %582 : vector<16x32xf32>
    %c15_i32_206 = arith.constant 15 : i32
    %584 = tpu.dynamic_rotate %509 by %c15_i32_206 dim 0 : vector<16x32xf32>, i32 -> vector<16x32xf32>
    %c1_i32_207 = arith.constant 1 : i32
    %585 = vector.broadcast %c1_i32_207 : i32 to vector<16x1xi32>
    %586 = arith.addi %2, %585 : vector<16x1xi32>
    %c0_i32_208 = arith.constant 0 : i32
    %587 = vector.broadcast %c0_i32_208 : i32 to vector<16x1xi32>
    %588 = arith.cmpi sge, %586, %587 : vector<16x1xi32>
    %c1_i32_209 = arith.constant 1 : i32
    %589 = vector.broadcast %c1_i32_209 : i32 to vector<16x1xi32>
    %590 = arith.addi %2, %589 : vector<16x1xi32>
    %c16_i32_210 = arith.constant 16 : i32
    %591 = vector.broadcast %c16_i32_210 : i32 to vector<16x1xi32>
    %592 = arith.cmpi slt, %590, %591 : vector<16x1xi32>
    %593 = arith.andi %588, %592 : vector<16x1xi1>
    %cst_211 = arith.constant 0.000000e+00 : f32
    %594 = vector.shape_cast %593 : vector<16x1xi1> to vector<16x1xi1>
    %595 = vector.broadcast %594 : vector<16x1xi1> to vector<16x32xi1>
    %596 = vector.broadcast %cst_211 : f32 to vector<16x32xf32>
    %597 = arith.select %595, %584, %596 : vector<16x32xi1>, vector<16x32xf32>
    %598 = vector.extract_strided_slice %511 {offsets = [4, 0], sizes = [1, 32], strides = [1, 1]} : vector<7x32xf32> to vector<1x32xf32>
    %599 = vector.broadcast %598 : vector<1x32xf32> to vector<16x32xf32>
    %600 = arith.mulf %597, %599 : vector<16x32xf32>
    %601 = arith.addf %583, %600 : vector<16x32xf32>
    %c14_i32_212 = arith.constant 14 : i32
    %602 = tpu.dynamic_rotate %509 by %c14_i32_212 dim 0 : vector<16x32xf32>, i32 -> vector<16x32xf32>
    %c2_i32_213 = arith.constant 2 : i32
    %603 = vector.broadcast %c2_i32_213 : i32 to vector<16x1xi32>
    %604 = arith.addi %2, %603 : vector<16x1xi32>
    %c0_i32_214 = arith.constant 0 : i32
    %605 = vector.broadcast %c0_i32_214 : i32 to vector<16x1xi32>
    %606 = arith.cmpi sge, %604, %605 : vector<16x1xi32>
    %c2_i32_215 = arith.constant 2 : i32
    %607 = vector.broadcast %c2_i32_215 : i32 to vector<16x1xi32>
    %608 = arith.addi %2, %607 : vector<16x1xi32>
    %c16_i32_216 = arith.constant 16 : i32
    %609 = vector.broadcast %c16_i32_216 : i32 to vector<16x1xi32>
    %610 = arith.cmpi slt, %608, %609 : vector<16x1xi32>
    %611 = arith.andi %606, %610 : vector<16x1xi1>
    %cst_217 = arith.constant 0.000000e+00 : f32
    %612 = vector.shape_cast %611 : vector<16x1xi1> to vector<16x1xi1>
    %613 = vector.broadcast %612 : vector<16x1xi1> to vector<16x32xi1>
    %614 = vector.broadcast %cst_217 : f32 to vector<16x32xf32>
    %615 = arith.select %613, %602, %614 : vector<16x32xi1>, vector<16x32xf32>
    %616 = vector.extract_strided_slice %511 {offsets = [5, 0], sizes = [1, 32], strides = [1, 1]} : vector<7x32xf32> to vector<1x32xf32>
    %617 = vector.broadcast %616 : vector<1x32xf32> to vector<16x32xf32>
    %618 = arith.mulf %615, %617 : vector<16x32xf32>
    %619 = arith.addf %601, %618 : vector<16x32xf32>
    %c13_i32_218 = arith.constant 13 : i32
    %620 = tpu.dynamic_rotate %509 by %c13_i32_218 dim 0 : vector<16x32xf32>, i32 -> vector<16x32xf32>
    %c3_i32_219 = arith.constant 3 : i32
    %621 = vector.broadcast %c3_i32_219 : i32 to vector<16x1xi32>
    %622 = arith.addi %2, %621 : vector<16x1xi32>
    %c0_i32_220 = arith.constant 0 : i32
    %623 = vector.broadcast %c0_i32_220 : i32 to vector<16x1xi32>
    %624 = arith.cmpi sge, %622, %623 : vector<16x1xi32>
    %c3_i32_221 = arith.constant 3 : i32
    %625 = vector.broadcast %c3_i32_221 : i32 to vector<16x1xi32>
    %626 = arith.addi %2, %625 : vector<16x1xi32>
    %c16_i32_222 = arith.constant 16 : i32
    %627 = vector.broadcast %c16_i32_222 : i32 to vector<16x1xi32>
    %628 = arith.cmpi slt, %626, %627 : vector<16x1xi32>
    %629 = arith.andi %624, %628 : vector<16x1xi1>
    %cst_223 = arith.constant 0.000000e+00 : f32
    %630 = vector.shape_cast %629 : vector<16x1xi1> to vector<16x1xi1>
    %631 = vector.broadcast %630 : vector<16x1xi1> to vector<16x32xi1>
    %632 = vector.broadcast %cst_223 : f32 to vector<16x32xf32>
    %633 = arith.select %631, %620, %632 : vector<16x32xi1>, vector<16x32xf32>
    %634 = vector.extract_strided_slice %511 {offsets = [6, 0], sizes = [1, 32], strides = [1, 1]} : vector<7x32xf32> to vector<1x32xf32>
    %635 = vector.broadcast %634 : vector<1x32xf32> to vector<16x32xf32>
    %636 = arith.mulf %633, %635 : vector<16x32xf32>
    %637 = arith.addf %619, %636 : vector<16x32xf32>
    %c3_224 = arith.constant 3 : index
    %c0_225 = arith.constant 0 : index
    %c0_226 = arith.constant 0 : index
    %638 = vector.load %arg6[%c3_224, %c0_225, %c0_226] : memref<4x32x32xf32, #tpu.memory_space<vmem>>, vector<1x32x32xf32>
    %639 = vector.shape_cast %638 : vector<1x32x32xf32> to vector<32x32xf32>
    %c3_227 = arith.constant 3 : index
    %c0_228 = arith.constant 0 : index
    %640 = vector.load %arg7[%c3_227, %c0_228] : memref<4x32xf32, #tpu.memory_space<vmem>>, vector<1x32xf32>
    %cst_229 = arith.constant dense<0.000000e+00> : vector<16x32xf32>
    %641 = tpu.matmul %637, %639, %cst_229 {dimension_numbers = #tpu.dot_dimension_numbers<[1], [0], [0], [1], [0, 0, 1, 1], [], []>} : vector<16x32xf32>, vector<32x32xf32>, vector<16x32xf32> -> vector<16x32xf32>
    %642 = vector.broadcast %640 : vector<1x32xf32> to vector<16x32xf32>
    %643 = arith.addf %641, %642 : vector<16x32xf32>
    %cst_230 = arith.constant 0.000000e+00 : f32
    %644 = vector.broadcast %cst_230 : f32 to vector<16x32xf32>
    %645 = arith.maximumf %643, %644 : vector<16x32xf32>
    %646 = arith.addf %645, %485 : vector<16x32xf32>
    %c0_231 = arith.constant 0 : index
    %c0_232 = arith.constant 0 : index
    %647 = vector.load %arg8[%c0_231, %c0_232] : memref<1x32xf32, #tpu.memory_space<vmem>>, vector<1x32xf32>
    %c0_233 = arith.constant 0 : index
    %c0_234 = arith.constant 0 : index
    %648 = vector.load %arg9[%c0_233, %c0_234] : memref<1x32xf32, #tpu.memory_space<vmem>>, vector<1x32xf32>
    %cst_235 = arith.constant dense<0.000000e+00> : vector<16xf32>
    %649 = vector.multi_reduction <add>, %646, %cst_235 [1] : vector<16x32xf32> to vector<16xf32>
    %650 = vector.shape_cast %649 : vector<16xf32> to vector<16x1xf32>
    %cst_236 = arith.constant 3.200000e+01 : f32
    %651 = vector.broadcast %cst_236 : f32 to vector<16x1xf32>
    %652 = arith.divf %650, %651 : vector<16x1xf32>
    %653 = vector.broadcast %652 : vector<16x1xf32> to vector<16x32xf32>
    %654 = arith.subf %646, %653 : vector<16x32xf32>
    %655 = arith.mulf %654, %654 : vector<16x32xf32>
    %cst_237 = arith.constant dense<0.000000e+00> : vector<16xf32>
    %656 = vector.multi_reduction <add>, %655, %cst_237 [1] : vector<16x32xf32> to vector<16xf32>
    %657 = vector.shape_cast %656 : vector<16xf32> to vector<16x1xf32>
    %cst_238 = arith.constant 3.200000e+01 : f32
    %658 = vector.broadcast %cst_238 : f32 to vector<16x1xf32>
    %659 = arith.divf %657, %658 : vector<16x1xf32>
    %660 = vector.broadcast %652 : vector<16x1xf32> to vector<16x32xf32>
    %661 = arith.subf %646, %660 : vector<16x32xf32>
    %cst_239 = arith.constant 9.99999997E-7 : f32
    %662 = vector.broadcast %cst_239 : f32 to vector<16x1xf32>
    %663 = arith.addf %659, %662 : vector<16x1xf32>
    %664 = math.rsqrt %663 : vector<16x1xf32>
    %665 = vector.broadcast %664 : vector<16x1xf32> to vector<16x32xf32>
    %666 = arith.mulf %661, %665 : vector<16x32xf32>
    %667 = vector.broadcast %647 : vector<1x32xf32> to vector<16x32xf32>
    %668 = arith.mulf %666, %667 : vector<16x32xf32>
    %669 = vector.broadcast %648 : vector<1x32xf32> to vector<16x32xf32>
    %670 = arith.addf %668, %669 : vector<16x32xf32>
    %c0_240 = arith.constant 0 : index
    %c0_241 = arith.constant 0 : index
    %671 = vector.load %arg10[%c0_240, %c0_241] : memref<32x32xf32, #tpu.memory_space<vmem>>, vector<32x32xf32>
    %cst_242 = arith.constant dense<0.000000e+00> : vector<16x32xf32>
    %672 = tpu.matmul %670, %671, %cst_242 {dimension_numbers = #tpu.dot_dimension_numbers<[1], [0], [0], [1], [0, 0, 1, 1], [], []>} : vector<16x32xf32>, vector<32x32xf32>, vector<16x32xf32> -> vector<16x32xf32>
    %c0_243 = arith.constant 0 : index
    %c0_244 = arith.constant 0 : index
    %673 = vector.load %arg11[%c0_243, %c0_244] : memref<1x32xf32, #tpu.memory_space<vmem>>, vector<1x32xf32>
    %674 = vector.broadcast %673 : vector<1x32xf32> to vector<16x32xf32>
    %675 = arith.addf %672, %674 : vector<16x32xf32>
    %c0_245 = arith.constant 0 : index
    %c0_246 = arith.constant 0 : index
    %676 = vector.load %arg12[%c0_245, %c0_246] : memref<32x32xf32, #tpu.memory_space<vmem>>, vector<32x32xf32>
    %cst_247 = arith.constant dense<0.000000e+00> : vector<16x32xf32>
    %677 = tpu.matmul %670, %676, %cst_247 {dimension_numbers = #tpu.dot_dimension_numbers<[1], [0], [0], [1], [0, 0, 1, 1], [], []>} : vector<16x32xf32>, vector<32x32xf32>, vector<16x32xf32> -> vector<16x32xf32>
    %c0_248 = arith.constant 0 : index
    %c0_249 = arith.constant 0 : index
    %678 = vector.load %arg13[%c0_248, %c0_249] : memref<1x32xf32, #tpu.memory_space<vmem>>, vector<1x32xf32>
    %679 = vector.broadcast %678 : vector<1x32xf32> to vector<16x32xf32>
    %680 = arith.addf %677, %679 : vector<16x32xf32>
    %c0_250 = arith.constant 0 : index
    %c0_251 = arith.constant 0 : index
    %681 = vector.load %arg14[%c0_250, %c0_251] : memref<32x32xf32, #tpu.memory_space<vmem>>, vector<32x32xf32>
    %cst_252 = arith.constant dense<0.000000e+00> : vector<16x32xf32>
    %682 = tpu.matmul %670, %681, %cst_252 {dimension_numbers = #tpu.dot_dimension_numbers<[1], [0], [0], [1], [0, 0, 1, 1], [], []>} : vector<16x32xf32>, vector<32x32xf32>, vector<16x32xf32> -> vector<16x32xf32>
    %c0_253 = arith.constant 0 : index
    %c0_254 = arith.constant 0 : index
    %683 = vector.load %arg15[%c0_253, %c0_254] : memref<1x32xf32, #tpu.memory_space<vmem>>, vector<1x32xf32>
    %684 = vector.broadcast %683 : vector<1x32xf32> to vector<16x32xf32>
    %685 = arith.addf %682, %684 : vector<16x32xf32>
    %c0_255 = arith.constant 0 : index
    %c0_256 = arith.constant 0 : index
    %c0_257 = arith.constant 0 : index
    %686 = vector.load %arg2[%c0_255, %c0_256, %c0_257] : memref<1x1x16xf32, #tpu.memory_space<vmem>>, vector<1x1x16xf32>
    %687 = vector.shape_cast %686 : vector<1x1x16xf32> to vector<1x16xf32>
    %cst_258 = arith.constant 1.000000e+00 : f32
    %688 = vector.broadcast %cst_258 : f32 to vector<1x16xf32>
    %689 = arith.subf %688, %687 : vector<1x16xf32>
    %cst_259 = arith.constant -1.000000e+30 : f32
    %690 = vector.broadcast %cst_259 : f32 to vector<1x16xf32>
    %691 = arith.mulf %689, %690 : vector<1x16xf32>
    %692 = vector.extract_strided_slice %675 {offsets = [0, 0], sizes = [16, 8], strides = [1, 1]} : vector<16x32xf32> to vector<16x8xf32>
    %693 = vector.extract_strided_slice %680 {offsets = [0, 0], sizes = [16, 8], strides = [1, 1]} : vector<16x32xf32> to vector<16x8xf32>
    %694 = vector.extract_strided_slice %685 {offsets = [0, 0], sizes = [16, 8], strides = [1, 1]} : vector<16x32xf32> to vector<16x8xf32>
    %cst_260 = arith.constant dense<0.000000e+00> : vector<16x16xf32>
    %695 = tpu.matmul %692, %693, %cst_260 {dimension_numbers = #tpu.dot_dimension_numbers<[1], [1], [0], [0], [0, 0, 1, 0], [], []>} : vector<16x8xf32>, vector<16x8xf32>, vector<16x16xf32> -> vector<16x16xf32>
    %cst_261 = arith.constant 0.353553385 : f32
    %696 = vector.broadcast %cst_261 : f32 to vector<16x16xf32>
    %697 = arith.mulf %695, %696 : vector<16x16xf32>
    %698 = vector.broadcast %691 : vector<1x16xf32> to vector<16x16xf32>
    %699 = arith.addf %697, %698 : vector<16x16xf32>
    %cst_262 = arith.constant dense<0xFF800000> : vector<16xf32>
    %700 = vector.multi_reduction <maximumf>, %699, %cst_262 [1] : vector<16x16xf32> to vector<16xf32>
    %701 = vector.shape_cast %700 : vector<16xf32> to vector<16x1xf32>
    %702 = vector.broadcast %701 : vector<16x1xf32> to vector<16x16xf32>
    %703 = arith.subf %699, %702 : vector<16x16xf32>
    %704 = math.exp %703 : vector<16x16xf32>
    %cst_263 = arith.constant dense<0.000000e+00> : vector<16xf32>
    %705 = vector.multi_reduction <add>, %704, %cst_263 [1] : vector<16x16xf32> to vector<16xf32>
    %706 = vector.shape_cast %705 : vector<16xf32> to vector<16x1xf32>
    %707 = vector.broadcast %706 : vector<16x1xf32> to vector<16x16xf32>
    %708 = arith.divf %704, %707 : vector<16x16xf32>
    %cst_264 = arith.constant dense<0.000000e+00> : vector<16x8xf32>
    %709 = tpu.matmul %708, %694, %cst_264 {dimension_numbers = #tpu.dot_dimension_numbers<[1], [0], [0], [1], [0, 0, 1, 1], [], []>} : vector<16x16xf32>, vector<16x8xf32>, vector<16x8xf32> -> vector<16x8xf32>
    %710 = vector.extract_strided_slice %675 {offsets = [0, 8], sizes = [16, 8], strides = [1, 1]} : vector<16x32xf32> to vector<16x8xf32>
    %711 = vector.extract_strided_slice %680 {offsets = [0, 8], sizes = [16, 8], strides = [1, 1]} : vector<16x32xf32> to vector<16x8xf32>
    %712 = vector.extract_strided_slice %685 {offsets = [0, 8], sizes = [16, 8], strides = [1, 1]} : vector<16x32xf32> to vector<16x8xf32>
    %cst_265 = arith.constant dense<0.000000e+00> : vector<16x16xf32>
    %713 = tpu.matmul %710, %711, %cst_265 {dimension_numbers = #tpu.dot_dimension_numbers<[1], [1], [0], [0], [0, 0, 1, 0], [], []>} : vector<16x8xf32>, vector<16x8xf32>, vector<16x16xf32> -> vector<16x16xf32>
    %cst_266 = arith.constant 0.353553385 : f32
    %714 = vector.broadcast %cst_266 : f32 to vector<16x16xf32>
    %715 = arith.mulf %713, %714 : vector<16x16xf32>
    %716 = vector.broadcast %691 : vector<1x16xf32> to vector<16x16xf32>
    %717 = arith.addf %715, %716 : vector<16x16xf32>
    %cst_267 = arith.constant dense<0xFF800000> : vector<16xf32>
    %718 = vector.multi_reduction <maximumf>, %717, %cst_267 [1] : vector<16x16xf32> to vector<16xf32>
    %719 = vector.shape_cast %718 : vector<16xf32> to vector<16x1xf32>
    %720 = vector.broadcast %719 : vector<16x1xf32> to vector<16x16xf32>
    %721 = arith.subf %717, %720 : vector<16x16xf32>
    %722 = math.exp %721 : vector<16x16xf32>
    %cst_268 = arith.constant dense<0.000000e+00> : vector<16xf32>
    %723 = vector.multi_reduction <add>, %722, %cst_268 [1] : vector<16x16xf32> to vector<16xf32>
    %724 = vector.shape_cast %723 : vector<16xf32> to vector<16x1xf32>
    %725 = vector.broadcast %724 : vector<16x1xf32> to vector<16x16xf32>
    %726 = arith.divf %722, %725 : vector<16x16xf32>
    %cst_269 = arith.constant dense<0.000000e+00> : vector<16x8xf32>
    %727 = tpu.matmul %726, %712, %cst_269 {dimension_numbers = #tpu.dot_dimension_numbers<[1], [0], [0], [1], [0, 0, 1, 1], [], []>} : vector<16x16xf32>, vector<16x8xf32>, vector<16x8xf32> -> vector<16x8xf32>
    %728 = vector.extract_strided_slice %675 {offsets = [0, 16], sizes = [16, 8], strides = [1, 1]} : vector<16x32xf32> to vector<16x8xf32>
    %729 = vector.extract_strided_slice %680 {offsets = [0, 16], sizes = [16, 8], strides = [1, 1]} : vector<16x32xf32> to vector<16x8xf32>
    %730 = vector.extract_strided_slice %685 {offsets = [0, 16], sizes = [16, 8], strides = [1, 1]} : vector<16x32xf32> to vector<16x8xf32>
    %cst_270 = arith.constant dense<0.000000e+00> : vector<16x16xf32>
    %731 = tpu.matmul %728, %729, %cst_270 {dimension_numbers = #tpu.dot_dimension_numbers<[1], [1], [0], [0], [0, 0, 1, 0], [], []>} : vector<16x8xf32>, vector<16x8xf32>, vector<16x16xf32> -> vector<16x16xf32>
    %cst_271 = arith.constant 0.353553385 : f32
    %732 = vector.broadcast %cst_271 : f32 to vector<16x16xf32>
    %733 = arith.mulf %731, %732 : vector<16x16xf32>
    %734 = vector.broadcast %691 : vector<1x16xf32> to vector<16x16xf32>
    %735 = arith.addf %733, %734 : vector<16x16xf32>
    %cst_272 = arith.constant dense<0xFF800000> : vector<16xf32>
    %736 = vector.multi_reduction <maximumf>, %735, %cst_272 [1] : vector<16x16xf32> to vector<16xf32>
    %737 = vector.shape_cast %736 : vector<16xf32> to vector<16x1xf32>
    %738 = vector.broadcast %737 : vector<16x1xf32> to vector<16x16xf32>
    %739 = arith.subf %735, %738 : vector<16x16xf32>
    %740 = math.exp %739 : vector<16x16xf32>
    %cst_273 = arith.constant dense<0.000000e+00> : vector<16xf32>
    %741 = vector.multi_reduction <add>, %740, %cst_273 [1] : vector<16x16xf32> to vector<16xf32>
    %742 = vector.shape_cast %741 : vector<16xf32> to vector<16x1xf32>
    %743 = vector.broadcast %742 : vector<16x1xf32> to vector<16x16xf32>
    %744 = arith.divf %740, %743 : vector<16x16xf32>
    %cst_274 = arith.constant dense<0.000000e+00> : vector<16x8xf32>
    %745 = tpu.matmul %744, %730, %cst_274 {dimension_numbers = #tpu.dot_dimension_numbers<[1], [0], [0], [1], [0, 0, 1, 1], [], []>} : vector<16x16xf32>, vector<16x8xf32>, vector<16x8xf32> -> vector<16x8xf32>
    %746 = vector.extract_strided_slice %675 {offsets = [0, 24], sizes = [16, 8], strides = [1, 1]} : vector<16x32xf32> to vector<16x8xf32>
    %747 = vector.extract_strided_slice %680 {offsets = [0, 24], sizes = [16, 8], strides = [1, 1]} : vector<16x32xf32> to vector<16x8xf32>
    %748 = vector.extract_strided_slice %685 {offsets = [0, 24], sizes = [16, 8], strides = [1, 1]} : vector<16x32xf32> to vector<16x8xf32>
    %cst_275 = arith.constant dense<0.000000e+00> : vector<16x16xf32>
    %749 = tpu.matmul %746, %747, %cst_275 {dimension_numbers = #tpu.dot_dimension_numbers<[1], [1], [0], [0], [0, 0, 1, 0], [], []>} : vector<16x8xf32>, vector<16x8xf32>, vector<16x16xf32> -> vector<16x16xf32>
    %cst_276 = arith.constant 0.353553385 : f32
    %750 = vector.broadcast %cst_276 : f32 to vector<16x16xf32>
    %751 = arith.mulf %749, %750 : vector<16x16xf32>
    %752 = vector.broadcast %691 : vector<1x16xf32> to vector<16x16xf32>
    %753 = arith.addf %751, %752 : vector<16x16xf32>
    %cst_277 = arith.constant dense<0xFF800000> : vector<16xf32>
    %754 = vector.multi_reduction <maximumf>, %753, %cst_277 [1] : vector<16x16xf32> to vector<16xf32>
    %755 = vector.shape_cast %754 : vector<16xf32> to vector<16x1xf32>
    %756 = vector.broadcast %755 : vector<16x1xf32> to vector<16x16xf32>
    %757 = arith.subf %753, %756 : vector<16x16xf32>
    %758 = math.exp %757 : vector<16x16xf32>
    %cst_278 = arith.constant dense<0.000000e+00> : vector<16xf32>
    %759 = vector.multi_reduction <add>, %758, %cst_278 [1] : vector<16x16xf32> to vector<16xf32>
    %760 = vector.shape_cast %759 : vector<16xf32> to vector<16x1xf32>
    %761 = vector.broadcast %760 : vector<16x1xf32> to vector<16x16xf32>
    %762 = arith.divf %758, %761 : vector<16x16xf32>
    %cst_279 = arith.constant dense<0.000000e+00> : vector<16x8xf32>
    %763 = tpu.matmul %762, %748, %cst_279 {dimension_numbers = #tpu.dot_dimension_numbers<[1], [0], [0], [1], [0, 0, 1, 1], [], []>} : vector<16x16xf32>, vector<16x8xf32>, vector<16x8xf32> -> vector<16x8xf32>
    %764 = tpu.concatenate %709, %727, %745, %763 in 1 : vector<16x8xf32>, vector<16x8xf32>, vector<16x8xf32>, vector<16x8xf32> -> vector<16x32xf32>
    %765 = arith.addf %764, %646 : vector<16x32xf32>
    %c0_280 = arith.constant 0 : index
    %c0_281 = arith.constant 0 : index
    %766 = vector.load %arg16[%c0_280, %c0_281] : memref<1x32xf32, #tpu.memory_space<vmem>>, vector<1x32xf32>
    %c0_282 = arith.constant 0 : index
    %c0_283 = arith.constant 0 : index
    %767 = vector.load %arg17[%c0_282, %c0_283] : memref<1x32xf32, #tpu.memory_space<vmem>>, vector<1x32xf32>
    %cst_284 = arith.constant dense<0.000000e+00> : vector<16xf32>
    %768 = vector.multi_reduction <add>, %765, %cst_284 [1] : vector<16x32xf32> to vector<16xf32>
    %769 = vector.shape_cast %768 : vector<16xf32> to vector<16x1xf32>
    %cst_285 = arith.constant 3.200000e+01 : f32
    %770 = vector.broadcast %cst_285 : f32 to vector<16x1xf32>
    %771 = arith.divf %769, %770 : vector<16x1xf32>
    %772 = vector.broadcast %771 : vector<16x1xf32> to vector<16x32xf32>
    %773 = arith.subf %765, %772 : vector<16x32xf32>
    %774 = arith.mulf %773, %773 : vector<16x32xf32>
    %cst_286 = arith.constant dense<0.000000e+00> : vector<16xf32>
    %775 = vector.multi_reduction <add>, %774, %cst_286 [1] : vector<16x32xf32> to vector<16xf32>
    %776 = vector.shape_cast %775 : vector<16xf32> to vector<16x1xf32>
    %cst_287 = arith.constant 3.200000e+01 : f32
    %777 = vector.broadcast %cst_287 : f32 to vector<16x1xf32>
    %778 = arith.divf %776, %777 : vector<16x1xf32>
    %779 = vector.broadcast %771 : vector<16x1xf32> to vector<16x32xf32>
    %780 = arith.subf %765, %779 : vector<16x32xf32>
    %cst_288 = arith.constant 9.99999997E-7 : f32
    %781 = vector.broadcast %cst_288 : f32 to vector<16x1xf32>
    %782 = arith.addf %778, %781 : vector<16x1xf32>
    %783 = math.rsqrt %782 : vector<16x1xf32>
    %784 = vector.broadcast %783 : vector<16x1xf32> to vector<16x32xf32>
    %785 = arith.mulf %780, %784 : vector<16x32xf32>
    %786 = vector.broadcast %766 : vector<1x32xf32> to vector<16x32xf32>
    %787 = arith.mulf %785, %786 : vector<16x32xf32>
    %788 = vector.broadcast %767 : vector<1x32xf32> to vector<16x32xf32>
    %789 = arith.addf %787, %788 : vector<16x32xf32>
    %c0_289 = arith.constant 0 : index
    %c0_290 = arith.constant 0 : index
    %790 = vector.load %arg18[%c0_289, %c0_290] : memref<32x32xf32, #tpu.memory_space<vmem>>, vector<32x32xf32>
    %cst_291 = arith.constant dense<0.000000e+00> : vector<16x32xf32>
    %791 = tpu.matmul %789, %790, %cst_291 {dimension_numbers = #tpu.dot_dimension_numbers<[1], [0], [0], [1], [0, 0, 1, 1], [], []>} : vector<16x32xf32>, vector<32x32xf32>, vector<16x32xf32> -> vector<16x32xf32>
    %c0_292 = arith.constant 0 : index
    %c0_293 = arith.constant 0 : index
    %792 = vector.load %arg19[%c0_292, %c0_293] : memref<1x32xf32, #tpu.memory_space<vmem>>, vector<1x32xf32>
    %793 = vector.broadcast %792 : vector<1x32xf32> to vector<16x32xf32>
    %794 = arith.addf %791, %793 : vector<16x32xf32>
    %795 = arith.addf %794, %765 : vector<16x32xf32>
    %c0_294 = arith.constant 0 : index
    %c0_295 = arith.constant 0 : index
    %c0_296 = arith.constant 0 : index
    %796 = vector.load %arg20[%c0_294, %c0_295, %c0_296] : memref<1x16x32xf32, #tpu.memory_space<vmem>>, vector<1x16x32xf32>
    %797 = vector.shape_cast %796 : vector<1x16x32xf32> to vector<16x32xf32>
    %798 = vector.shape_cast %795 : vector<16x32xf32> to vector<1x16x32xf32>
    tpu.vector_store %arg20[%c0_294, %c0_295, %c0_296], %798 {strides = array<i32>} : memref<1x16x32xf32, #tpu.memory_space<vmem>>, vector<1x16x32xf32>,
    return
  }
  func.func @transform_0(%arg0: i32) -> (i32, i32, i32) {
    %c0_i32 = arith.constant 0 : i32
    %c0_i32_0 = arith.constant 0 : i32
    %c0_i32_1 = arith.constant 0 : i32
    return %arg0, %c0_i32, %c0_i32_0 : i32, i32, i32
  }
  func.func @transform_1(%arg0: i32) -> (i32, i32, i32) {
    %c0_i32 = arith.constant 0 : i32
    %c0_i32_0 = arith.constant 0 : i32
    %c0_i32_1 = arith.constant 0 : i32
    return %arg0, %c0_i32, %c0_i32_0 : i32, i32, i32
  }
  func.func @transform_2(%arg0: i32) -> (i32, i32) {
    %c0_i32 = arith.constant 0 : i32
    %c0_i32_0 = arith.constant 0 : i32
    %c0_i32_1 = arith.constant 0 : i32
    return %c0_i32, %c0_i32_0 : i32, i32
  }
  func.func @transform_3(%arg0: i32) -> (i32, i32) {
    %c0_i32 = arith.constant 0 : i32
    %c0_i32_0 = arith.constant 0 : i32
    %c0_i32_1 = arith.constant 0 : i32
    return %c0_i32, %c0_i32_0 : i32, i32
  }
  func.func @transform_4(%arg0: i32) -> (i32, i32, i32) {
    %c0_i32 = arith.constant 0 : i32
    %c0_i32_0 = arith.constant 0 : i32
    %c0_i32_1 = arith.constant 0 : i32
    %c0_i32_2 = arith.constant 0 : i32
    return %c0_i32, %c0_i32_0, %c0_i32_1 : i32, i32, i32
  }
  func.func @transform_5(%arg0: i32) -> (i32, i32, i32) {
    %c0_i32 = arith.constant 0 : i32
    %c0_i32_0 = arith.constant 0 : i32
    %c0_i32_1 = arith.constant 0 : i32
    %c0_i32_2 = arith.constant 0 : i32
    return %c0_i32, %c0_i32_0, %c0_i32_1 : i32, i32, i32
  }
  func.func @transform_6(%arg0: i32) -> (i32, i32) {
    %c0_i32 = arith.constant 0 : i32
    %c0_i32_0 = arith.constant 0 : i32
    %c0_i32_1 = arith.constant 0 : i32
    return %c0_i32, %c0_i32_0 : i32, i32
  }
  func.func @transform_7(%arg0: i32) -> (i32, i32) {
    %c0_i32 = arith.constant 0 : i32
    %c0_i32_0 = arith.constant 0 : i32
    %c0_i32_1 = arith.constant 0 : i32
    return %c0_i32, %c0_i32_0 : i32, i32
  }
  func.func @transform_8(%arg0: i32) -> (i32, i32) {
    %c0_i32 = arith.constant 0 : i32
    %c0_i32_0 = arith.constant 0 : i32
    %c0_i32_1 = arith.constant 0 : i32
    return %c0_i32, %c0_i32_0 : i32, i32
  }
  func.func @transform_9(%arg0: i32) -> (i32, i32) {
    %c0_i32 = arith.constant 0 : i32
    %c0_i32_0 = arith.constant 0 : i32
    %c0_i32_1 = arith.constant 0 : i32
    return %c0_i32, %c0_i32_0 : i32, i32
  }
  func.func @transform_10(%arg0: i32) -> (i32, i32) {
    %c0_i32 = arith.constant 0 : i32
    %c0_i32_0 = arith.constant 0 : i32
    %c0_i32_1 = arith.constant 0 : i32
    return %c0_i32, %c0_i32_0 : i32, i32
  }
  func.func @transform_11(%arg0: i32) -> (i32, i32) {
    %c0_i32 = arith.constant 0 : i32
    %c0_i32_0 = arith.constant 0 : i32
    %c0_i32_1 = arith.constant 0 : i32
    return %c0_i32, %c0_i32_0 : i32, i32
  }
  func.func @transform_12(%arg0: i32) -> (i32, i32) {
    %c0_i32 = arith.constant 0 : i32
    %c0_i32_0 = arith.constant 0 : i32
    %c0_i32_1 = arith.constant 0 : i32
    return %c0_i32, %c0_i32_0 : i32, i32
  }
  func.func @transform_13(%arg0: i32) -> (i32, i32) {
    %c0_i32 = arith.constant 0 : i32
    %c0_i32_0 = arith.constant 0 : i32
    %c0_i32_1 = arith.constant 0 : i32
    return %c0_i32, %c0_i32_0 : i32, i32
  }
  func.func @transform_14(%arg0: i32) -> (i32, i32) {
    %c0_i32 = arith.constant 0 : i32
    %c0_i32_0 = arith.constant 0 : i32
    %c0_i32_1 = arith.constant 0 : i32
    return %c0_i32, %c0_i32_0 : i32, i32
  }
  func.func @transform_15(%arg0: i32) -> (i32, i32) {
    %c0_i32 = arith.constant 0 : i32
    %c0_i32_0 = arith.constant 0 : i32
    %c0_i32_1 = arith.constant 0 : i32
    return %c0_i32, %c0_i32_0 : i32, i32
  }
  func.func @transform_16(%arg0: i32) -> (i32, i32) {
    %c0_i32 = arith.constant 0 : i32
    %c0_i32_0 = arith.constant 0 : i32
    %c0_i32_1 = arith.constant 0 : i32
    return %c0_i32, %c0_i32_0 : i32, i32
  }
  func.func @transform_17(%arg0: i32) -> (i32, i32) {
    %c0_i32 = arith.constant 0 : i32
    %c0_i32_0 = arith.constant 0 : i32
    %c0_i32_1 = arith.constant 0 : i32
    return %c0_i32, %c0_i32_0 : i32, i32
  }
  func.func @transform_18(%arg0: i32) -> (i32, i32) {
    %c0_i32 = arith.constant 0 : i32
    %c0_i32_0 = arith.constant 0 : i32
    %c0_i32_1 = arith.constant 0 : i32
    return %c0_i32, %c0_i32_0 : i32, i32
  }
  func.func @transform_19(%arg0: i32) -> (i32, i32, i32) {
    %c0_i32 = arith.constant 0 : i32
    %c0_i32_0 = arith.constant 0 : i32
    %c0_i32_1 = arith.constant 0 : i32
    return %arg0, %c0_i32, %c0_i32_0 : i32, i32, i32
  }
}

</mosaic_0001>

<llo_original>
// kernel: tpu_custom_call.1
$region0: #{tpu_custom_call.1}
  #allocation0 [shape = 'u32[]', space=smem, size = 0x4, offset = 0x4, fixed_abs, tag = 'smem constant byte address 0x4 - core index']
  #allocation1 [shape = 'u32[144,128]{1,0:T(1,128)}', space=vmem, size = 0x12000, scoped, tag = 'internal scratch']
  %s0 = inlined_call_operand.vmem [shape: f32[2,16,32], index: 0, kind: input, shape index: {}]
  %s1 = inlined_call_operand.hbm [shape: f32[2,1,16], index: 1, kind: input, shape index: {}]
  %s2 = inlined_call_operand.hbm [shape: f32[4,32], index: 2, kind: input, shape index: {}]
  %s3 = inlined_call_operand.hbm [shape: f32[4,32], index: 3, kind: input, shape index: {}]
  %s4 = inlined_call_operand.vmem [shape: f32[4,7,32], index: 4, kind: input, shape index: {}]
  %s5 = inlined_call_operand.hbm [shape: f32[4,32,32], index: 5, kind: input, shape index: {}]
  %s6 = inlined_call_operand.hbm [shape: f32[4,32], index: 6, kind: input, shape index: {}]
  %s7 = inlined_call_operand.vmem [shape: f32[1,32], index: 7, kind: input, shape index: {}]
  %s8 = inlined_call_operand.hbm [shape: f32[1,32], index: 8, kind: input, shape index: {}]
  %s9 = inlined_call_operand.vmem [shape: f32[32,32], index: 9, kind: input, shape index: {}]
  %s10 = inlined_call_operand.hbm [shape: f32[1,32], index: 10, kind: input, shape index: {}]
  %s11 = inlined_call_operand.vmem [shape: f32[32,32], index: 11, kind: input, shape index: {}]
  %s12 = inlined_call_operand.vmem [shape: f32[1,32], index: 12, kind: input, shape index: {}]
  %s13 = inlined_call_operand.hbm [shape: f32[32,32], index: 13, kind: input, shape index: {}]
  %s14 = inlined_call_operand.vmem [shape: f32[1,32], index: 14, kind: input, shape index: {}]
  %s15 = inlined_call_operand.vmem [shape: f32[1,32], index: 15, kind: input, shape index: {}]
  %s16 = inlined_call_operand.vmem [shape: f32[1,32], index: 16, kind: input, shape index: {}]
  %s17 = inlined_call_operand.hbm [shape: f32[32,32], index: 17, kind: input, shape index: {}]
  %s18 = inlined_call_operand.vmem [shape: f32[1,32], index: 18, kind: input, shape index: {}]
  %s19 = inlined_call_operand.hbm [shape: f32[2,16,32], index: 19, kind: output, shape index: {}]
  %s20 = sld [smem:[#allocation0]]
  $region145: #{tpu_custom_call.1} parent=0
    _
  %s22 = ssub.s32 1, %s20
  %s23 = scalar_select 0, %s22, %s20
  $region1: #{tpu_custom_call.1} parent=0
    #allocation2 [shape = 'u8[1024]{0}', space=vmem, size = 0x400, scoped, tag = 'input window, operand 1']
    #allocation3 [shape = 's32[2]{0}', space=sflag, size = 0x8, scoped, tag = 'scoped memory for tpu_custom_call.1']
    #allocation4 [shape = 's32[2]{0}', space=sflag, size = 0x8, scoped, tag = 'scoped memory for tpu_custom_call.1']
    #allocation5 [shape = 'u8[2048]{0}', space=vmem, size = 0x800, scoped, tag = 'input window, operand 2, single buffered']
    #allocation6 [shape = 's32[1]{0}', space=sflag, size = 0x4, scoped, tag = 'scoped memory for tpu_custom_call.1']
    #allocation7 [shape = 'u8[2048]{0}', space=vmem, size = 0x800, scoped, tag = 'input window, operand 3, single buffered']
    #allocation8 [shape = 'u8[65536]{0}', space=vmem, size = 0x10000, scoped, tag = 'input window, operand 5, single buffered']
    #allocation9 [shape = 's32[1]{0}', space=sflag, size = 0x4, scoped, tag = 'scoped memory for tpu_custom_call.1']
    #allocation10 [shape = 'u8[2048]{0}', space=vmem, size = 0x800, scoped, tag = 'input window, operand 6, single buffered']
    #allocation11 [shape = 'u8[512]{0}', space=vmem, size = 0x400, scoped, tag = 'input window, operand 8, single buffered']
    #allocation12 [shape = 's32[1]{0}', space=sflag, size = 0x4, scoped, tag = 'scoped memory for tpu_custom_call.1']
    #allocation13 [shape = 'u8[512]{0}', space=vmem, size = 0x400, scoped, tag = 'input window, operand 10, single buffered']
    #allocation14 [shape = 'u8[16384]{0}', space=vmem, size = 0x4000, scoped, tag = 'input window, operand 13, single buffered']
    #allocation15 [shape = 's32[1]{0}', space=sflag, size = 0x4, scoped, tag = 'scoped memory for tpu_custom_call.1']
    #allocation16 [shape = 'u8[16384]{0}', space=vmem, size = 0x4000, scoped, tag = 'input window, operand 17, single buffered']
    #allocation17 [shape = 'u8[16384]{0}', space=vmem, size = 0x4000, scoped, tag = 'output window, operand 0']
    %24 = vsyncpa [#allocation3], 0
    %s25 = scalar_lea.sflag [#allocation3], 1
    %26 = vsyncpa %s25, 0
    %27 = vsyncpa [#allocation6], 0
    %28 = vsyncpa [#allocation9], 0
    %29 = vsyncpa [#allocation12], 0
    %30 = vsyncpa [#allocation15], 0
    %31 = vsyncpa [#allocation4], 0
    %s32 = scalar_lea.sflag [#allocation4], 1
    %33 = vsyncpa %s32, 0
    loop: start=0, step=1, limit=4
    $region2: #{tpu_custom_call.1} parent=1 // loop_pre_header
      _
    $region3: #{tpu_custom_call.1} parent=1 // loop_header
      %s35 = sphi 0, %s39
      %p36 = scmp.ge.s32.totalorder %s35, 4
      %s45 = sphi 0, %s47
      %s48 = sphi 0, %s45
      %s49 = sphi 0, %s48
      %s65 = sphi 0, %s49
      %s71 = sphi 0, %s73
      %s74 = sphi 0, %s71
      %s75 = sphi 0, %s74
      %s91 = sphi 0, %s75
      %s95 = sphi 0, %s95
      %s97 = sphi 0, %s95
      %s98 = sphi 0, %s97
      %s112 = sphi 0, %s98
      %s116 = sphi 0, %s116
      %s118 = sphi 0, %s116
      %s119 = sphi 0, %s118
      %s133 = sphi 0, %s119
      %s137 = sphi 0, %s137
      %s139 = sphi 0, %s137
      %s140 = sphi 0, %s139
      %s154 = sphi 0, %s140
      %s158 = sphi 0, %s158
      %s160 = sphi 0, %s158
      %s161 = sphi 0, %s160
      %s175 = sphi 0, %s161
      %s179 = sphi 0, %s179
      %s181 = sphi 0, %s179
      %s182 = sphi 0, %s181
      %s196 = sphi 0, %s182
      %s200 = sphi 0, %s200
      %s202 = sphi 0, %s200
      %s203 = sphi 0, %s202
      %s217 = sphi 0, %s203
      %s221 = sphi 0, %s221
      %s223 = sphi 0, %s221
      %s224 = sphi 0, %s223
      %s238 = sphi 0, %s224
      %s242 = sphi 0, %s242
      %s244 = sphi 0, %s242
      %s245 = sphi 0, %s244
      %s259 = sphi 0, %s245
      %s263 = sphi 0, %s263
      %s265 = sphi 0, %s263
      %s266 = sphi 0, %s265
      %s280 = sphi 0, %s266
      %s284 = sphi 0, %s284
      %s286 = sphi 0, %s284
      %s287 = sphi 0, %s286
      %s301 = sphi 0, %s287
      %s305 = sphi 0, %s305
      %s307 = sphi 0, %s305
      %s308 = sphi 0, %s307
      %s322 = sphi 0, %s308
      %s326 = sphi 0, %s326
      %s328 = sphi 0, %s326
      %s329 = sphi 0, %s328
      %s343 = sphi 0, %s329
      %s347 = sphi 0, %s347
      %s349 = sphi 0, %s347
      %s350 = sphi 0, %s349
      %s364 = sphi 0, %s350
      %s368 = sphi 0, %s368
      %s370 = sphi 0, %s368
      %s371 = sphi 0, %s370
      %s385 = sphi 0, %s371
      %s389 = sphi 0, %s389
      %s391 = sphi 0, %s389
      %s392 = sphi 0, %s391
      %s406 = sphi 0, %s392
      %s410 = sphi 0, %s410
      %s412 = sphi 0, %s410
      %s413 = sphi 0, %s412
      %s427 = sphi 0, %s413
      %s431 = sphi 0, %s431
      %s433 = sphi 0, %s431
      %s434 = sphi 0, %s433
      %s448 = sphi 0, %s434
      %s454 = sphi 0, %s456
      %s457 = sphi 0, %s454
      %s458 = sphi 0, %s457
      %s474 = sphi 0, %s458
    $region4: #{tpu_custom_call.1} parent=1 // loop_header_branch
      %38 = sbr.rel (%p36) target = $region8
    $region5: #{tpu_custom_call.1} parent=1 // loop_body
      %s40 = ssub.s32 %s35, 1
      %s41 = ssub.s32 %s35, 2
      %s42 = sadd.s32 %s35, 1
      %s43 = ssub.s32 %s35, %s42
      %p44 = scmp.eq.s32.totalorder %s43, 0
      %s46 = sadd.s32 %s45, 1
      %s47 = scalar_select %p44, %s45, %s46
      %p50 = pneg %p44
      %p51 = scmp.eq.s32.totalorder %s35, 1
      %p52 = por %p50, %p51
      %p53 = scmp.ne.s32.totalorder %s45, %s48
      %p54 = scmp.eq.s32.totalorder %s35, 0
      %p55 = por %p53, %p54
      %p56 = scmp.ne.s32.totalorder %s45, %s48
      %p57 = scmp.eq.s32.totalorder %s40, 1
      %p58 = por %p56, %p57
      %p59 = scmp.ne.s32.totalorder %s48, %s49
      %p60 = scmp.eq.s32.totalorder %s40, 0
      %p61 = por %p59, %p60
      %p62 = scmp.ne.s32.totalorder %s48, %s49
      %p63 = scmp.eq.s32.totalorder %s41, 1
      %p64 = por %p62, %p63
      %p66 = scmp.ne.s32.totalorder %s49, %s65
      %p67 = scmp.eq.s32.totalorder %s41, 0
      %p68 = por %p66, %p67
      %s69 = ssub.s32 %s35, %s42
      %p70 = scmp.eq.s32.totalorder %s69, 0
      %s72 = sadd.s32 %s71, 1
      %s73 = scalar_select %p70, %s71, %s72
      %p76 = pneg %p70
      %p77 = scmp.eq.s32.totalorder %s35, 1
      %p78 = por %p76, %p77
      %p79 = scmp.ne.s32.totalorder %s71, %s74
      %p80 = scmp.eq.s32.totalorder %s35, 0
      %p81 = por %p79, %p80
      %p82 = scmp.ne.s32.totalorder %s71, %s74
      %p83 = scmp.eq.s32.totalorder %s40, 1
      %p84 = por %p82, %p83
      %p85 = scmp.ne.s32.totalorder %s74, %s75
      %p86 = scmp.eq.s32.totalorder %s40, 0
      %p87 = por %p85, %p86
      %p88 = scmp.ne.s32.totalorder %s74, %s75
      %p89 = scmp.eq.s32.totalorder %s41, 1
      %p90 = por %p88, %p89
      %p92 = scmp.ne.s32.totalorder %s75, %s91
      %p93 = scmp.eq.s32.totalorder %s41, 0
      %p94 = por %p92, %p93
      %s96 = sadd.s32 %s95, 1
      %p99 = scmp.eq.s32.totalorder %s35, 1
      %p100 = scmp.ne.s32.totalorder %s95, %s97
      %p101 = scmp.eq.s32.totalorder %s35, 0
      %p102 = por %p100, %p101
      %p103 = scmp.ne.s32.totalorder %s95, %s97
      %p104 = scmp.eq.s32.totalorder %s40, 1
      %p105 = por %p103, %p104
      %p106 = scmp.ne.s32.totalorder %s97, %s98
      %p107 = scmp.eq.s32.totalorder %s40, 0
      %p108 = por %p106, %p107
      %p109 = scmp.ne.s32.totalorder %s97, %s98
      %p110 = scmp.eq.s32.totalorder %s41, 1
      %p111 = por %p109, %p110
      %p113 = scmp.ne.s32.totalorder %s98, %s112
      %p114 = scmp.eq.s32.totalorder %s41, 0
      %p115 = por %p113, %p114
      %s117 = sadd.s32 %s116, 1
      %p120 = scmp.eq.s32.totalorder %s35, 1
      %p121 = scmp.ne.s32.totalorder %s116, %s118
      %p122 = scmp.eq.s32.totalorder %s35, 0
      %p123 = por %p121, %p122
      %p124 = scmp.ne.s32.totalorder %s116, %s118
      %p125 = scmp.eq.s32.totalorder %s40, 1
      %p126 = por %p124, %p125
      %p127 = scmp.ne.s32.totalorder %s118, %s119
      %p128 = scmp.eq.s32.totalorder %s40, 0
      %p129 = por %p127, %p128
      %p130 = scmp.ne.s32.totalorder %s118, %s119
      %p131 = scmp.eq.s32.totalorder %s41, 1
      %p132 = por %p130, %p131
      %p134 = scmp.ne.s32.totalorder %s119, %s133
      %p135 = scmp.eq.s32.totalorder %s41, 0
      %p136 = por %p134, %p135
      %s138 = sadd.s32 %s137, 1
      %p141 = scmp.eq.s32.totalorder %s35, 1
      %p142 = scmp.ne.s32.totalorder %s137, %s139
      %p143 = scmp.eq.s32.totalorder %s35, 0
      %p144 = por %p142, %p143
      %p145 = scmp.ne.s32.totalorder %s137, %s139
      %p146 = scmp.eq.s32.totalorder %s40, 1
      %p147 = por %p145, %p146
      %p148 = scmp.ne.s32.totalorder %s139, %s140
      %p149 = scmp.eq.s32.totalorder %s40, 0
      %p150 = por %p148, %p149
      %p151 = scmp.ne.s32.totalorder %s139, %s140
      %p152 = scmp.eq.s32.totalorder %s41, 1
      %p153 = por %p151, %p152
      %p155 = scmp.ne.s32.totalorder %s140, %s154
      %p156 = scmp.eq.s32.totalorder %s41, 0
      %p157 = por %p155, %p156
      %s159 = sadd.s32 %s158, 1
      %p162 = scmp.eq.s32.totalorder %s35, 1
      %p163 = scmp.ne.s32.totalorder %s158, %s160
      %p164 = scmp.eq.s32.totalorder %s35, 0
      %p165 = por %p163, %p164
      %p166 = scmp.ne.s32.totalorder %s158, %s160
      %p167 = scmp.eq.s32.totalorder %s40, 1
      %p168 = por %p166, %p167
      %p169 = scmp.ne.s32.totalorder %s160, %s161
      %p170 = scmp.eq.s32.totalorder %s40, 0
      %p171 = por %p169, %p170
      %p172 = scmp.ne.s32.totalorder %s160, %s161
      %p173 = scmp.eq.s32.totalorder %s41, 1
      %p174 = por %p172, %p173
      %p176 = scmp.ne.s32.totalorder %s161, %s175
      %p177 = scmp.eq.s32.totalorder %s41, 0
      %p178 = por %p176, %p177
      %s180 = sadd.s32 %s179, 1
      %p183 = scmp.eq.s32.totalorder %s35, 1
      %p184 = scmp.ne.s32.totalorder %s179, %s181
      %p185 = scmp.eq.s32.totalorder %s35, 0
      %p186 = por %p184, %p185
      %p187 = scmp.ne.s32.totalorder %s179, %s181
      %p188 = scmp.eq.s32.totalorder %s40, 1
      %p189 = por %p187, %p188
      %p190 = scmp.ne.s32.totalorder %s181, %s182
      %p191 = scmp.eq.s32.totalorder %s40, 0
      %p192 = por %p190, %p191
      %p193 = scmp.ne.s32.totalorder %s181, %s182
      %p194 = scmp.eq.s32.totalorder %s41, 1
      %p195 = por %p193, %p194
      %p197 = scmp.ne.s32.totalorder %s182, %s196
      %p198 = scmp.eq.s32.totalorder %s41, 0
      %p199 = por %p197, %p198
      %s201 = sadd.s32 %s200, 1
      %p204 = scmp.eq.s32.totalorder %s35, 1
      %p205 = scmp.ne.s32.totalorder %s200, %s202
      %p206 = scmp.eq.s32.totalorder %s35, 0
      %p207 = por %p205, %p206
      %p208 = scmp.ne.s32.totalorder %s200, %s202
      %p209 = scmp.eq.s32.totalorder %s40, 1
      %p210 = por %p208, %p209
      %p211 = scmp.ne.s32.totalorder %s202, %s203
      %p212 = scmp.eq.s32.totalorder %s40, 0
      %p213 = por %p211, %p212
      %p214 = scmp.ne.s32.totalorder %s202, %s203
      %p215 = scmp.eq.s32.totalorder %s41, 1
      %p216 = por %p214, %p215
      %p218 = scmp.ne.s32.totalorder %s203, %s217
      %p219 = scmp.eq.s32.totalorder %s41, 0
      %p220 = por %p218, %p219
      %s222 = sadd.s32 %s221, 1
      %p225 = scmp.eq.s32.totalorder %s35, 1
      %p226 = scmp.ne.s32.totalorder %s221, %s223
      %p227 = scmp.eq.s32.totalorder %s35, 0
      %p228 = por %p226, %p227
      %p229 = scmp.ne.s32.totalorder %s221, %s223
      %p230 = scmp.eq.s32.totalorder %s40, 1
      %p231 = por %p229, %p230
      %p232 = scmp.ne.s32.totalorder %s223, %s224
      %p233 = scmp.eq.s32.totalorder %s40, 0
      %p234 = por %p232, %p233
      %p235 = scmp.ne.s32.totalorder %s223, %s224
      %p236 = scmp.eq.s32.totalorder %s41, 1
      %p237 = por %p235, %p236
      %p239 = scmp.ne.s32.totalorder %s224, %s238
      %p240 = scmp.eq.s32.totalorder %s41, 0
      %p241 = por %p239, %p240
      %s243 = sadd.s32 %s242, 1
      %p246 = scmp.eq.s32.totalorder %s35, 1
      %p247 = scmp.ne.s32.totalorder %s242, %s244
      %p248 = scmp.eq.s32.totalorder %s35, 0
      %p249 = por %p247, %p248
      %p250 = scmp.ne.s32.totalorder %s242, %s244
      %p251 = scmp.eq.s32.totalorder %s40, 1
      %p252 = por %p250, %p251
      %p253 = scmp.ne.s32.totalorder %s244, %s245
      %p254 = scmp.eq.s32.totalorder %s40, 0
      %p255 = por %p253, %p254
      %p256 = scmp.ne.s32.totalorder %s244, %s245
      %p257 = scmp.eq.s32.totalorder %s41, 1
      %p258 = por %p256, %p257
      %p260 = scmp.ne.s32.totalorder %s245, %s259
      %p261 = scmp.eq.s32.totalorder %s41, 0
      %p262 = por %p260, %p261
      %s264 = sadd.s32 %s263, 1
      %p267 = scmp.eq.s32.totalorder %s35, 1
      %p268 = scmp.ne.s32.totalorder %s263, %s265
      %p269 = scmp.eq.s32.totalorder %s35, 0
      %p270 = por %p268, %p269
      %p271 = scmp.ne.s32.totalorder %s263, %s265
      %p272 = scmp.eq.s32.totalorder %s40, 1
      %p273 = por %p271, %p272
      %p274 = scmp.ne.s32.totalorder %s265, %s266
      %p275 = scmp.eq.s32.totalorder %s40, 0
      %p276 = por %p274, %p275
      %p277 = scmp.ne.s32.totalorder %s265, %s266
      %p278 = scmp.eq.s32.totalorder %s41, 1
      %p279 = por %p277, %p278
      %p281 = scmp.ne.s32.totalorder %s266, %s280
      %p282 = scmp.eq.s32.totalorder %s41, 0
      %p283 = por %p281, %p282
      %s285 = sadd.s32 %s284, 1
      %p288 = scmp.eq.s32.totalorder %s35, 1
      %p289 = scmp.ne.s32.totalorder %s284, %s286
      %p290 = scmp.eq.s32.totalorder %s35, 0
      %p291 = por %p289, %p290
      %p292 = scmp.ne.s32.totalorder %s284, %s286
      %p293 = scmp.eq.s32.totalorder %s40, 1
      %p294 = por %p292, %p293
      %p295 = scmp.ne.s32.totalorder %s286, %s287
      %p296 = scmp.eq.s32.totalorder %s40, 0
      %p297 = por %p295, %p296
      %p298 = scmp.ne.s32.totalorder %s286, %s287
      %p299 = scmp.eq.s32.totalorder %s41, 1
      %p300 = por %p298, %p299
      %p302 = scmp.ne.s32.totalorder %s287, %s301
      %p303 = scmp.eq.s32.totalorder %s41, 0
      %p304 = por %p302, %p303
      %s306 = sadd.s32 %s305, 1
      %p309 = scmp.eq.s32.totalorder %s35, 1
      %p310 = scmp.ne.s32.totalorder %s305, %s307
      %p311 = scmp.eq.s32.totalorder %s35, 0
      %p312 = por %p310, %p311
      %p313 = scmp.ne.s32.totalorder %s305, %s307
      %p314 = scmp.eq.s32.totalorder %s40, 1
      %p315 = por %p313, %p314
      %p316 = scmp.ne.s32.totalorder %s307, %s308
      %p317 = scmp.eq.s32.totalorder %s40, 0
      %p318 = por %p316, %p317
      %p319 = scmp.ne.s32.totalorder %s307, %s308
      %p320 = scmp.eq.s32.totalorder %s41, 1
      %p321 = por %p319, %p320
      %p323 = scmp.ne.s32.totalorder %s308, %s322
      %p324 = scmp.eq.s32.totalorder %s41, 0
      %p325 = por %p323, %p324
      %s327 = sadd.s32 %s326, 1
      %p330 = scmp.eq.s32.totalorder %s35, 1
      %p331 = scmp.ne.s32.totalorder %s326, %s328
      %p332 = scmp.eq.s32.totalorder %s35, 0
      %p333 = por %p331, %p332
      %p334 = scmp.ne.s32.totalorder %s326, %s328
      %p335 = scmp.eq.s32.totalorder %s40, 1
      %p336 = por %p334, %p335
      %p337 = scmp.ne.s32.totalorder %s328, %s329
      %p338 = scmp.eq.s32.totalorder %s40, 0
      %p339 = por %p337, %p338
      %p340 = scmp.ne.s32.totalorder %s328, %s329
      %p341 = scmp.eq.s32.totalorder %s41, 1
      %p342 = por %p340, %p341
      %p344 = scmp.ne.s32.totalorder %s329, %s343
      %p345 = scmp.eq.s32.totalorder %s41, 0
      %p346 = por %p344, %p345
      %s348 = sadd.s32 %s347, 1
      %p351 = scmp.eq.s32.totalorder %s35, 1
      %p352 = scmp.ne.s32.totalorder %s347, %s349
      %p353 = scmp.eq.s32.totalorder %s35, 0
      %p354 = por %p352, %p353
      %p355 = scmp.ne.s32.totalorder %s347, %s349
      %p356 = scmp.eq.s32.totalorder %s40, 1
      %p357 = por %p355, %p356
      %p358 = scmp.ne.s32.totalorder %s349, %s350
      %p359 = scmp.eq.s32.totalorder %s40, 0
      %p360 = por %p358, %p359
      %p361 = scmp.ne.s32.totalorder %s349, %s350
      %p362 = scmp.eq.s32.totalorder %s41, 1
      %p363 = por %p361, %p362
      %p365 = scmp.ne.s32.totalorder %s350, %s364
      %p366 = scmp.eq.s32.totalorder %s41, 0
      %p367 = por %p365, %p366
      %s369 = sadd.s32 %s368, 1
      %p372 = scmp.eq.s32.totalorder %s35, 1
      %p373 = scmp.ne.s32.totalorder %s368, %s370
      %p374 = scmp.eq.s32.totalorder %s35, 0
      %p375 = por %p373, %p374
      %p376 = scmp.ne.s32.totalorder %s368, %s370
      %p377 = scmp.eq.s32.totalorder %s40, 1
      %p378 = por %p376, %p377
      %p379 = scmp.ne.s32.totalorder %s370, %s371
      %p380 = scmp.eq.s32.totalorder %s40, 0
      %p381 = por %p379, %p380
      %p382 = scmp.ne.s32.totalorder %s370, %s371
      %p383 = scmp.eq.s32.totalorder %s41, 1
      %p384 = por %p382, %p383
      %p386 = scmp.ne.s32.totalorder %s371, %s385
      %p387 = scmp.eq.s32.totalorder %s41, 0
      %p388 = por %p386, %p387
      %s390 = sadd.s32 %s389, 1
      %p393 = scmp.eq.s32.totalorder %s35, 1
      %p394 = scmp.ne.s32.totalorder %s389, %s391
      %p395 = scmp.eq.s32.totalorder %s35, 0
      %p396 = por %p394, %p395
      %p397 = scmp.ne.s32.totalorder %s389, %s391
      %p398 = scmp.eq.s32.totalorder %s40, 1
      %p399 = por %p397, %p398
      %p400 = scmp.ne.s32.totalorder %s391, %s392
      %p401 = scmp.eq.s32.totalorder %s40, 0
      %p402 = por %p400, %p401
      %p403 = scmp.ne.s32.totalorder %s391, %s392
      %p404 = scmp.eq.s32.totalorder %s41, 1
      %p405 = por %p403, %p404
      %p407 = scmp.ne.s32.totalorder %s392, %s406
      %p408 = scmp.eq.s32.totalorder %s41, 0
      %p409 = por %p407, %p408
      %s411 = sadd.s32 %s410, 1
      %p414 = scmp.eq.s32.totalorder %s35, 1
      %p415 = scmp.ne.s32.totalorder %s410, %s412
      %p416 = scmp.eq.s32.totalorder %s35, 0
      %p417 = por %p415, %p416
      %p418 = scmp.ne.s32.totalorder %s410, %s412
      %p419 = scmp.eq.s32.totalorder %s40, 1
      %p420 = por %p418, %p419
      %p421 = scmp.ne.s32.totalorder %s412, %s413
      %p422 = scmp.eq.s32.totalorder %s40, 0
      %p423 = por %p421, %p422
      %p424 = scmp.ne.s32.totalorder %s412, %s413
      %p425 = scmp.eq.s32.totalorder %s41, 1
      %p426 = por %p424, %p425
      %p428 = scmp.ne.s32.totalorder %s413, %s427
      %p429 = scmp.eq.s32.totalorder %s41, 0
      %p430 = por %p428, %p429
      %s432 = sadd.s32 %s431, 1
      %p435 = scmp.eq.s32.totalorder %s35, 1
      %p436 = scmp.ne.s32.totalorder %s431, %s433
      %p437 = scmp.eq.s32.totalorder %s35, 0
      %p438 = por %p436, %p437
      %p439 = scmp.ne.s32.totalorder %s431, %s433
      %p440 = scmp.eq.s32.totalorder %s40, 1
      %p441 = por %p439, %p440
      %p442 = scmp.ne.s32.totalorder %s433, %s434
      %p443 = scmp.eq.s32.totalorder %s40, 0
      %p444 = por %p442, %p443
      %p445 = scmp.ne.s32.totalorder %s433, %s434
      %p446 = scmp.eq.s32.totalorder %s41, 1
      %p447 = por %p445, %p446
      %p449 = scmp.ne.s32.totalorder %s434, %s448
      %p450 = scmp.eq.s32.totalorder %s41, 0
      %p451 = por %p449, %p450
      %s452 = ssub.s32 %s35, %s42
      %p453 = scmp.eq.s32.totalorder %s452, 0
      %s455 = sadd.s32 %s454, 1
      %s456 = scalar_select %p453, %s454, %s455
      %p459 = pneg %p453
      %p460 = scmp.eq.s32.totalorder %s35, 1
      %p461 = por %p459, %p460
      %p462 = scmp.ne.s32.totalorder %s454, %s457
      %p463 = scmp.eq.s32.totalorder %s35, 0
      %p464 = por %p462, %p463
      %p465 = scmp.ne.s32.totalorder %s454, %s457
      %p466 = scmp.eq.s32.totalorder %s40, 1
      %p467 = por %p465, %p466
      %p468 = scmp.ne.s32.totalorder %s457, %s458
      %p469 = scmp.eq.s32.totalorder %s40, 0
      %p470 = por %p468, %p469
      %p471 = scmp.ne.s32.totalorder %s457, %s458
      %p472 = scmp.eq.s32.totalorder %s41, 1
      %p473 = por %p471, %p472
      %p475 = scmp.ne.s32.totalorder %s458, %s474
      %p476 = scmp.eq.s32.totalorder %s41, 0
      %p477 = por %p475, %p476
      %p478 = scmp.le.s32.totalorder 1, %s35
      %p479 = scmp.lt.s32.totalorder %s35, 3
      %p480 = pnand %p478, %p479
      %p481 = pneg %p480
      // Predicated region
      $region9: #{tpu_custom_call.1} parent=5 // pred_check
        _
      $region10: #{tpu_custom_call.1} parent=5 // pred_check_branch
        %483 = sbr.rel (%p480) target = $region12
      $region11: #{tpu_custom_call.1} parent=5 // pred_region
        %s484 = ssub.s32 %s35, 1
        // Predicated region
        $region13: #{tpu_custom_call.1} parent=11 // pred_check
          %p485 = pneg %p108
        $region14: #{tpu_custom_call.1} parent=11 // pred_check_branch
          %487 = sbr.rel (%p485) target = $region16
        $region15: #{tpu_custom_call.1} parent=11 // pred_region
          %s489 = ssub.s32 64, 64
          %490 = vsyncadd [#allocation6], %s489
          %s492 = sshll.u32 [#allocation5], 4
          %s493 = int_to_ptr.vmem [resolvable:$true] %s492
          %495 = dma.hbm_to_vmem [thread:$0]  %s2, 64, %s493, [#allocation6]
        $region16: #{tpu_custom_call.1} parent=11 // pred_fallthru
          _
        // Predicated region
        $region17: #{tpu_custom_call.1} parent=11 // pred_check
          %p496 = pneg %p129
        $region18: #{tpu_custom_call.1} parent=11 // pred_check_branch
          %498 = sbr.rel (%p496) target = $region20
        $region19: #{tpu_custom_call.1} parent=11 // pred_region
          %s500 = ssub.s32 64, 64
          %501 = vsyncadd [#allocation6], %s500
          %s503 = sshll.u32 [#allocation7], 4
          %s504 = int_to_ptr.vmem [resolvable:$true] %s503
          %506 = dma.hbm_to_vmem [thread:$0]  %s3, 64, %s504, [#allocation6]
        $region20: #{tpu_custom_call.1} parent=11 // pred_fallthru
          _
        // Predicated region
        $region21: #{tpu_custom_call.1} parent=11 // pred_check
          %p507 = pneg %p150
        $region22: #{tpu_custom_call.1} parent=11 // pred_check_branch
          %509 = sbr.rel (%p507) target = $region24
        $region23: #{tpu_custom_call.1} parent=11 // pred_region
          _
        $region24: #{tpu_custom_call.1} parent=11 // pred_fallthru
          _
        // Predicated region
        $region25: #{tpu_custom_call.1} parent=11 // pred_check
          %p510 = pneg %p171
        $region26: #{tpu_custom_call.1} parent=11 // pred_check_branch
          %512 = sbr.rel (%p510) target = $region28
        $region27: #{tpu_custom_call.1} parent=11 // pred_region
          %s514 = ssub.s32 2048, 2048
          %515 = vsyncadd [#allocation9], %s514
          %s516 = sshll.u32 [#allocation8], 4
          %s517 = int_to_ptr.vmem [resolvable:$true] %s516
          %522 = dma.hbm_to_vmem [thread:$0]  %s5, 2048, %s517, [#allocation9], 128, 128, 8
        $region28: #{tpu_custom_call.1} parent=11 // pred_fallthru
          _
        // Predicated region
        $region29: #{tpu_custom_call.1} parent=11 // pred_check
          %p523 = pneg %p192
        $region30: #{tpu_custom_call.1} parent=11 // pred_check_branch
          %525 = sbr.rel (%p523) target = $region32
        $region31: #{tpu_custom_call.1} parent=11 // pred_region
          %s527 = ssub.s32 64, 64
          %528 = vsyncadd [#allocation9], %s527
          %s530 = sshll.u32 [#allocation10], 4
          %s531 = int_to_ptr.vmem [resolvable:$true] %s530
          %533 = dma.hbm_to_vmem [thread:$0]  %s6, 64, %s531, [#allocation9]
        $region32: #{tpu_custom_call.1} parent=11 // pred_fallthru
          _
        // Predicated region
        $region33: #{tpu_custom_call.1} parent=11 // pred_check
          %p534 = pneg %p213
        $region34: #{tpu_custom_call.1} parent=11 // pred_check_branch
          %536 = sbr.rel (%p534) target = $region36
        $region35: #{tpu_custom_call.1} parent=11 // pred_region
          _
        $region36: #{tpu_custom_call.1} parent=11 // pred_fallthru
          _
        // Predicated region
        $region37: #{tpu_custom_call.1} parent=11 // pred_check
          %p537 = pneg %p234
        $region38: #{tpu_custom_call.1} parent=11 // pred_check_branch
          %539 = sbr.rel (%p537) target = $region40
        $region39: #{tpu_custom_call.1} parent=11 // pred_region
          %s541 = ssub.s32 16, 16
          %542 = vsyncadd [#allocation12], %s541
          %s544 = sshll.u32 [#allocation11], 4
          %s545 = int_to_ptr.vmem [resolvable:$true] %s544
          %547 = dma.hbm_to_vmem [thread:$0]  %s8, 16, %s545, [#allocation12]
        $region40: #{tpu_custom_call.1} parent=11 // pred_fallthru
          _
        // Predicated region
        $region41: #{tpu_custom_call.1} parent=11 // pred_check
          %p548 = pneg %p255
        $region42: #{tpu_custom_call.1} parent=11 // pred_check_branch
          %550 = sbr.rel (%p548) target = $region44
        $region43: #{tpu_custom_call.1} parent=11 // pred_region
          _
        $region44: #{tpu_custom_call.1} parent=11 // pred_fallthru
          _
        // Predicated region
        $region45: #{tpu_custom_call.1} parent=11 // pred_check
          %p551 = pneg %p276
        $region46: #{tpu_custom_call.1} parent=11 // pred_check_branch
          %553 = sbr.rel (%p551) target = $region48
        $region47: #{tpu_custom_call.1} parent=11 // pred_region
          %s555 = ssub.s32 16, 16
          %556 = vsyncadd [#allocation12], %s555
          %s558 = sshll.u32 [#allocation13], 4
          %s559 = int_to_ptr.vmem [resolvable:$true] %s558
          %561 = dma.hbm_to_vmem [thread:$0]  %s10, 16, %s559, [#allocation12]
        $region48: #{tpu_custom_call.1} parent=11 // pred_fallthru
          _
        // Predicated region
        $region49: #{tpu_custom_call.1} parent=11 // pred_check
          %p562 = pneg %p297
        $region50: #{tpu_custom_call.1} parent=11 // pred_check_branch
          %564 = sbr.rel (%p562) target = $region52
        $region51: #{tpu_custom_call.1} parent=11 // pred_region
          _
        $region52: #{tpu_custom_call.1} parent=11 // pred_fallthru
          _
        // Predicated region
        $region53: #{tpu_custom_call.1} parent=11 // pred_check
          %p565 = pneg %p318
        $region54: #{tpu_custom_call.1} parent=11 // pred_check_branch
          %567 = sbr.rel (%p565) target = $region56
        $region55: #{tpu_custom_call.1} parent=11 // pred_region
          _
        $region56: #{tpu_custom_call.1} parent=11 // pred_fallthru
          _
        // Predicated region
        $region57: #{tpu_custom_call.1} parent=11 // pred_check
          %p568 = pneg %p339
        $region58: #{tpu_custom_call.1} parent=11 // pred_check_branch
          %570 = sbr.rel (%p568) target = $region60
        $region59: #{tpu_custom_call.1} parent=11 // pred_region
          %s572 = ssub.s32 512, 512
          %573 = vsyncadd [#allocation15], %s572
          %s574 = sshll.u32 [#allocation14], 4
          %s575 = int_to_ptr.vmem [resolvable:$true] %s574
          %580 = dma.hbm_to_vmem [thread:$0]  %s13, 512, %s575, [#allocation15], 128, 128, 8
        $region60: #{tpu_custom_call.1} parent=11 // pred_fallthru
          _
        // Predicated region
        $region61: #{tpu_custom_call.1} parent=11 // pred_check
          %p581 = pneg %p360
        $region62: #{tpu_custom_call.1} parent=11 // pred_check_branch
          %583 = sbr.rel (%p581) target = $region64
        $region63: #{tpu_custom_call.1} parent=11 // pred_region
          _
        $region64: #{tpu_custom_call.1} parent=11 // pred_fallthru
          _
        // Predicated region
        $region65: #{tpu_custom_call.1} parent=11 // pred_check
          %p584 = pneg %p381
        $region66: #{tpu_custom_call.1} parent=11 // pred_check_branch
          %586 = sbr.rel (%p584) target = $region68
        $region67: #{tpu_custom_call.1} parent=11 // pred_region
          _
        $region68: #{tpu_custom_call.1} parent=11 // pred_fallthru
          _
        // Predicated region
        $region69: #{tpu_custom_call.1} parent=11 // pred_check
          %p587 = pneg %p402
        $region70: #{tpu_custom_call.1} parent=11 // pred_check_branch
          %589 = sbr.rel (%p587) target = $region72
        $region71: #{tpu_custom_call.1} parent=11 // pred_region
          _
        $region72: #{tpu_custom_call.1} parent=11 // pred_fallthru
          _
        // Predicated region
        $region73: #{tpu_custom_call.1} parent=11 // pred_check
          %p590 = pneg %p423
        $region74: #{tpu_custom_call.1} parent=11 // pred_check_branch
          %592 = sbr.rel (%p590) target = $region76
        $region75: #{tpu_custom_call.1} parent=11 // pred_region
          %s594 = ssub.s32 512, 512
          %595 = vsyncadd [#allocation15], %s594
          %s596 = sshll.u32 [#allocation16], 4
          %s597 = int_to_ptr.vmem [resolvable:$true] %s596
          %602 = dma.hbm_to_vmem [thread:$0]  %s17, 512, %s597, [#allocation15], 128, 128, 8
        $region76: #{tpu_custom_call.1} parent=11 // pred_fallthru
          _
        // Predicated region
        $region77: #{tpu_custom_call.1} parent=11 // pred_check
          %p603 = pneg %p444
        $region78: #{tpu_custom_call.1} parent=11 // pred_check_branch
          %605 = sbr.rel (%p603) target = $region80
        $region79: #{tpu_custom_call.1} parent=11 // pred_region
          _
        $region80: #{tpu_custom_call.1} parent=11 // pred_fallthru
          _
      $region12: #{tpu_custom_call.1} parent=5 // pred_fallthru
        _
      %p606 = scmp.lt.s32.totalorder %s35, 2
      // Predicated region
      $region81: #{tpu_custom_call.1} parent=5 // pred_check
        %p607 = pneg %p606
      $region82: #{tpu_custom_call.1} parent=5 // pred_check_branch
        %609 = sbr.rel (%p607) target = $region84
      $region83: #{tpu_custom_call.1} parent=5 // pred_region
        // Predicated region
        $region85: #{tpu_custom_call.1} parent=83 // pred_check
          %p610 = pneg %p55
        $region86: #{tpu_custom_call.1} parent=83 // pred_check_branch
          %612 = sbr.rel (%p610) target = $region88
        $region87: #{tpu_custom_call.1} parent=83 // pred_region
          %p613 = scmp.lt.s32.totalorder %s35, 1
          %s614 = scalar_select %p613, %s35, 1
          %s615 = smul.addr %s614, 2
          %s616 = smul.addr %s615, 8
          %s617 = scalar_lea.vmem %s0, %s616
        $region88: #{tpu_custom_call.1} parent=83 // pred_fallthru
          _
        // Predicated region
        $region89: #{tpu_custom_call.1} parent=83 // pred_check
          %p618 = pneg %p81
        $region90: #{tpu_custom_call.1} parent=83 // pred_check_branch
          %620 = sbr.rel (%p618) target = $region92
        $region91: #{tpu_custom_call.1} parent=83 // pred_region
          %s621 = sand.u32 %s71, 1
          %s622 = scalar_lea.sflag [#allocation3], %s621
          %s623 = sand.u32 %s71, 1
          %s624 = scalar_lea.vmem [#allocation2], %s623
          %s626 = ssub.s32 16, 16
          %627 = vsyncadd %s622, %s626
          %s628 = smul.addr %s35, 16
          %s629 = scalar_lea.hbm %s1, %s628
          %s631 = sshll.u32 %s624, 4
          %s632 = int_to_ptr.vmem [resolvable:$true] %s631
          %634 = dma.hbm_to_vmem [thread:$0]  %s629, 16, %s632, %s622
        $region92: #{tpu_custom_call.1} parent=83 // pred_fallthru
          _
      $region84: #{tpu_custom_call.1} parent=5 // pred_fallthru
        _
      %p635 = scmp.le.s32.totalorder 1, %s35
      %p636 = scmp.lt.s32.totalorder %s35, 3
      %p637 = pnand %p635, %p636
      %p638 = pneg %p637
      // Predicated region
      $region93: #{tpu_custom_call.1} parent=5 // pred_check
        _
      $region94: #{tpu_custom_call.1} parent=5 // pred_check_branch
        %640 = sbr.rel (%p637) target = $region96
      $region95: #{tpu_custom_call.1} parent=5 // pred_region
        %s641 = ssub.s32 %s35, 1
        %s642 = sand.u32 %s74, 1
        %s643 = scalar_lea.sflag [#allocation3], %s642
        %s644 = sand.u32 %s74, 1
        %s645 = scalar_lea.vmem [#allocation2], %s644
        // Predicated region
        $region97: #{tpu_custom_call.1} parent=95 // pred_check
          %p646 = pneg %p87
        $region98: #{tpu_custom_call.1} parent=95 // pred_check_branch
          %648 = sbr.rel (%p646) target = $region100
        $region99: #{tpu_custom_call.1} parent=95 // pred_region
          %649 = dma.done %s643, 16
        $region100: #{tpu_custom_call.1} parent=95 // pred_fallthru
          _
        // Predicated region
        $region101: #{tpu_custom_call.1} parent=95 // pred_check
          %p650 = pneg %p108
        $region102: #{tpu_custom_call.1} parent=95 // pred_check_branch
          %652 = sbr.rel (%p650) target = $region104
        $region103: #{tpu_custom_call.1} parent=95 // pred_region
          %653 = dma.done [#allocation6], 64
        $region104: #{tpu_custom_call.1} parent=95 // pred_fallthru
          _
        // Predicated region
        $region105: #{tpu_custom_call.1} parent=95 // pred_check
          %p654 = pneg %p129
        $region106: #{tpu_custom_call.1} parent=95 // pred_check_branch
          %656 = sbr.rel (%p654) target = $region108
        $region107: #{tpu_custom_call.1} parent=95 // pred_region
          %657 = dma.done [#allocation6], 64
        $region108: #{tpu_custom_call.1} parent=95 // pred_fallthru
          _
        // Predicated region
        $region109: #{tpu_custom_call.1} parent=95 // pred_check
          %p658 = pneg %p171
        $region110: #{tpu_custom_call.1} parent=95 // pred_check_branch
          %660 = sbr.rel (%p658) target = $region112
        $region111: #{tpu_custom_call.1} parent=95 // pred_region
          %661 = dma.done [#allocation9], 2048
        $region112: #{tpu_custom_call.1} parent=95 // pred_fallthru
          _
        // Predicated region
        $region113: #{tpu_custom_call.1} parent=95 // pred_check
          %p662 = pneg %p192
        $region114: #{tpu_custom_call.1} parent=95 // pred_check_branch
          %664 = sbr.rel (%p662) target = $region116
        $region115: #{tpu_custom_call.1} parent=95 // pred_region
          %665 = dma.done [#allocation9], 64
        $region116: #{tpu_custom_call.1} parent=95 // pred_fallthru
          _
        // Predicated region
        $region117: #{tpu_custom_call.1} parent=95 // pred_check
          %p666 = pneg %p234
        $region118: #{tpu_custom_call.1} parent=95 // pred_check_branch
          %668 = sbr.rel (%p666) target = $region120
        $region119: #{tpu_custom_call.1} parent=95 // pred_region
          %669 = dma.done [#allocation12], 16
        $region120: #{tpu_custom_call.1} parent=95 // pred_fallthru
          _
        // Predicated region
        $region121: #{tpu_custom_call.1} parent=95 // pred_check
          %p670 = pneg %p276
        $region122: #{tpu_custom_call.1} parent=95 // pred_check_branch
          %672 = sbr.rel (%p670) target = $region124
        $region123: #{tpu_custom_call.1} parent=95 // pred_region
          %673 = dma.done [#allocation12], 16
        $region124: #{tpu_custom_call.1} parent=95 // pred_fallthru
          _
        // Predicated region
        $region125: #{tpu_custom_call.1} parent=95 // pred_check
          %p674 = pneg %p339
        $region126: #{tpu_custom_call.1} parent=95 // pred_check_branch
          %676 = sbr.rel (%p674) target = $region128
        $region127: #{tpu_custom_call.1} parent=95 // pred_region
          %677 = dma.done [#allocation15], 512
        $region128: #{tpu_custom_call.1} parent=95 // pred_fallthru
          _
        // Predicated region
        $region129: #{tpu_custom_call.1} parent=95 // pred_check
          %p678 = pneg %p423
        $region130: #{tpu_custom_call.1} parent=95 // pred_check_branch
          %680 = sbr.rel (%p678) target = $region132
        $region131: #{tpu_custom_call.1} parent=95 // pred_region
          %681 = dma.done [#allocation15], 512
        $region132: #{tpu_custom_call.1} parent=95 // pred_fallthru
          _
        %p682 = scmp.lt.s32.totalorder %s40, 1
        %s683 = scalar_select %p682, %s40, 1
        %s684 = smul.addr %s683, 2
        %s685 = smul.addr %s684, 8
        %s686 = scalar_lea.vmem %s0, %s685
        %p687 = pneg %p61
        %p688 = pneg %p58
        %s689 = sand.u32 %s74, 1
        %s690 = scalar_lea.sflag [#allocation3], %s689
        %s691 = sand.u32 %s74, 1
        %s692 = scalar_lea.vmem [#allocation2], %s691
        %p693 = pneg %p87
        %p694 = pneg %p84
        %p695 = pneg %p108
        %p696 = pneg %p105
        %p697 = pneg %p129
        %p698 = pneg %p126
        %p699 = pneg %p150
        %p700 = pneg %p147
        %p701 = pneg %p171
        %p702 = pneg %p168
        %p703 = pneg %p192
        %p704 = pneg %p189
        %p705 = pneg %p213
        %p706 = pneg %p210
        %p707 = pneg %p234
        %p708 = pneg %p231
        %p709 = pneg %p255
        %p710 = pneg %p252
        %p711 = pneg %p276
        %p712 = pneg %p273
        %p713 = pneg %p297
        %p714 = pneg %p294
        %p715 = pneg %p318
        %p716 = pneg %p315
        %p717 = pneg %p339
        %p718 = pneg %p336
        %p719 = pneg %p360
        %p720 = pneg %p357
        %p721 = pneg %p381
        %p722 = pneg %p378
        %p723 = pneg %p402
        %p724 = pneg %p399
        %p725 = pneg %p423
        %p726 = pneg %p420
        %p727 = pneg %p444
        %p728 = pneg %p441
        %p729 = pneg %p470
        %p730 = pneg %p467
        %s731 = sand.u32 %s457, 1
        %s732 = scalar_lea.sflag [#allocation4], %s731
        %s733 = sand.u32 %s457, 1
        %s734 = smul.addr %s733, 16
        %s735 = scalar_lea.vmem [#allocation17], %s734
        %p736 = scmp.lt.s32.totalorder %s40, 1
        %s737 = scalar_select %p736, %s40, 1
        %s738 = smul.addr %s737, 2
        %s739 = smul.addr %s738, 8
        %s740 = scalar_lea.vmem %s0, %s739
        %v741 = vld [vmem:[%s740] sm:$0xff]
        %v742 = vld [vmem:[%s740 + $0x8] sm:$0xff]
        %v743 = vlaneseq
        %v744 = vshrl.u32 %v743, 7
        %v745 = vadd.s32 %v744, 8
        %v746 = vld [vmem:[#allocation5] sm:$0x1]
        %v747 = vld [vmem:[#allocation7] sm:$0x1]
        %vm748 = vcmask 261120
        %v749 = vsel %vm748, %v741, 0.0
        %750 = vadd.xlane.f32.xlu0 %v749
        %v751 = vpop.xlane.xlu0 %750
        %v752 = vsel %vm748, %v742, 0.0
        %753 = vadd.xlane.f32.xlu0 %v752
        %v754 = vpop.xlane.xlu0 %753
        %v755 = vrcp.pop 32.0
        %v756 = vmul.f32 %v751, %v755
        %v757 = vmul.f32 %v754, %v755
        %v758 = vsub.f32 %v741, %v756
        %v759 = vsub.f32 %v742, %v757
        %v760 = vmul.f32 %v758, %v758
        %v761 = vmul.f32 %v759, %v759
        %v762 = vsel %vm748, %v760, 0.0
        %763 = vadd.xlane.f32.xlu0 %v762
        %v764 = vpop.xlane.xlu0 %763
        %v765 = vsel %vm748, %v761, 0.0
        %766 = vadd.xlane.f32.xlu0 %v765
        %v767 = vpop.xlane.xlu0 %766
        %v768 = vmul.f32 %v764, %v755
        %v769 = vmul.f32 %v767, %v755
        %v770 = vadd.f32 %v768, 1e-06
        %v771 = vadd.f32 %v769, 1e-06
        %v772 = vrsqrt.pop %v770
        %v773 = vrsqrt.pop %v771
        %v774 = vmul.f32 %v758, %v772
        %v775 = vmul.f32 %v759, %v773
        %v776 = vlaneseq
        %v777 = vshrl.u32 %v776, 7
        %v778 = vsub.s32 0, %v777
        %v779 = vrot.slane %v746, %v778
        %v780 = vmul.f32 %v774, %v779
        %v781 = vmul.f32 %v775, %v779
        %v782 = vlaneseq
        %v783 = vshrl.u32 %v782, 7
        %v784 = vsub.s32 0, %v783
        %v785 = vrot.slane %v747, %v784
        %v786 = vadd.f32 %v780, %v785
        %v787 = vadd.f32 %v781, %v785
        %v788 = vld [vmem:[%s4] sm:$0x7f]
        %v789 = vrot.slane %v786, 5
        %v790 = vrot.slane %v787, 5
        %vm791 = vcmp.lt.s32.totalorder %v744, 3
        %v792 = vsel %vm791, %v789, %v790
        %v793 = vsel %vm791, %v790, %v789
        %v794 = vadd.s32 %v744, 4294967293
        %v795 = vadd.s32 %v745, 4294967293
        %vm796 = vcmp.ge.s32.totalorder %v794, 0
        %vm797 = vcmp.ge.s32.totalorder %v795, 0
        %vm798 = vcmp.lt.s32.totalorder %v794, 16
        %vm799 = vcmp.lt.s32.totalorder %v795, 16
        %vm800 = vmand %vm796, %vm798
        %vm801 = vmand %vm797, %vm799
        %v802 = vsel %vm800, 1, 0
        %v803 = vsel %vm801, 1, 0
        %vm804 = vcmp.eq.s32.totalorder %v802, 1
        %vm805 = vcmp.eq.s32.totalorder %v803, 1
        %v806 = vsel %vm804, %v793, 0.0
        %v807 = vsel %vm805, %v792, 0.0
        %v808 = vlaneseq
        %v809 = vshrl.u32 %v808, 7
        %v810 = vsub.s32 0, %v809
        %v811 = vrot.slane %v788, %v810
        %v812 = vmul.f32 %v806, %v811
        %v813 = vmul.f32 %v807, %v811
        %v814 = vadd.f32 %v812, 0.0
        %v815 = vadd.f32 %v813, 0.0
        %v816 = vrot.slane %v786, 6
        %v817 = vrot.slane %v787, 6
        %vm818 = vcmp.lt.s32.totalorder %v744, 2
        %v819 = vsel %vm818, %v816, %v817
        %v820 = vsel %vm818, %v817, %v816
        %v821 = vadd.s32 %v744, 4294967294
        %v822 = vadd.s32 %v745, 4294967294
        %vm823 = vcmp.ge.s32.totalorder %v821, 0
        %vm824 = vcmp.ge.s32.totalorder %v822, 0
        %vm825 = vcmp.lt.s32.totalorder %v821, 16
        %vm826 = vcmp.lt.s32.totalorder %v822, 16
        %vm827 = vmand %vm823, %vm825
        %vm828 = vmand %vm824, %vm826
        %v829 = vsel %vm827, 1, 0
        %v830 = vsel %vm828, 1, 0
        %vm831 = vcmp.eq.s32.totalorder %v829, 1
        %vm832 = vcmp.eq.s32.totalorder %v830, 1
        %v833 = vsel %vm831, %v820, 0.0
        %v834 = vsel %vm832, %v819, 0.0
        %v835 = vlaneseq
        %v836 = vshrl.u32 %v835, 7
        %v837 = vsub.s32 1, %v836
        %v838 = vrot.slane %v788, %v837
        %v839 = vmul.f32 %v833, %v838
        %v840 = vmul.f32 %v834, %v838
        %v841 = vadd.f32 %v814, %v839
        %v842 = vadd.f32 %v815, %v840
        %v843 = vrot.slane %v786, 7
        %v844 = vrot.slane %v787, 7
        %vm845 = vcmp.lt.s32.totalorder %v744, 1
        %v846 = vsel %vm845, %v843, %v844
        %v847 = vsel %vm845, %v844, %v843
        %v848 = vadd.s32 %v744, 4294967295
        %v849 = vadd.s32 %v745, 4294967295
        %vm850 = vcmp.ge.s32.totalorder %v848, 0
        %vm851 = vcmp.ge.s32.totalorder %v849, 0
        %vm852 = vcmp.lt.s32.totalorder %v848, 16
        %vm853 = vcmp.lt.s32.totalorder %v849, 16
        %vm854 = vmand %vm850, %vm852
        %vm855 = vmand %vm851, %vm853
        %v856 = vsel %vm854, 1, 0
        %v857 = vsel %vm855, 1, 0
        %vm858 = vcmp.eq.s32.totalorder %v856, 1
        %vm859 = vcmp.eq.s32.totalorder %v857, 1
        %v860 = vsel %vm858, %v847, 0.0
        %v861 = vsel %vm859, %v846, 0.0
        %v862 = vlaneseq
        %v863 = vshrl.u32 %v862, 7
        %v864 = vsub.s32 2, %v863
        %v865 = vrot.slane %v788, %v864
        %v866 = vmul.f32 %v860, %v865
        %v867 = vmul.f32 %v861, %v865
        %v868 = vadd.f32 %v841, %v866
        %v869 = vadd.f32 %v842, %v867
        %vm870 = vcmp.ge.s32.totalorder %v744, 0
        %vm871 = vcmp.ge.s32.totalorder %v745, 0
        %vm872 = vcmp.lt.s32.totalorder %v744, 16
        %vm873 = vcmp.lt.s32.totalorder %v745, 16
        %vm874 = vmand %vm870, %vm872
        %vm875 = vmand %vm871, %vm873
        %v876 = vsel %vm874, 1, 0
        %v877 = vsel %vm875, 1, 0
        %vm878 = vcmp.eq.s32.totalorder %v876, 1
        %vm879 = vcmp.eq.s32.totalorder %v877, 1
        %v880 = vsel %vm878, %v786, 0.0
        %v881 = vsel %vm879, %v787, 0.0
        %v882 = vlaneseq
        %v883 = vshrl.u32 %v882, 7
        %v884 = vsub.s32 3, %v883
        %v885 = vrot.slane %v788, %v884
        %v886 = vmul.f32 %v880, %v885
        %v887 = vmul.f32 %v881, %v885
        %v888 = vadd.f32 %v868, %v886
        %v889 = vadd.f32 %v869, %v887
        %v890 = vrot.slane %v786, 1
        %v891 = vrot.slane %v787, 1
        %vm892 = vcmp.lt.s32.totalorder %v744, 7
        %v893 = vsel %vm892, %v890, %v891
        %v894 = vsel %vm892, %v891, %v890
        %v895 = vadd.s32 %v744, 1
        %v896 = vadd.s32 %v745, 1
        %vm897 = vcmp.ge.s32.totalorder %v895, 0
        %vm898 = vcmp.ge.s32.totalorder %v896, 0
        %vm899 = vcmp.lt.s32.totalorder %v895, 16
        %vm900 = vcmp.lt.s32.totalorder %v896, 16
        %vm901 = vmand %vm897, %vm899
        %vm902 = vmand %vm898, %vm900
        %v903 = vsel %vm901, 1, 0
        %v904 = vsel %vm902, 1, 0
        %vm905 = vcmp.eq.s32.totalorder %v903, 1
        %vm906 = vcmp.eq.s32.totalorder %v904, 1
        %v907 = vsel %vm905, %v893, 0.0
        %v908 = vsel %vm906, %v894, 0.0
        %v909 = vlaneseq
        %v910 = vshrl.u32 %v909, 7
        %v911 = vsub.s32 4, %v910
        %v912 = vrot.slane %v788, %v911
        %v913 = vmul.f32 %v907, %v912
        %v914 = vmul.f32 %v908, %v912
        %v915 = vadd.f32 %v888, %v913
        %v916 = vadd.f32 %v889, %v914
        %v917 = vrot.slane %v786, 2
        %v918 = vrot.slane %v787, 2
        %vm919 = vcmp.lt.s32.totalorder %v744, 6
        %v920 = vsel %vm919, %v917, %v918
        %v921 = vsel %vm919, %v918, %v917
        %v922 = vadd.s32 %v744, 2
        %v923 = vadd.s32 %v745, 2
        %vm924 = vcmp.ge.s32.totalorder %v922, 0
        %vm925 = vcmp.ge.s32.totalorder %v923, 0
        %vm926 = vcmp.lt.s32.totalorder %v922, 16
        %vm927 = vcmp.lt.s32.totalorder %v923, 16
        %vm928 = vmand %vm924, %vm926
        %vm929 = vmand %vm925, %vm927
        %v930 = vsel %vm928, 1, 0
        %v931 = vsel %vm929, 1, 0
        %vm932 = vcmp.eq.s32.totalorder %v930, 1
        %vm933 = vcmp.eq.s32.totalorder %v931, 1
        %v934 = vsel %vm932, %v920, 0.0
        %v935 = vsel %vm933, %v921, 0.0
        %v936 = vlaneseq
        %v937 = vshrl.u32 %v936, 7
        %v938 = vsub.s32 5, %v937
        %v939 = vrot.slane %v788, %v938
        %v940 = vmul.f32 %v934, %v939
        %v941 = vmul.f32 %v935, %v939
        %v942 = vadd.f32 %v915, %v940
        %v943 = vadd.f32 %v916, %v941
        %v944 = vrot.slane %v786, 3
        %v945 = vrot.slane %v787, 3
        %vm946 = vcmp.lt.s32.totalorder %v744, 5
        %v947 = vsel %vm946, %v944, %v945
        %v948 = vsel %vm946, %v945, %v944
        %v949 = vadd.s32 %v744, 3
        %v950 = vadd.s32 %v745, 3
        %vm951 = vcmp.ge.s32.totalorder %v949, 0
        %vm952 = vcmp.ge.s32.totalorder %v950, 0
        %vm953 = vcmp.lt.s32.totalorder %v949, 16
        %vm954 = vcmp.lt.s32.totalorder %v950, 16
        %vm955 = vmand %vm951, %vm953
        %vm956 = vmand %vm952, %vm954
        %v957 = vsel %vm955, 1, 0
        %v958 = vsel %vm956, 1, 0
        %vm959 = vcmp.eq.s32.totalorder %v957, 1
        %vm960 = vcmp.eq.s32.totalorder %v958, 1
        %v961 = vsel %vm959, %v947, 0.0
        %v962 = vsel %vm960, %v948, 0.0
        %v963 = vlaneseq
        %v964 = vshrl.u32 %v963, 7
        %v965 = vsub.s32 6, %v964
        %v966 = vrot.slane %v788, %v965
        %v967 = vmul.f32 %v961, %v966
        %v968 = vmul.f32 %v962, %v966
        %v969 = vadd.f32 %v942, %v967
        %v970 = vadd.f32 %v943, %v968
        %v971 = vld [vmem:[#allocation8] sm:$0xff]
        %v972 = vld [vmem:[#allocation8 + $0x8] sm:$0xff]
        %v973 = vld [vmem:[#allocation8 + $0x10] sm:$0xff]
        %v974 = vld [vmem:[#allocation8 + $0x18] sm:$0xff]
        %v975 = vld [vmem:[#allocation10] sm:$0x1]
        %v976 = vlaneseq
        %v977 = vshrl.u32 %v976, 7
        %v978 = vsub.s32 0, %v977
        %v979 = vrot.slane %v975, %v978
        %v981 = vsel %vm748, %v969, 0
        %v984 = vsel %vm748, %v970, 0
        %986 = vmatprep.subr.mxu0 0.0
        %987 = vmatpush1.msra.mxu0 %v971
        %988 = vmatprep.subr.mxu0 0.0
        %989 = vmatpush1.msra.mxu0 %v972
        %990 = vmatprep.subr.mxu0 0.0
        %991 = vmatpush1.msra.mxu0 %v973
        %992 = vmatprep.subr.mxu0 0.0
        %993 = vmatpush1.msra.mxu0 %v974
        %994 = vmatprep.subr.mxu0 0.0
        %995 = vmatpush1.msra.mxu0 0.0
        %996 = vmatprep.subr.mxu0 0.0
        %997 = vmatpush1.msra.mxu0 0.0
        %998 = vmatprep.subr.mxu0 0.0
        %999 = vmatpush1.msra.mxu0 0.0
        %1000 = vmatprep.subr.mxu0 0.0
        %1001 = vmatpush1.msra.mxu0 0.0
        %1002 = vmatprep.subr.mxu0 0.0
        %1003 = vmatpush1.msra.mxu0 0.0
        %1004 = vmatprep.subr.mxu0 0.0
        %1005 = vmatpush1.msra.mxu0 0.0
        %1006 = vmatprep.subr.mxu0 0.0
        %1007 = vmatpush1.msra.mxu0 0.0
        %1008 = vmatprep.subr.mxu0 0.0
        %1009 = vmatpush1.msra.mxu0 0.0
        %1010 = vmatprep.subr.mxu0 0.0
        %1011 = vmatpush1.msra.mxu0 0.0
        %1012 = vmatprep.subr.mxu0 0.0
        %1013 = vmatpush1.msra.mxu0 0.0
        %1014 = vmatprep.subr.mxu0 0.0
        %1015 = vmatpush1.msra.mxu0 0.0
        %1016 = vmatprep.subr.mxu0 0.0
        %1017 = vmatpush1.msra.mxu0 0.0
        %1018 = vmatprep.subr.mxu0 0.0
        %1019 = vmatpush1.msra.mxu0 0.0
        %1020 = vmatprep.subr.mxu0 0.0
        %1021 = vmatpush1.msra.mxu0 0.0
        %1022 = vmatprep.subr.mxu0 0.0
        %1023 = vmatpush1.msra.mxu0 0.0
        %1024 = vmatprep.subr.mxu0 0.0
        %1025 = vmatpush1.msra.mxu0 0.0
        %1026 = vmatprep.subr.mxu0 0.0
        %1027 = vmatpush1.msra.mxu0 0.0
        %1028 = vmatprep.subr.mxu0 0.0
        %1029 = vmatpush1.msra.mxu0 0.0
        %1030 = vmatprep.subr.mxu0 0.0
        %1031 = vmatpush1.msra.mxu0 0.0
        %1032 = vmatprep.subr.mxu0 0.0
        %1033 = vmatpush1.msra.mxu0 0.0
        %1034 = vmatprep.subr.mxu0 0.0
        %1035 = vmatpush1.msra.mxu0 0.0
        %1036 = vmatprep.subr.mxu0 0.0
        %1037 = vmatpush1.msra.mxu0 0.0
        %1038 = vmatprep.subr.mxu0 0.0
        %1039 = vmatpush1.msra.mxu0 0.0
        %1040 = vmatprep.subr.mxu0 0.0
        %1041 = vmatpush1.msra.mxu0 0.0
        %1042 = vmatprep.subr.mxu0 0.0
        %1043 = vmatpush1.msra.mxu0 0.0
        %1044 = vmatprep.subr.mxu0 0.0
        %1045 = vmatpush1.msra.mxu0 0.0
        %1046 = vmatprep.subr.mxu0 0.0
        %1047 = vmatpush1.msra.mxu0 0.0
        %1048 = vmatprep.subr.mxu0 0.0
        %1049 = vmatpush1.msra.mxu0 0.0
        %1050 = vmatprep.mubr.f32.mxu0 0.0
        %1051 = vmatmul.mubr.f32.gmra.mrb[0].mxu0 %v981
        %v1052 = vpop.f32.mrb[0].mxu0
        %v1053 = vadd.f32 %v979, %v1052
        %v1054 = vpop.f32.mrb[0].mxu0
        %1055 = vmatprep.mubr.f32.mxu0 0.0
        %1056 = vmatmul.mubr.f32.gmra.mrb[0].mxu0 %v984
        %v1057 = vpop.f32.mrb[0].mxu0
        %v1058 = vadd.f32 %v979, %v1057
        %v1059 = vpop.f32.mrb[0].mxu0
        %1060 = vdwg.mxu0
        %v1061 = vmax.f32 %v1053, 0.0
        %v1062 = vmax.f32 %v1058, 0.0
        %v1063 = vadd.f32 %v1061, %v741
        %v1064 = vadd.f32 %v1062, %v742
        %v1065 = vld [vmem:[#allocation5 + $0x1] sm:$0x1]
        %v1066 = vld [vmem:[#allocation7 + $0x1] sm:$0x1]
        %v1067 = vsel %vm748, %v1063, 0.0
        %1068 = vadd.xlane.f32.xlu0 %v1067
        %v1069 = vpop.xlane.xlu0 %1068
        %v1070 = vsel %vm748, %v1064, 0.0
        %1071 = vadd.xlane.f32.xlu0 %v1070
        %v1072 = vpop.xlane.xlu0 %1071
        %v1073 = vmul.f32 %v1069, %v755
        %v1074 = vmul.f32 %v1072, %v755
        %v1075 = vsub.f32 %v1063, %v1073
        %v1076 = vsub.f32 %v1064, %v1074
        %v1077 = vmul.f32 %v1075, %v1075
        %v1078 = vmul.f32 %v1076, %v1076
        %v1079 = vsel %vm748, %v1077, 0.0
        %1080 = vadd.xlane.f32.xlu0 %v1079
        %v1081 = vpop.xlane.xlu0 %1080
        %v1082 = vsel %vm748, %v1078, 0.0
        %1083 = vadd.xlane.f32.xlu0 %v1082
        %v1084 = vpop.xlane.xlu0 %1083
        %v1085 = vmul.f32 %v1081, %v755
        %v1086 = vmul.f32 %v1084, %v755
        %v1087 = vadd.f32 %v1085, 1e-06
        %v1088 = vadd.f32 %v1086, 1e-06
        %v1089 = vrsqrt.pop %v1087
        %v1090 = vrsqrt.pop %v1088
        %v1091 = vmul.f32 %v1075, %v1089
        %v1092 = vmul.f32 %v1076, %v1090
        %v1093 = vlaneseq
        %v1094 = vshrl.u32 %v1093, 7
        %v1095 = vsub.s32 0, %v1094
        %v1096 = vrot.slane %v1065, %v1095
        %v1097 = vmul.f32 %v1091, %v1096
        %v1098 = vmul.f32 %v1092, %v1096
        %v1099 = vlaneseq
        %v1100 = vshrl.u32 %v1099, 7
        %v1101 = vsub.s32 0, %v1100
        %v1102 = vrot.slane %v1066, %v1101
        %v1103 = vadd.f32 %v1097, %v1102
        %v1104 = vadd.f32 %v1098, %v1102
        %s1105 = scalar_lea.vmem %s4, 8
        %v1106 = vld [vmem:[%s1105] sm:$0x7f]
        %v1107 = vrot.slane %v1103, 5
        %v1108 = vrot.slane %v1104, 5
        %v1109 = vsel %vm791, %v1107, %v1108
        %v1110 = vsel %vm791, %v1108, %v1107
        %v1111 = vsel %vm804, %v1110, 0.0
        %v1112 = vsel %vm805, %v1109, 0.0
        %v1113 = vlaneseq
        %v1114 = vshrl.u32 %v1113, 7
        %v1115 = vsub.s32 0, %v1114
        %v1116 = vrot.slane %v1106, %v1115
        %v1117 = vmul.f32 %v1111, %v1116
        %v1118 = vmul.f32 %v1112, %v1116
        %v1119 = vadd.f32 %v1117, 0.0
        %v1120 = vadd.f32 %v1118, 0.0
        %v1121 = vrot.slane %v1103, 6
        %v1122 = vrot.slane %v1104, 6
        %v1123 = vsel %vm818, %v1121, %v1122
        %v1124 = vsel %vm818, %v1122, %v1121
        %v1125 = vsel %vm831, %v1124, 0.0
        %v1126 = vsel %vm832, %v1123, 0.0
        %v1127 = vlaneseq
        %v1128 = vshrl.u32 %v1127, 7
        %v1129 = vsub.s32 1, %v1128
        %v1130 = vrot.slane %v1106, %v1129
        %v1131 = vmul.f32 %v1125, %v1130
        %v1132 = vmul.f32 %v1126, %v1130
        %v1133 = vadd.f32 %v1119, %v1131
        %v1134 = vadd.f32 %v1120, %v1132
        %v1135 = vrot.slane %v1103, 7
        %v1136 = vrot.slane %v1104, 7
        %v1137 = vsel %vm845, %v1135, %v1136
        %v1138 = vsel %vm845, %v1136, %v1135
        %v1139 = vsel %vm858, %v1138, 0.0
        %v1140 = vsel %vm859, %v1137, 0.0
        %v1141 = vlaneseq
        %v1142 = vshrl.u32 %v1141, 7
        %v1143 = vsub.s32 2, %v1142
        %v1144 = vrot.slane %v1106, %v1143
        %v1145 = vmul.f32 %v1139, %v1144
        %v1146 = vmul.f32 %v1140, %v1144
        %v1147 = vadd.f32 %v1133, %v1145
        %v1148 = vadd.f32 %v1134, %v1146
        %v1149 = vsel %vm878, %v1103, 0.0
        %v1150 = vsel %vm879, %v1104, 0.0
        %v1151 = vlaneseq
        %v1152 = vshrl.u32 %v1151, 7
        %v1153 = vsub.s32 3, %v1152
        %v1154 = vrot.slane %v1106, %v1153
        %v1155 = vmul.f32 %v1149, %v1154
        %v1156 = vmul.f32 %v1150, %v1154
        %v1157 = vadd.f32 %v1147, %v1155
        %v1158 = vadd.f32 %v1148, %v1156
        %v1159 = vrot.slane %v1103, 1
        %v1160 = vrot.slane %v1104, 1
        %v1161 = vsel %vm892, %v1159, %v1160
        %v1162 = vsel %vm892, %v1160, %v1159
        %v1163 = vsel %vm905, %v1161, 0.0
        %v1164 = vsel %vm906, %v1162, 0.0
        %v1165 = vlaneseq
        %v1166 = vshrl.u32 %v1165, 7
        %v1167 = vsub.s32 4, %v1166
        %v1168 = vrot.slane %v1106, %v1167
        %v1169 = vmul.f32 %v1163, %v1168
        %v1170 = vmul.f32 %v1164, %v1168
        %v1171 = vadd.f32 %v1157, %v1169
        %v1172 = vadd.f32 %v1158, %v1170
        %v1173 = vrot.slane %v1103, 2
        %v1174 = vrot.slane %v1104, 2
        %v1175 = vsel %vm919, %v1173, %v1174
        %v1176 = vsel %vm919, %v1174, %v1173
        %v1177 = vsel %vm932, %v1175, 0.0
        %v1178 = vsel %vm933, %v1176, 0.0
        %v1179 = vlaneseq
        %v1180 = vshrl.u32 %v1179, 7
        %v1181 = vsub.s32 5, %v1180
        %v1182 = vrot.slane %v1106, %v1181
        %v1183 = vmul.f32 %v1177, %v1182
        %v1184 = vmul.f32 %v1178, %v1182
        %v1185 = vadd.f32 %v1171, %v1183
        %v1186 = vadd.f32 %v1172, %v1184
        %v1187 = vrot.slane %v1103, 3
        %v1188 = vrot.slane %v1104, 3
        %v1189 = vsel %vm946, %v1187, %v1188
        %v1190 = vsel %vm946, %v1188, %v1187
        %v1191 = vsel %vm959, %v1189, 0.0
        %v1192 = vsel %vm960, %v1190, 0.0
        %v1193 = vlaneseq
        %v1194 = vshrl.u32 %v1193, 7
        %v1195 = vsub.s32 6, %v1194
        %v1196 = vrot.slane %v1106, %v1195
        %v1197 = vmul.f32 %v1191, %v1196
        %v1198 = vmul.f32 %v1192, %v1196
        %v1199 = vadd.f32 %v1185, %v1197
        %v1200 = vadd.f32 %v1186, %v1198
        %s1201 = scalar_lea.vmem [#allocation8], 32
        %v1202 = vld [vmem:[%s1201] sm:$0xff]
        %v1203 = vld [vmem:[%s1201 + $0x8] sm:$0xff]
        %v1204 = vld [vmem:[%s1201 + $0x10] sm:$0xff]
        %v1205 = vld [vmem:[%s1201 + $0x18] sm:$0xff]
        %v1206 = vld [vmem:[#allocation10 + $0x1] sm:$0x1]
        %v1207 = vlaneseq
        %v1208 = vshrl.u32 %v1207, 7
        %v1209 = vsub.s32 0, %v1208
        %v1210 = vrot.slane %v1206, %v1209
        %v1212 = vsel %vm748, %v1199, 0
        %v1215 = vsel %vm748, %v1200, 0
        %1217 = vmatprep.subr.mxu0 0.0
        %1218 = vmatpush1.msra.mxu0 %v1202
        %1219 = vmatprep.subr.mxu0 0.0
        %1220 = vmatpush1.msra.mxu0 %v1203
        %1221 = vmatprep.subr.mxu0 0.0
        %1222 = vmatpush1.msra.mxu0 %v1204
        %1223 = vmatprep.subr.mxu0 0.0
        %1224 = vmatpush1.msra.mxu0 %v1205
        %1225 = vmatprep.subr.mxu0 0.0
        %1226 = vmatpush1.msra.mxu0 0.0
        %1227 = vmatprep.subr.mxu0 0.0
        %1228 = vmatpush1.msra.mxu0 0.0
        %1229 = vmatprep.subr.mxu0 0.0
        %1230 = vmatpush1.msra.mxu0 0.0
        %1231 = vmatprep.subr.mxu0 0.0
        %1232 = vmatpush1.msra.mxu0 0.0
        %1233 = vmatprep.subr.mxu0 0.0
        %1234 = vmatpush1.msra.mxu0 0.0
        %1235 = vmatprep.subr.mxu0 0.0
        %1236 = vmatpush1.msra.mxu0 0.0
        %1237 = vmatprep.subr.mxu0 0.0
        %1238 = vmatpush1.msra.mxu0 0.0
        %1239 = vmatprep.subr.mxu0 0.0
        %1240 = vmatpush1.msra.mxu0 0.0
        %1241 = vmatprep.subr.mxu0 0.0
        %1242 = vmatpush1.msra.mxu0 0.0
        %1243 = vmatprep.subr.mxu0 0.0
        %1244 = vmatpush1.msra.mxu0 0.0
        %1245 = vmatprep.subr.mxu0 0.0
        %1246 = vmatpush1.msra.mxu0 0.0
        %1247 = vmatprep.subr.mxu0 0.0
        %1248 = vmatpush1.msra.mxu0 0.0
        %1249 = vmatprep.subr.mxu0 0.0
        %1250 = vmatpush1.msra.mxu0 0.0
        %1251 = vmatprep.subr.mxu0 0.0
        %1252 = vmatpush1.msra.mxu0 0.0
        %1253 = vmatprep.subr.mxu0 0.0
        %1254 = vmatpush1.msra.mxu0 0.0
        %1255 = vmatprep.subr.mxu0 0.0
        %1256 = vmatpush1.msra.mxu0 0.0
        %1257 = vmatprep.subr.mxu0 0.0
        %1258 = vmatpush1.msra.mxu0 0.0
        %1259 = vmatprep.subr.mxu0 0.0
        %1260 = vmatpush1.msra.mxu0 0.0
        %1261 = vmatprep.subr.mxu0 0.0
        %1262 = vmatpush1.msra.mxu0 0.0
        %1263 = vmatprep.subr.mxu0 0.0
        %1264 = vmatpush1.msra.mxu0 0.0
        %1265 = vmatprep.subr.mxu0 0.0
        %1266 = vmatpush1.msra.mxu0 0.0
        %1267 = vmatprep.subr.mxu0 0.0
        %1268 = vmatpush1.msra.mxu0 0.0
        %1269 = vmatprep.subr.mxu0 0.0
        %1270 = vmatpush1.msra.mxu0 0.0
        %1271 = vmatprep.subr.mxu0 0.0
        %1272 = vmatpush1.msra.mxu0 0.0
        %1273 = vmatprep.subr.mxu0 0.0
        %1274 = vmatpush1.msra.mxu0 0.0
        %1275 = vmatprep.subr.mxu0 0.0
        %1276 = vmatpush1.msra.mxu0 0.0
        %1277 = vmatprep.subr.mxu0 0.0
        %1278 = vmatpush1.msra.mxu0 0.0
        %1279 = vmatprep.subr.mxu0 0.0
        %1280 = vmatpush1.msra.mxu0 0.0
        %1281 = vmatprep.mubr.f32.mxu0 0.0
        %1282 = vmatmul.mubr.f32.gmra.mrb[0].mxu0 %v1212
        %v1283 = vpop.f32.mrb[0].mxu0
        %v1284 = vadd.f32 %v1210, %v1283
        %v1285 = vpop.f32.mrb[0].mxu0
        %1286 = vmatprep.mubr.f32.mxu0 0.0
        %1287 = vmatmul.mubr.f32.gmra.mrb[0].mxu0 %v1215
        %v1288 = vpop.f32.mrb[0].mxu0
        %v1289 = vadd.f32 %v1210, %v1288
        %v1290 = vpop.f32.mrb[0].mxu0
        %1291 = vdwg.mxu0
        %v1292 = vmax.f32 %v1284, 0.0
        %v1293 = vmax.f32 %v1289, 0.0
        %v1294 = vadd.f32 %v1292, %v1063
        %v1295 = vadd.f32 %v1293, %v1064
        %v1296 = vld [vmem:[#allocation5 + $0x2] sm:$0x1]
        %v1297 = vld [vmem:[#allocation7 + $0x2] sm:$0x1]
        %v1298 = vsel %vm748, %v1294, 0.0
        %1299 = vadd.xlane.f32.xlu0 %v1298
        %v1300 = vpop.xlane.xlu0 %1299
        %v1301 = vsel %vm748, %v1295, 0.0
        %1302 = vadd.xlane.f32.xlu0 %v1301
        %v1303 = vpop.xlane.xlu0 %1302
        %v1304 = vmul.f32 %v1300, %v755
        %v1305 = vmul.f32 %v1303, %v755
        %v1306 = vsub.f32 %v1294, %v1304
        %v1307 = vsub.f32 %v1295, %v1305
        %v1308 = vmul.f32 %v1306, %v1306
        %v1309 = vmul.f32 %v1307, %v1307
        %v1310 = vsel %vm748, %v1308, 0.0
        %1311 = vadd.xlane.f32.xlu0 %v1310
        %v1312 = vpop.xlane.xlu0 %1311
        %v1313 = vsel %vm748, %v1309, 0.0
        %1314 = vadd.xlane.f32.xlu0 %v1313
        %v1315 = vpop.xlane.xlu0 %1314
        %v1316 = vmul.f32 %v1312, %v755
        %v1317 = vmul.f32 %v1315, %v755
        %v1318 = vadd.f32 %v1316, 1e-06
        %v1319 = vadd.f32 %v1317, 1e-06
        %v1320 = vrsqrt.pop %v1318
        %v1321 = vrsqrt.pop %v1319
        %v1322 = vmul.f32 %v1306, %v1320
        %v1323 = vmul.f32 %v1307, %v1321
        %v1324 = vlaneseq
        %v1325 = vshrl.u32 %v1324, 7
        %v1326 = vsub.s32 0, %v1325
        %v1327 = vrot.slane %v1296, %v1326
        %v1328 = vmul.f32 %v1322, %v1327
        %v1329 = vmul.f32 %v1323, %v1327
        %v1330 = vlaneseq
        %v1331 = vshrl.u32 %v1330, 7
        %v1332 = vsub.s32 0, %v1331
        %v1333 = vrot.slane %v1297, %v1332
        %v1334 = vadd.f32 %v1328, %v1333
        %v1335 = vadd.f32 %v1329, %v1333
        %s1336 = scalar_lea.vmem %s4, 16
        %v1337 = vld [vmem:[%s1336] sm:$0x7f]
        %v1338 = vrot.slane %v1334, 5
        %v1339 = vrot.slane %v1335, 5
        %v1340 = vsel %vm791, %v1338, %v1339
        %v1341 = vsel %vm791, %v1339, %v1338
        %v1342 = vsel %vm804, %v1341, 0.0
        %v1343 = vsel %vm805, %v1340, 0.0
        %v1344 = vlaneseq
        %v1345 = vshrl.u32 %v1344, 7
        %v1346 = vsub.s32 0, %v1345
        %v1347 = vrot.slane %v1337, %v1346
        %v1348 = vmul.f32 %v1342, %v1347
        %v1349 = vmul.f32 %v1343, %v1347
        %v1350 = vadd.f32 %v1348, 0.0
        %v1351 = vadd.f32 %v1349, 0.0
        %v1352 = vrot.slane %v1334, 6
        %v1353 = vrot.slane %v1335, 6
        %v1354 = vsel %vm818, %v1352, %v1353
        %v1355 = vsel %vm818, %v1353, %v1352
        %v1356 = vsel %vm831, %v1355, 0.0
        %v1357 = vsel %vm832, %v1354, 0.0
        %v1358 = vlaneseq
        %v1359 = vshrl.u32 %v1358, 7
        %v1360 = vsub.s32 1, %v1359
        %v1361 = vrot.slane %v1337, %v1360
        %v1362 = vmul.f32 %v1356, %v1361
        %v1363 = vmul.f32 %v1357, %v1361
        %v1364 = vadd.f32 %v1350, %v1362
        %v1365 = vadd.f32 %v1351, %v1363
        %v1366 = vrot.slane %v1334, 7
        %v1367 = vrot.slane %v1335, 7
        %v1368 = vsel %vm845, %v1366, %v1367
        %v1369 = vsel %vm845, %v1367, %v1366
        %v1370 = vsel %vm858, %v1369, 0.0
        %v1371 = vsel %vm859, %v1368, 0.0
        %v1372 = vlaneseq
        %v1373 = vshrl.u32 %v1372, 7
        %v1374 = vsub.s32 2, %v1373
        %v1375 = vrot.slane %v1337, %v1374
        %v1376 = vmul.f32 %v1370, %v1375
        %v1377 = vmul.f32 %v1371, %v1375
        %v1378 = vadd.f32 %v1364, %v1376
        %v1379 = vadd.f32 %v1365, %v1377
        %v1380 = vsel %vm878, %v1334, 0.0
        %v1381 = vsel %vm879, %v1335, 0.0
        %v1382 = vlaneseq
        %v1383 = vshrl.u32 %v1382, 7
        %v1384 = vsub.s32 3, %v1383
        %v1385 = vrot.slane %v1337, %v1384
        %v1386 = vmul.f32 %v1380, %v1385
        %v1387 = vmul.f32 %v1381, %v1385
        %v1388 = vadd.f32 %v1378, %v1386
        %v1389 = vadd.f32 %v1379, %v1387
        %v1390 = vrot.slane %v1334, 1
        %v1391 = vrot.slane %v1335, 1
        %v1392 = vsel %vm892, %v1390, %v1391
        %v1393 = vsel %vm892, %v1391, %v1390
        %v1394 = vsel %vm905, %v1392, 0.0
        %v1395 = vsel %vm906, %v1393, 0.0
        %v1396 = vlaneseq
        %v1397 = vshrl.u32 %v1396, 7
        %v1398 = vsub.s32 4, %v1397
        %v1399 = vrot.slane %v1337, %v1398
        %v1400 = vmul.f32 %v1394, %v1399
        %v1401 = vmul.f32 %v1395, %v1399
        %v1402 = vadd.f32 %v1388, %v1400
        %v1403 = vadd.f32 %v1389, %v1401
        %v1404 = vrot.slane %v1334, 2
        %v1405 = vrot.slane %v1335, 2
        %v1406 = vsel %vm919, %v1404, %v1405
        %v1407 = vsel %vm919, %v1405, %v1404
        %v1408 = vsel %vm932, %v1406, 0.0
        %v1409 = vsel %vm933, %v1407, 0.0
        %v1410 = vlaneseq
        %v1411 = vshrl.u32 %v1410, 7
        %v1412 = vsub.s32 5, %v1411
        %v1413 = vrot.slane %v1337, %v1412
        %v1414 = vmul.f32 %v1408, %v1413
        %v1415 = vmul.f32 %v1409, %v1413
        %v1416 = vadd.f32 %v1402, %v1414
        %v1417 = vadd.f32 %v1403, %v1415
        %v1418 = vrot.slane %v1334, 3
        %v1419 = vrot.slane %v1335, 3
        %v1420 = vsel %vm946, %v1418, %v1419
        %v1421 = vsel %vm946, %v1419, %v1418
        %v1422 = vsel %vm959, %v1420, 0.0
        %v1423 = vsel %vm960, %v1421, 0.0
        %v1424 = vlaneseq
        %v1425 = vshrl.u32 %v1424, 7
        %v1426 = vsub.s32 6, %v1425
        %v1427 = vrot.slane %v1337, %v1426
        %v1428 = vmul.f32 %v1422, %v1427
        %v1429 = vmul.f32 %v1423, %v1427
        %v1430 = vadd.f32 %v1416, %v1428
        %v1431 = vadd.f32 %v1417, %v1429
        %s1432 = scalar_lea.vmem [#allocation8], 64
        %v1433 = vld [vmem:[%s1432] sm:$0xff]
        %v1434 = vld [vmem:[%s1432 + $0x8] sm:$0xff]
        %v1435 = vld [vmem:[%s1432 + $0x10] sm:$0xff]
        %v1436 = vld [vmem:[%s1432 + $0x18] sm:$0xff]
        %v1437 = vld [vmem:[#allocation10 + $0x2] sm:$0x1]
        %v1438 = vlaneseq
        %v1439 = vshrl.u32 %v1438, 7
        %v1440 = vsub.s32 0, %v1439
        %v1441 = vrot.slane %v1437, %v1440
        %v1443 = vsel %vm748, %v1430, 0
        %v1446 = vsel %vm748, %v1431, 0
        %1448 = vmatprep.subr.mxu0 0.0
        %1449 = vmatpush1.msra.mxu0 %v1433
        %1450 = vmatprep.subr.mxu0 0.0
        %1451 = vmatpush1.msra.mxu0 %v1434
        %1452 = vmatprep.subr.mxu0 0.0
        %1453 = vmatpush1.msra.mxu0 %v1435
        %1454 = vmatprep.subr.mxu0 0.0
        %1455 = vmatpush1.msra.mxu0 %v1436
        %1456 = vmatprep.subr.mxu0 0.0
        %1457 = vmatpush1.msra.mxu0 0.0
        %1458 = vmatprep.subr.mxu0 0.0
        %1459 = vmatpush1.msra.mxu0 0.0
        %1460 = vmatprep.subr.mxu0 0.0
        %1461 = vmatpush1.msra.mxu0 0.0
        %1462 = vmatprep.subr.mxu0 0.0
        %1463 = vmatpush1.msra.mxu0 0.0
        %1464 = vmatprep.subr.mxu0 0.0
        %1465 = vmatpush1.msra.mxu0 0.0
        %1466 = vmatprep.subr.mxu0 0.0
        %1467 = vmatpush1.msra.mxu0 0.0
        %1468 = vmatprep.subr.mxu0 0.0
        %1469 = vmatpush1.msra.mxu0 0.0
        %1470 = vmatprep.subr.mxu0 0.0
        %1471 = vmatpush1.msra.mxu0 0.0
        %1472 = vmatprep.subr.mxu0 0.0
        %1473 = vmatpush1.msra.mxu0 0.0
        %1474 = vmatprep.subr.mxu0 0.0
        %1475 = vmatpush1.msra.mxu0 0.0
        %1476 = vmatprep.subr.mxu0 0.0
        %1477 = vmatpush1.msra.mxu0 0.0
        %1478 = vmatprep.subr.mxu0 0.0
        %1479 = vmatpush1.msra.mxu0 0.0
        %1480 = vmatprep.subr.mxu0 0.0
        %1481 = vmatpush1.msra.mxu0 0.0
        %1482 = vmatprep.subr.mxu0 0.0
        %1483 = vmatpush1.msra.mxu0 0.0
        %1484 = vmatprep.subr.mxu0 0.0
        %1485 = vmatpush1.msra.mxu0 0.0
        %1486 = vmatprep.subr.mxu0 0.0
        %1487 = vmatpush1.msra.mxu0 0.0
        %1488 = vmatprep.subr.mxu0 0.0
        %1489 = vmatpush1.msra.mxu0 0.0
        %1490 = vmatprep.subr.mxu0 0.0
        %1491 = vmatpush1.msra.mxu0 0.0
        %1492 = vmatprep.subr.mxu0 0.0
        %1493 = vmatpush1.msra.mxu0 0.0
        %1494 = vmatprep.subr.mxu0 0.0
        %1495 = vmatpush1.msra.mxu0 0.0
        %1496 = vmatprep.subr.mxu0 0.0
        %1497 = vmatpush1.msra.mxu0 0.0
        %1498 = vmatprep.subr.mxu0 0.0
        %1499 = vmatpush1.msra.mxu0 0.0
        %1500 = vmatprep.subr.mxu0 0.0
        %1501 = vmatpush1.msra.mxu0 0.0
        %1502 = vmatprep.subr.mxu0 0.0
        %1503 = vmatpush1.msra.mxu0 0.0
        %1504 = vmatprep.subr.mxu0 0.0
        %1505 = vmatpush1.msra.mxu0 0.0
        %1506 = vmatprep.subr.mxu0 0.0
        %1507 = vmatpush1.msra.mxu0 0.0
        %1508 = vmatprep.subr.mxu0 0.0
        %1509 = vmatpush1.msra.mxu0 0.0
        %1510 = vmatprep.subr.mxu0 0.0
        %1511 = vmatpush1.msra.mxu0 0.0
        %1512 = vmatprep.mubr.f32.mxu0 0.0
        %1513 = vmatmul.mubr.f32.gmra.mrb[0].mxu0 %v1443
        %v1514 = vpop.f32.mrb[0].mxu0
        %v1515 = vadd.f32 %v1441, %v1514
        %v1516 = vpop.f32.mrb[0].mxu0
        %1517 = vmatprep.mubr.f32.mxu0 0.0
        %1518 = vmatmul.mubr.f32.gmra.mrb[0].mxu0 %v1446
        %v1519 = vpop.f32.mrb[0].mxu0
        %v1520 = vadd.f32 %v1441, %v1519
        %v1521 = vpop.f32.mrb[0].mxu0
        %1522 = vdwg.mxu0
        %v1523 = vmax.f32 %v1515, 0.0
        %v1524 = vmax.f32 %v1520, 0.0
        %v1525 = vadd.f32 %v1523, %v1294
        %v1526 = vadd.f32 %v1524, %v1295
        %v1527 = vld [vmem:[#allocation5 + $0x3] sm:$0x1]
        %v1528 = vld [vmem:[#allocation7 + $0x3] sm:$0x1]
        %v1529 = vsel %vm748, %v1525, 0.0
        %1530 = vadd.xlane.f32.xlu0 %v1529
        %v1531 = vpop.xlane.xlu0 %1530
        %v1532 = vsel %vm748, %v1526, 0.0
        %1533 = vadd.xlane.f32.xlu0 %v1532
        %v1534 = vpop.xlane.xlu0 %1533
        %v1535 = vmul.f32 %v1531, %v755
        %v1536 = vmul.f32 %v1534, %v755
        %v1537 = vsub.f32 %v1525, %v1535
        %v1538 = vsub.f32 %v1526, %v1536
        %v1539 = vmul.f32 %v1537, %v1537
        %v1540 = vmul.f32 %v1538, %v1538
        %v1541 = vsel %vm748, %v1539, 0.0
        %1542 = vadd.xlane.f32.xlu0 %v1541
        %v1543 = vpop.xlane.xlu0 %1542
        %v1544 = vsel %vm748, %v1540, 0.0
        %1545 = vadd.xlane.f32.xlu0 %v1544
        %v1546 = vpop.xlane.xlu0 %1545
        %v1547 = vmul.f32 %v1543, %v755
        %v1548 = vmul.f32 %v1546, %v755
        %v1549 = vadd.f32 %v1547, 1e-06
        %v1550 = vadd.f32 %v1548, 1e-06
        %v1551 = vrsqrt.pop %v1549
        %v1552 = vrsqrt.pop %v1550
        %v1553 = vmul.f32 %v1537, %v1551
        %v1554 = vmul.f32 %v1538, %v1552
        %v1555 = vlaneseq
        %v1556 = vshrl.u32 %v1555, 7
        %v1557 = vsub.s32 0, %v1556
        %v1558 = vrot.slane %v1527, %v1557
        %v1559 = vmul.f32 %v1553, %v1558
        %v1560 = vmul.f32 %v1554, %v1558
        %v1561 = vlaneseq
        %v1562 = vshrl.u32 %v1561, 7
        %v1563 = vsub.s32 0, %v1562
        %v1564 = vrot.slane %v1528, %v1563
        %v1565 = vadd.f32 %v1559, %v1564
        %v1566 = vadd.f32 %v1560, %v1564
        %s1567 = scalar_lea.vmem %s4, 24
        %v1568 = vld [vmem:[%s1567] sm:$0x7f]
        %v1569 = vrot.slane %v1565, 5
        %v1570 = vrot.slane %v1566, 5
        %v1571 = vsel %vm791, %v1569, %v1570
        %v1572 = vsel %vm791, %v1570, %v1569
        %v1573 = vsel %vm804, %v1572, 0.0
        %v1574 = vsel %vm805, %v1571, 0.0
        %v1575 = vlaneseq
        %v1576 = vshrl.u32 %v1575, 7
        %v1577 = vsub.s32 0, %v1576
        %v1578 = vrot.slane %v1568, %v1577
        %v1579 = vmul.f32 %v1573, %v1578
        %v1580 = vmul.f32 %v1574, %v1578
        %v1581 = vadd.f32 %v1579, 0.0
        %v1582 = vadd.f32 %v1580, 0.0
        %v1583 = vrot.slane %v1565, 6
        %v1584 = vrot.slane %v1566, 6
        %v1585 = vsel %vm818, %v1583, %v1584
        %v1586 = vsel %vm818, %v1584, %v1583
        %v1587 = vsel %vm831, %v1586, 0.0
        %v1588 = vsel %vm832, %v1585, 0.0
        %v1589 = vlaneseq
        %v1590 = vshrl.u32 %v1589, 7
        %v1591 = vsub.s32 1, %v1590
        %v1592 = vrot.slane %v1568, %v1591
        %v1593 = vmul.f32 %v1587, %v1592
        %v1594 = vmul.f32 %v1588, %v1592
        %v1595 = vadd.f32 %v1581, %v1593
        %v1596 = vadd.f32 %v1582, %v1594
        %v1597 = vrot.slane %v1565, 7
        %v1598 = vrot.slane %v1566, 7
        %v1599 = vsel %vm845, %v1597, %v1598
        %v1600 = vsel %vm845, %v1598, %v1597
        %v1601 = vsel %vm858, %v1600, 0.0
        %v1602 = vsel %vm859, %v1599, 0.0
        %v1603 = vlaneseq
        %v1604 = vshrl.u32 %v1603, 7
        %v1605 = vsub.s32 2, %v1604
        %v1606 = vrot.slane %v1568, %v1605
        %v1607 = vmul.f32 %v1601, %v1606
        %v1608 = vmul.f32 %v1602, %v1606
        %v1609 = vadd.f32 %v1595, %v1607
        %v1610 = vadd.f32 %v1596, %v1608
        %v1611 = vsel %vm878, %v1565, 0.0
        %v1612 = vsel %vm879, %v1566, 0.0
        %v1613 = vlaneseq
        %v1614 = vshrl.u32 %v1613, 7
        %v1615 = vsub.s32 3, %v1614
        %v1616 = vrot.slane %v1568, %v1615
        %v1617 = vmul.f32 %v1611, %v1616
        %v1618 = vmul.f32 %v1612, %v1616
        %v1619 = vadd.f32 %v1609, %v1617
        %v1620 = vadd.f32 %v1610, %v1618
        %v1621 = vrot.slane %v1565, 1
        %v1622 = vrot.slane %v1566, 1
        %v1623 = vsel %vm892, %v1621, %v1622
        %v1624 = vsel %vm892, %v1622, %v1621
        %v1625 = vsel %vm905, %v1623, 0.0
        %v1626 = vsel %vm906, %v1624, 0.0
        %v1627 = vlaneseq
        %v1628 = vshrl.u32 %v1627, 7
        %v1629 = vsub.s32 4, %v1628
        %v1630 = vrot.slane %v1568, %v1629
        %v1631 = vmul.f32 %v1625, %v1630
        %v1632 = vmul.f32 %v1626, %v1630
        %v1633 = vadd.f32 %v1619, %v1631
        %v1634 = vadd.f32 %v1620, %v1632
        %v1635 = vrot.slane %v1565, 2
        %v1636 = vrot.slane %v1566, 2
        %v1637 = vsel %vm919, %v1635, %v1636
        %v1638 = vsel %vm919, %v1636, %v1635
        %v1639 = vsel %vm932, %v1637, 0.0
        %v1640 = vsel %vm933, %v1638, 0.0
        %v1641 = vlaneseq
        %v1642 = vshrl.u32 %v1641, 7
        %v1643 = vsub.s32 5, %v1642
        %v1644 = vrot.slane %v1568, %v1643
        %v1645 = vmul.f32 %v1639, %v1644
        %v1646 = vmul.f32 %v1640, %v1644
        %v1647 = vadd.f32 %v1633, %v1645
        %v1648 = vadd.f32 %v1634, %v1646
        %v1649 = vrot.slane %v1565, 3
        %v1650 = vrot.slane %v1566, 3
        %v1651 = vsel %vm946, %v1649, %v1650
        %v1652 = vsel %vm946, %v1650, %v1649
        %v1653 = vsel %vm959, %v1651, 0.0
        %v1654 = vsel %vm960, %v1652, 0.0
        %v1655 = vlaneseq
        %v1656 = vshrl.u32 %v1655, 7
        %v1657 = vsub.s32 6, %v1656
        %v1658 = vrot.slane %v1568, %v1657
        %v1659 = vmul.f32 %v1653, %v1658
        %v1660 = vmul.f32 %v1654, %v1658
        %v1661 = vadd.f32 %v1647, %v1659
        %v1662 = vadd.f32 %v1648, %v1660
        %s1663 = scalar_lea.vmem [#allocation8], 96
        %v1664 = vld [vmem:[%s1663] sm:$0xff]
        %v1665 = vld [vmem:[%s1663 + $0x8] sm:$0xff]
        %v1666 = vld [vmem:[%s1663 + $0x10] sm:$0xff]
        %v1667 = vld [vmem:[%s1663 + $0x18] sm:$0xff]
        %v1668 = vld [vmem:[#allocation10 + $0x3] sm:$0x1]
        %v1669 = vlaneseq
        %v1670 = vshrl.u32 %v1669, 7
        %v1671 = vsub.s32 0, %v1670
        %v1672 = vrot.slane %v1668, %v1671
        %v1674 = vsel %vm748, %v1661, 0
        %v1677 = vsel %vm748, %v1662, 0
        %1679 = vmatprep.subr.mxu0 0.0
        %1680 = vmatpush1.msra.mxu0 %v1664
        %1681 = vmatprep.subr.mxu0 0.0
        %1682 = vmatpush1.msra.mxu0 %v1665
        %1683 = vmatprep.subr.mxu0 0.0
        %1684 = vmatpush1.msra.mxu0 %v1666
        %1685 = vmatprep.subr.mxu0 0.0
        %1686 = vmatpush1.msra.mxu0 %v1667
        %1687 = vmatprep.subr.mxu0 0.0
        %1688 = vmatpush1.msra.mxu0 0.0
        %1689 = vmatprep.subr.mxu0 0.0
        %1690 = vmatpush1.msra.mxu0 0.0
        %1691 = vmatprep.subr.mxu0 0.0
        %1692 = vmatpush1.msra.mxu0 0.0
        %1693 = vmatprep.subr.mxu0 0.0
        %1694 = vmatpush1.msra.mxu0 0.0
        %1695 = vmatprep.subr.mxu0 0.0
        %1696 = vmatpush1.msra.mxu0 0.0
        %1697 = vmatprep.subr.mxu0 0.0
        %1698 = vmatpush1.msra.mxu0 0.0
        %1699 = vmatprep.subr.mxu0 0.0
        %1700 = vmatpush1.msra.mxu0 0.0
        %1701 = vmatprep.subr.mxu0 0.0
        %1702 = vmatpush1.msra.mxu0 0.0
        %1703 = vmatprep.subr.mxu0 0.0
        %1704 = vmatpush1.msra.mxu0 0.0
        %1705 = vmatprep.subr.mxu0 0.0
        %1706 = vmatpush1.msra.mxu0 0.0
        %1707 = vmatprep.subr.mxu0 0.0
        %1708 = vmatpush1.msra.mxu0 0.0
        %1709 = vmatprep.subr.mxu0 0.0
        %1710 = vmatpush1.msra.mxu0 0.0
        %1711 = vmatprep.subr.mxu0 0.0
        %1712 = vmatpush1.msra.mxu0 0.0
        %1713 = vmatprep.subr.mxu0 0.0
        %1714 = vmatpush1.msra.mxu0 0.0
        %1715 = vmatprep.subr.mxu0 0.0
        %1716 = vmatpush1.msra.mxu0 0.0
        %1717 = vmatprep.subr.mxu0 0.0
        %1718 = vmatpush1.msra.mxu0 0.0
        %1719 = vmatprep.subr.mxu0 0.0
        %1720 = vmatpush1.msra.mxu0 0.0
        %1721 = vmatprep.subr.mxu0 0.0
        %1722 = vmatpush1.msra.mxu0 0.0
        %1723 = vmatprep.subr.mxu0 0.0
        %1724 = vmatpush1.msra.mxu0 0.0
        %1725 = vmatprep.subr.mxu0 0.0
        %1726 = vmatpush1.msra.mxu0 0.0
        %1727 = vmatprep.subr.mxu0 0.0
        %1728 = vmatpush1.msra.mxu0 0.0
        %1729 = vmatprep.subr.mxu0 0.0
        %1730 = vmatpush1.msra.mxu0 0.0
        %1731 = vmatprep.subr.mxu0 0.0
        %1732 = vmatpush1.msra.mxu0 0.0
        %1733 = vmatprep.subr.mxu0 0.0
        %1734 = vmatpush1.msra.mxu0 0.0
        %1735 = vmatprep.subr.mxu0 0.0
        %1736 = vmatpush1.msra.mxu0 0.0
        %1737 = vmatprep.subr.mxu0 0.0
        %1738 = vmatpush1.msra.mxu0 0.0
        %1739 = vmatprep.subr.mxu0 0.0
        %1740 = vmatpush1.msra.mxu0 0.0
        %1741 = vmatprep.subr.mxu0 0.0
        %1742 = vmatpush1.msra.mxu0 0.0
        %1743 = vmatprep.mubr.f32.mxu0 0.0
        %1744 = vmatmul.mubr.f32.gmra.mrb[0].mxu0 %v1674
        %v1745 = vpop.f32.mrb[0].mxu0
        %v1746 = vadd.f32 %v1672, %v1745
        %v1747 = vpop.f32.mrb[0].mxu0
        %1748 = vmatprep.mubr.f32.mxu0 0.0
        %1749 = vmatmul.mubr.f32.gmra.mrb[0].mxu0 %v1677
        %v1750 = vpop.f32.mrb[0].mxu0
        %v1751 = vadd.f32 %v1672, %v1750
        %v1752 = vpop.f32.mrb[0].mxu0
        %1753 = vdwg.mxu0
        %v1754 = vmax.f32 %v1746, 0.0
        %v1755 = vmax.f32 %v1751, 0.0
        %v1756 = vadd.f32 %v1754, %v1525
        %v1757 = vadd.f32 %v1755, %v1526
        %v1758 = vld [vmem:[%s7] sm:$0x1]
        %v1759 = vld [vmem:[#allocation11] sm:$0x1]
        %v1760 = vsel %vm748, %v1756, 0.0
        %1761 = vadd.xlane.f32.xlu0 %v1760
        %v1762 = vpop.xlane.xlu0 %1761
        %v1763 = vsel %vm748, %v1757, 0.0
        %1764 = vadd.xlane.f32.xlu0 %v1763
        %v1765 = vpop.xlane.xlu0 %1764
        %v1766 = vmul.f32 %v1762, %v755
        %v1767 = vmul.f32 %v1765, %v755
        %v1768 = vsub.f32 %v1756, %v1766
        %v1769 = vsub.f32 %v1757, %v1767
        %v1770 = vmul.f32 %v1768, %v1768
        %v1771 = vmul.f32 %v1769, %v1769
        %v1772 = vsel %vm748, %v1770, 0.0
        %1773 = vadd.xlane.f32.xlu0 %v1772
        %v1774 = vpop.xlane.xlu0 %1773
        %v1775 = vsel %vm748, %v1771, 0.0
        %1776 = vadd.xlane.f32.xlu0 %v1775
        %v1777 = vpop.xlane.xlu0 %1776
        %v1778 = vmul.f32 %v1774, %v755
        %v1779 = vmul.f32 %v1777, %v755
        %v1780 = vadd.f32 %v1778, 1e-06
        %v1781 = vadd.f32 %v1779, 1e-06
        %v1782 = vrsqrt.pop %v1780
        %v1783 = vrsqrt.pop %v1781
        %v1784 = vmul.f32 %v1768, %v1782
        %v1785 = vmul.f32 %v1769, %v1783
        %v1787 = vlaneseq
        %v1788 = vshrl.u32 %v1787, 7
        %v1789 = vsub.s32 0, %v1788
        %v1790 = vrot.slane %v1758, %v1789
        %v1792 = vmul.f32 %v1784, %v1790
        %v1793 = vmul.f32 %v1785, %v1790
        %v1795 = vlaneseq
        %v1796 = vshrl.u32 %v1795, 7
        %v1797 = vsub.s32 0, %v1796
        %v1798 = vrot.slane %v1759, %v1797
        %v1800 = vadd.f32 %v1792, %v1798
        %v1801 = vadd.f32 %v1793, %v1798
        %v1802 = vld [vmem:[%s9] sm:$0xff]
        %v1803 = vld [vmem:[%s9 + $0x8] sm:$0xff]
        %v1804 = vld [vmem:[%s9 + $0x10] sm:$0xff]
        %v1805 = vld [vmem:[%s9 + $0x18] sm:$0xff]
        %v1806 = vld [vmem:[#allocation13] sm:$0x1]
        %v1808 = vlaneseq
        %v1809 = vshrl.u32 %v1808, 7
        %v1810 = vsub.s32 0, %v1809
        %v1811 = vrot.slane %v1806, %v1810
        %v1814 = vsel %vm748, %v1800, 0
        %v1817 = vsel %vm748, %v1801, 0
        %1819 = vmatprep.subr.mxu0 0.0
        %1820 = vmatpush1.msra.mxu0 %v1802
        %1821 = vmatprep.subr.mxu0 0.0
        %1822 = vmatpush1.msra.mxu0 %v1803
        %1823 = vmatprep.subr.mxu0 0.0
        %1824 = vmatpush1.msra.mxu0 %v1804
        %1825 = vmatprep.subr.mxu0 0.0
        %1826 = vmatpush1.msra.mxu0 %v1805
        %1827 = vmatprep.subr.mxu0 0.0
        %1828 = vmatpush1.msra.mxu0 0.0
        %1829 = vmatprep.subr.mxu0 0.0
        %1830 = vmatpush1.msra.mxu0 0.0
        %1831 = vmatprep.subr.mxu0 0.0
        %1832 = vmatpush1.msra.mxu0 0.0
        %1833 = vmatprep.subr.mxu0 0.0
        %1834 = vmatpush1.msra.mxu0 0.0
        %1835 = vmatprep.subr.mxu0 0.0
        %1836 = vmatpush1.msra.mxu0 0.0
        %1837 = vmatprep.subr.mxu0 0.0
        %1838 = vmatpush1.msra.mxu0 0.0
        %1839 = vmatprep.subr.mxu0 0.0
        %1840 = vmatpush1.msra.mxu0 0.0
        %1841 = vmatprep.subr.mxu0 0.0
        %1842 = vmatpush1.msra.mxu0 0.0
        %1843 = vmatprep.subr.mxu0 0.0
        %1844 = vmatpush1.msra.mxu0 0.0
        %1845 = vmatprep.subr.mxu0 0.0
        %1846 = vmatpush1.msra.mxu0 0.0
        %1847 = vmatprep.subr.mxu0 0.0
        %1848 = vmatpush1.msra.mxu0 0.0
        %1849 = vmatprep.subr.mxu0 0.0
        %1850 = vmatpush1.msra.mxu0 0.0
        %1851 = vmatprep.subr.mxu0 0.0
        %1852 = vmatpush1.msra.mxu0 0.0
        %1853 = vmatprep.subr.mxu0 0.0
        %1854 = vmatpush1.msra.mxu0 0.0
        %1855 = vmatprep.subr.mxu0 0.0
        %1856 = vmatpush1.msra.mxu0 0.0
        %1857 = vmatprep.subr.mxu0 0.0
        %1858 = vmatpush1.msra.mxu0 0.0
        %1859 = vmatprep.subr.mxu0 0.0
        %1860 = vmatpush1.msra.mxu0 0.0
        %1861 = vmatprep.subr.mxu0 0.0
        %1862 = vmatpush1.msra.mxu0 0.0
        %1863 = vmatprep.subr.mxu0 0.0
        %1864 = vmatpush1.msra.mxu0 0.0
        %1865 = vmatprep.subr.mxu0 0.0
        %1866 = vmatpush1.msra.mxu0 0.0
        %1867 = vmatprep.subr.mxu0 0.0
        %1868 = vmatpush1.msra.mxu0 0.0
        %1869 = vmatprep.subr.mxu0 0.0
        %1870 = vmatpush1.msra.mxu0 0.0
        %1871 = vmatprep.subr.mxu0 0.0
        %1872 = vmatpush1.msra.mxu0 0.0
        %1873 = vmatprep.subr.mxu0 0.0
        %1874 = vmatpush1.msra.mxu0 0.0
        %1875 = vmatprep.subr.mxu0 0.0
        %1876 = vmatpush1.msra.mxu0 0.0
        %1877 = vmatprep.subr.mxu0 0.0
        %1878 = vmatpush1.msra.mxu0 0.0
        %1879 = vmatprep.subr.mxu0 0.0
        %1880 = vmatpush1.msra.mxu0 0.0
        %1881 = vmatprep.subr.mxu0 0.0
        %1882 = vmatpush1.msra.mxu0 0.0
        %1883 = vmatprep.mubr.f32.mxu0 0.0
        %1884 = vmatmul.mubr.f32.gmra.mrb[0].mxu0 %v1814
        %v1885 = vpop.f32.mrb[0].mxu0
        %v1886 = vadd.f32 %v1811, %v1885
        %v1887 = vpop.f32.mrb[0].mxu0
        %1888 = vmatprep.mubr.f32.mxu0 0.0
        %1889 = vmatmul.mubr.f32.gmra.mrb[0].mxu0 %v1817
        %v1890 = vpop.f32.mrb[0].mxu0
        %v1891 = vadd.f32 %v1811, %v1890
        %v1892 = vpop.f32.mrb[0].mxu0
        %1893 = vdwg.mxu0
        %v1894 = vld [vmem:[%s11] sm:$0xff]
        %v1895 = vld [vmem:[%s11 + $0x8] sm:$0xff]
        %v1896 = vld [vmem:[%s11 + $0x10] sm:$0xff]
        %v1897 = vld [vmem:[%s11 + $0x18] sm:$0xff]
        %v1898 = vld [vmem:[%s12] sm:$0x1]
        %v1900 = vlaneseq
        %v1901 = vshrl.u32 %v1900, 7
        %v1902 = vsub.s32 0, %v1901
        %v1903 = vrot.slane %v1898, %v1902
        %1905 = vmatprep.subr.mxu0 0.0
        %1906 = vmatpush1.msra.mxu0 %v1894
        %1907 = vmatprep.subr.mxu0 0.0
        %1908 = vmatpush1.msra.mxu0 %v1895
        %1909 = vmatprep.subr.mxu0 0.0
        %1910 = vmatpush1.msra.mxu0 %v1896
        %1911 = vmatprep.subr.mxu0 0.0
        %1912 = vmatpush1.msra.mxu0 %v1897
        %1913 = vmatprep.subr.mxu0 0.0
        %1914 = vmatpush1.msra.mxu0 0.0
        %1915 = vmatprep.subr.mxu0 0.0
        %1916 = vmatpush1.msra.mxu0 0.0
        %1917 = vmatprep.subr.mxu0 0.0
        %1918 = vmatpush1.msra.mxu0 0.0
        %1919 = vmatprep.subr.mxu0 0.0
        %1920 = vmatpush1.msra.mxu0 0.0
        %1921 = vmatprep.subr.mxu0 0.0
        %1922 = vmatpush1.msra.mxu0 0.0
        %1923 = vmatprep.subr.mxu0 0.0
        %1924 = vmatpush1.msra.mxu0 0.0
        %1925 = vmatprep.subr.mxu0 0.0
        %1926 = vmatpush1.msra.mxu0 0.0
        %1927 = vmatprep.subr.mxu0 0.0
        %1928 = vmatpush1.msra.mxu0 0.0
        %1929 = vmatprep.subr.mxu0 0.0
        %1930 = vmatpush1.msra.mxu0 0.0
        %1931 = vmatprep.subr.mxu0 0.0
        %1932 = vmatpush1.msra.mxu0 0.0
        %1933 = vmatprep.subr.mxu0 0.0
        %1934 = vmatpush1.msra.mxu0 0.0
        %1935 = vmatprep.subr.mxu0 0.0
        %1936 = vmatpush1.msra.mxu0 0.0
        %1937 = vmatprep.subr.mxu0 0.0
        %1938 = vmatpush1.msra.mxu0 0.0
        %1939 = vmatprep.subr.mxu0 0.0
        %1940 = vmatpush1.msra.mxu0 0.0
        %1941 = vmatprep.subr.mxu0 0.0
        %1942 = vmatpush1.msra.mxu0 0.0
        %1943 = vmatprep.subr.mxu0 0.0
        %1944 = vmatpush1.msra.mxu0 0.0
        %1945 = vmatprep.subr.mxu0 0.0
        %1946 = vmatpush1.msra.mxu0 0.0
        %1947 = vmatprep.subr.mxu0 0.0
        %1948 = vmatpush1.msra.mxu0 0.0
        %1949 = vmatprep.subr.mxu0 0.0
        %1950 = vmatpush1.msra.mxu0 0.0
        %1951 = vmatprep.subr.mxu0 0.0
        %1952 = vmatpush1.msra.mxu0 0.0
        %1953 = vmatprep.subr.mxu0 0.0
        %1954 = vmatpush1.msra.mxu0 0.0
        %1955 = vmatprep.subr.mxu0 0.0
        %1956 = vmatpush1.msra.mxu0 0.0
        %1957 = vmatprep.subr.mxu0 0.0
        %1958 = vmatpush1.msra.mxu0 0.0
        %1959 = vmatprep.subr.mxu0 0.0
        %1960 = vmatpush1.msra.mxu0 0.0
        %1961 = vmatprep.subr.mxu0 0.0
        %1962 = vmatpush1.msra.mxu0 0.0
        %1963 = vmatprep.subr.mxu0 0.0
        %1964 = vmatpush1.msra.mxu0 0.0
        %1965 = vmatprep.subr.mxu0 0.0
        %1966 = vmatpush1.msra.mxu0 0.0
        %1967 = vmatprep.subr.mxu0 0.0
        %1968 = vmatpush1.msra.mxu0 0.0
        %1969 = vmatprep.mubr.f32.mxu0 0.0
        %1970 = vmatmul.mubr.f32.gmra.mrb[0].mxu0 %v1814
        %v1971 = vpop.f32.mrb[0].mxu0
        %v1972 = vadd.f32 %v1903, %v1971
        %v1973 = vpop.f32.mrb[0].mxu0
        %1974 = vmatprep.mubr.f32.mxu0 0.0
        %1975 = vmatmul.mubr.f32.gmra.mrb[0].mxu0 %v1817
        %v1976 = vpop.f32.mrb[0].mxu0
        %v1977 = vadd.f32 %v1903, %v1976
        %v1978 = vpop.f32.mrb[0].mxu0
        %1979 = vdwg.mxu0
        %v1980 = vld [vmem:[#allocation14] sm:$0xff]
        %v1981 = vld [vmem:[#allocation14 + $0x8] sm:$0xff]
        %v1982 = vld [vmem:[#allocation14 + $0x10] sm:$0xff]
        %v1983 = vld [vmem:[#allocation14 + $0x18] sm:$0xff]
        %v1984 = vld [vmem:[%s14] sm:$0x1]
        %v1986 = vlaneseq
        %v1987 = vshrl.u32 %v1986, 7
        %v1988 = vsub.s32 0, %v1987
        %v1989 = vrot.slane %v1984, %v1988
        %1991 = vmatprep.subr.mxu0 0.0
        %1992 = vmatpush1.msra.mxu0 %v1980
        %1993 = vmatprep.subr.mxu0 0.0
        %1994 = vmatpush1.msra.mxu0 %v1981
        %1995 = vmatprep.subr.mxu0 0.0
        %1996 = vmatpush1.msra.mxu0 %v1982
        %1997 = vmatprep.subr.mxu0 0.0
        %1998 = vmatpush1.msra.mxu0 %v1983
        %1999 = vmatprep.subr.mxu0 0.0
        %2000 = vmatpush1.msra.mxu0 0.0
        %2001 = vmatprep.subr.mxu0 0.0
        %2002 = vmatpush1.msra.mxu0 0.0
        %2003 = vmatprep.subr.mxu0 0.0
        %2004 = vmatpush1.msra.mxu0 0.0
        %2005 = vmatprep.subr.mxu0 0.0
        %2006 = vmatpush1.msra.mxu0 0.0
        %2007 = vmatprep.subr.mxu0 0.0
        %2008 = vmatpush1.msra.mxu0 0.0
        %2009 = vmatprep.subr.mxu0 0.0
        %2010 = vmatpush1.msra.mxu0 0.0
        %2011 = vmatprep.subr.mxu0 0.0
        %2012 = vmatpush1.msra.mxu0 0.0
        %2013 = vmatprep.subr.mxu0 0.0
        %2014 = vmatpush1.msra.mxu0 0.0
        %2015 = vmatprep.subr.mxu0 0.0
        %2016 = vmatpush1.msra.mxu0 0.0
        %2017 = vmatprep.subr.mxu0 0.0
        %2018 = vmatpush1.msra.mxu0 0.0
        %2019 = vmatprep.subr.mxu0 0.0
        %2020 = vmatpush1.msra.mxu0 0.0
        %2021 = vmatprep.subr.mxu0 0.0
        %2022 = vmatpush1.msra.mxu0 0.0
        %2023 = vmatprep.subr.mxu0 0.0
        %2024 = vmatpush1.msra.mxu0 0.0
        %2025 = vmatprep.subr.mxu0 0.0
        %2026 = vmatpush1.msra.mxu0 0.0
        %2027 = vmatprep.subr.mxu0 0.0
        %2028 = vmatpush1.msra.mxu0 0.0
        %2029 = vmatprep.subr.mxu0 0.0
        %2030 = vmatpush1.msra.mxu0 0.0
        %2031 = vmatprep.subr.mxu0 0.0
        %2032 = vmatpush1.msra.mxu0 0.0
        %2033 = vmatprep.subr.mxu0 0.0
        %2034 = vmatpush1.msra.mxu0 0.0
        %2035 = vmatprep.subr.mxu0 0.0
        %2036 = vmatpush1.msra.mxu0 0.0
        %2037 = vmatprep.subr.mxu0 0.0
        %2038 = vmatpush1.msra.mxu0 0.0
        %2039 = vmatprep.subr.mxu0 0.0
        %2040 = vmatpush1.msra.mxu0 0.0
        %2041 = vmatprep.subr.mxu0 0.0
        %2042 = vmatpush1.msra.mxu0 0.0
        %2043 = vmatprep.subr.mxu0 0.0
        %2044 = vmatpush1.msra.mxu0 0.0
        %2045 = vmatprep.subr.mxu0 0.0
        %2046 = vmatpush1.msra.mxu0 0.0
        %2047 = vmatprep.subr.mxu0 0.0
        %2048 = vmatpush1.msra.mxu0 0.0
        %2049 = vmatprep.subr.mxu0 0.0
        %2050 = vmatpush1.msra.mxu0 0.0
        %2051 = vmatprep.subr.mxu0 0.0
        %2052 = vmatpush1.msra.mxu0 0.0
        %2053 = vmatprep.subr.mxu0 0.0
        %2054 = vmatpush1.msra.mxu0 0.0
        %2055 = vmatprep.mubr.f32.mxu0 0.0
        %2056 = vmatmul.mubr.f32.gmra.mrb[0].mxu0 %v1814
        %v2057 = vpop.f32.mrb[0].mxu0
        %v2058 = vadd.f32 %v1989, %v2057
        %v2059 = vpop.f32.mrb[0].mxu0
        %2060 = vmatprep.mubr.f32.mxu0 0.0
        %2061 = vmatmul.mubr.f32.gmra.mrb[0].mxu0 %v1817
        %v2062 = vpop.f32.mrb[0].mxu0
        %v2063 = vadd.f32 %v1989, %v2062
        %v2064 = vpop.f32.mrb[0].mxu0
        %2065 = vdwg.mxu0
        %v2066 = vld [vmem:[%s645] sm:$0x1]
        %v2067 = vsub.f32 1.0, %v2066
        %v2068 = vmul.f32 %v2067, -1e+30
        %vm2069 = vcmask 64512
        %v2071 = vsel %vm2069, %v1886, 0
        %v2074 = vsel %vm2069, %v1891, 0
        %v2077 = vsel %vm2069, %v1972, 0
        %v2080 = vsel %vm2069, %v1977, 0
        %2082 = vmatprep.subr.mxu0 0.0
        %2083 = vmatpush1.xpose.msra.mxu0 %v2077
        %2084 = vmatprep.subr.mxu0 0.0
        %2085 = vmatpush1.xpose.msra.mxu0 %v2080
        %2086 = vmatprep.subr.mxu0 0.0
        %2087 = vmatpush1.xpose.msra.mxu0 0.0
        %2088 = vmatprep.subr.mxu0 0.0
        %2089 = vmatpush1.xpose.msra.mxu0 0.0
        %2090 = vmatprep.subr.mxu0 0.0
        %2091 = vmatpush1.xpose.msra.mxu0 0.0
        %2092 = vmatprep.subr.mxu0 0.0
        %2093 = vmatpush1.xpose.msra.mxu0 0.0
        %2094 = vmatprep.subr.mxu0 0.0
        %2095 = vmatpush1.xpose.msra.mxu0 0.0
        %2096 = vmatprep.subr.mxu0 0.0
        %2097 = vmatpush1.xpose.msra.mxu0 0.0
        %2098 = vmatprep.subr.mxu0 0.0
        %2099 = vmatpush1.xpose.msra.mxu0 0.0
        %2100 = vmatprep.subr.mxu0 0.0
        %2101 = vmatpush1.xpose.msra.mxu0 0.0
        %2102 = vmatprep.subr.mxu0 0.0
        %2103 = vmatpush1.xpose.msra.mxu0 0.0
        %2104 = vmatprep.subr.mxu0 0.0
        %2105 = vmatpush1.xpose.msra.mxu0 0.0
        %2106 = vmatprep.subr.mxu0 0.0
        %2107 = vmatpush1.xpose.msra.mxu0 0.0
        %2108 = vmatprep.subr.mxu0 0.0
        %2109 = vmatpush1.xpose.msra.mxu0 0.0
        %2110 = vmatprep.subr.mxu0 0.0
        %2111 = vmatpush1.xpose.msra.mxu0 0.0
        %2112 = vmatprep.subr.mxu0 0.0
        %2113 = vmatpush1.xpose.msra.mxu0 0.0
        %2114 = vmatprep.subr.mxu0 0.0
        %2115 = vmatpush1.xpose.msra.mxu0 0.0
        %2116 = vmatprep.subr.mxu0 0.0
        %2117 = vmatpush1.xpose.msra.mxu0 0.0
        %2118 = vmatprep.subr.mxu0 0.0
        %2119 = vmatpush1.xpose.msra.mxu0 0.0
        %2120 = vmatprep.subr.mxu0 0.0
        %2121 = vmatpush1.xpose.msra.mxu0 0.0
        %2122 = vmatprep.subr.mxu0 0.0
        %2123 = vmatpush1.xpose.msra.mxu0 0.0
        %2124 = vmatprep.subr.mxu0 0.0
        %2125 = vmatpush1.xpose.msra.mxu0 0.0
        %2126 = vmatprep.subr.mxu0 0.0
        %2127 = vmatpush1.xpose.msra.mxu0 0.0
        %2128 = vmatprep.subr.mxu0 0.0
        %2129 = vmatpush1.xpose.msra.mxu0 0.0
        %2130 = vmatprep.subr.mxu0 0.0
        %2131 = vmatpush1.xpose.msra.mxu0 0.0
        %2132 = vmatprep.subr.mxu0 0.0
        %2133 = vmatpush1.xpose.msra.mxu0 0.0
        %2134 = vmatprep.subr.mxu0 0.0
        %2135 = vmatpush1.xpose.msra.mxu0 0.0
        %2136 = vmatprep.subr.mxu0 0.0
        %2137 = vmatpush1.xpose.msra.mxu0 0.0
        %2138 = vmatprep.subr.mxu0 0.0
        %2139 = vmatpush1.xpose.msra.mxu0 0.0
        %2140 = vmatprep.subr.mxu0 0.0
        %2141 = vmatpush1.xpose.msra.mxu0 0.0
        %2142 = vmatprep.subr.mxu0 0.0
        %2143 = vmatpush1.xpose.msra.mxu0 0.0
        %2144 = vmatprep.subr.mxu0 0.0
        %2145 = vmatpush1.xpose.msra.mxu0 0.0
        %2146 = vmatprep.mubr.f32.mxu0 0.0
        %2147 = vmatmul.mubr.f32.gmra.mrb[0].mxu0 %v2071
        %v2148 = vpop.f32.mrb[0].mxu0
        %v2149 = vadd.f32 0.0, %v2148
        %v2150 = vpop.f32.mrb[0].mxu0
        %2151 = vmatprep.mubr.f32.mxu0 0.0
        %2152 = vmatmul.mubr.f32.gmra.mrb[0].mxu0 %v2074
        %v2153 = vpop.f32.mrb[0].mxu0
        %v2154 = vadd.f32 0.0, %v2153
        %v2155 = vpop.f32.mrb[0].mxu0
        %2156 = vdwg.mxu0
        %v2157 = vmul.f32 %v2149, 0.35355338
        %v2158 = vmul.f32 %v2154, 0.35355338
        %v2160 = vlaneseq
        %v2161 = vshrl.u32 %v2160, 7
        %v2162 = vsub.s32 0, %v2161
        %v2163 = vrot.slane %v2068, %v2162
        %v2165 = vadd.f32 %v2157, %v2163
        %v2166 = vadd.f32 %v2158, %v2163
        %vm2167 = vcmask 130048
        %v2168 = vsel %vm2167, %v2165, -inf
        %2169 = vmax.xlane.f32.xlu0 %v2168
        %v2170 = vpop.xlane.xlu0 %2169
        %v2171 = vsel %vm2167, %v2166, -inf
        %2172 = vmax.xlane.f32.xlu0 %v2171
        %v2173 = vpop.xlane.xlu0 %2172
        %v2174 = vsub.f32 %v2165, %v2170
        %v2175 = vsub.f32 %v2166, %v2173
        %v2176 = vmul.f32 %v2174, 1.442695
        %v2177 = vpow.pop %v2176
        %v2178 = vmul.f32 %v2175, 1.442695
        %v2179 = vpow.pop %v2178
        %v2180 = vsel %vm2167, %v2177, 0.0
        %2181 = vadd.xlane.f32.xlu0 %v2180
        %v2182 = vpop.xlane.xlu0 %2181
        %v2183 = vsel %vm2167, %v2179, 0.0
        %2184 = vadd.xlane.f32.xlu0 %v2183
        %v2185 = vpop.xlane.xlu0 %2184
        %v2186 = vrcp.pop %v2182
        %v2187 = vmul.f32 %v2177, %v2186
        %v2188 = vrcp.pop %v2185
        %v2189 = vmul.f32 %v2179, %v2188
        %v2191 = vsel %vm2167, %v2187, 0
        %v2194 = vsel %vm2167, %v2189, 0
        %2196 = vmatprep.subr.mxu0 0.0
        %2197 = vmatpush1.msra.mxu0 %v2058
        %2198 = vmatprep.subr.mxu0 0.0
        %2199 = vmatpush1.msra.mxu0 %v2063
        %2200 = vmatprep.subr.mxu0 0.0
        %2201 = vmatpush1.msra.mxu0 0.0
        %2202 = vmatprep.subr.mxu0 0.0
        %2203 = vmatpush1.msra.mxu0 0.0
        %2204 = vmatprep.subr.mxu0 0.0
        %2205 = vmatpush1.msra.mxu0 0.0
        %2206 = vmatprep.subr.mxu0 0.0
        %2207 = vmatpush1.msra.mxu0 0.0
        %2208 = vmatprep.subr.mxu0 0.0
        %2209 = vmatpush1.msra.mxu0 0.0
        %2210 = vmatprep.subr.mxu0 0.0
        %2211 = vmatpush1.msra.mxu0 0.0
        %2212 = vmatprep.subr.mxu0 0.0
        %2213 = vmatpush1.msra.mxu0 0.0
        %2214 = vmatprep.subr.mxu0 0.0
        %2215 = vmatpush1.msra.mxu0 0.0
        %2216 = vmatprep.subr.mxu0 0.0
        %2217 = vmatpush1.msra.mxu0 0.0
        %2218 = vmatprep.subr.mxu0 0.0
        %2219 = vmatpush1.msra.mxu0 0.0
        %2220 = vmatprep.subr.mxu0 0.0
        %2221 = vmatpush1.msra.mxu0 0.0
        %2222 = vmatprep.subr.mxu0 0.0
        %2223 = vmatpush1.msra.mxu0 0.0
        %2224 = vmatprep.subr.mxu0 0.0
        %2225 = vmatpush1.msra.mxu0 0.0
        %2226 = vmatprep.subr.mxu0 0.0
        %2227 = vmatpush1.msra.mxu0 0.0
        %2228 = vmatprep.subr.mxu0 0.0
        %2229 = vmatpush1.msra.mxu0 0.0
        %2230 = vmatprep.subr.mxu0 0.0
        %2231 = vmatpush1.msra.mxu0 0.0
        %2232 = vmatprep.subr.mxu0 0.0
        %2233 = vmatpush1.msra.mxu0 0.0
        %2234 = vmatprep.subr.mxu0 0.0
        %2235 = vmatpush1.msra.mxu0 0.0
        %2236 = vmatprep.subr.mxu0 0.0
        %2237 = vmatpush1.msra.mxu0 0.0
        %2238 = vmatprep.subr.mxu0 0.0
        %2239 = vmatpush1.msra.mxu0 0.0
        %2240 = vmatprep.subr.mxu0 0.0
        %2241 = vmatpush1.msra.mxu0 0.0
        %2242 = vmatprep.subr.mxu0 0.0
        %2243 = vmatpush1.msra.mxu0 0.0
        %2244 = vmatprep.subr.mxu0 0.0
        %2245 = vmatpush1.msra.mxu0 0.0
        %2246 = vmatprep.subr.mxu0 0.0
        %2247 = vmatpush1.msra.mxu0 0.0
        %2248 = vmatprep.subr.mxu0 0.0
        %2249 = vmatpush1.msra.mxu0 0.0
        %2250 = vmatprep.subr.mxu0 0.0
        %2251 = vmatpush1.msra.mxu0 0.0
        %2252 = vmatprep.subr.mxu0 0.0
        %2253 = vmatpush1.msra.mxu0 0.0
        %2254 = vmatprep.subr.mxu0 0.0
        %2255 = vmatpush1.msra.mxu0 0.0
        %2256 = vmatprep.subr.mxu0 0.0
        %2257 = vmatpush1.msra.mxu0 0.0
        %2258 = vmatprep.subr.mxu0 0.0
        %2259 = vmatpush1.msra.mxu0 0.0
        %2260 = vmatprep.mubr.f32.mxu0 0.0
        %2261 = vmatmul.mubr.f32.gmra.mrb[0].mxu0 %v2191
        %v2262 = vpop.f32.mrb[0].mxu0
        %v2263 = vadd.f32 0.0, %v2262
        %v2264 = vpop.f32.mrb[0].mxu0
        %2265 = vmatprep.mubr.f32.mxu0 0.0
        %2266 = vmatmul.mubr.f32.gmra.mrb[0].mxu0 %v2194
        %v2267 = vpop.f32.mrb[0].mxu0
        %v2268 = vadd.f32 0.0, %v2267
        %v2269 = vpop.f32.mrb[0].mxu0
        %2270 = vdwg.mxu0
        %2271 = vrot.lane.b32.xlu0 %v1886, 120
        %v2272 = vpop.permute.xlu0 %2271
        %2273 = vrot.lane.b32.xlu0 %v1891, 120
        %v2274 = vpop.permute.xlu0 %2273
        %2275 = vrot.lane.b32.xlu0 %v1972, 120
        %v2276 = vpop.permute.xlu0 %2275
        %2277 = vrot.lane.b32.xlu0 %v1977, 120
        %v2278 = vpop.permute.xlu0 %2277
        %v2279 = vsel %vm2069, %v2272, 0
        %v2281 = vsel %vm2069, %v2274, 0
        %v2283 = vsel %vm2069, %v2276, 0
        %v2285 = vsel %vm2069, %v2278, 0
        %2287 = vmatprep.subr.mxu0 0.0
        %2288 = vmatpush1.xpose.msra.mxu0 %v2283
        %2289 = vmatprep.subr.mxu0 0.0
        %2290 = vmatpush1.xpose.msra.mxu0 %v2285
        %2291 = vmatprep.subr.mxu0 0.0
        %2292 = vmatpush1.xpose.msra.mxu0 0.0
        %2293 = vmatprep.subr.mxu0 0.0
        %2294 = vmatpush1.xpose.msra.mxu0 0.0
        %2295 = vmatprep.subr.mxu0 0.0
        %2296 = vmatpush1.xpose.msra.mxu0 0.0
        %2297 = vmatprep.subr.mxu0 0.0
        %2298 = vmatpush1.xpose.msra.mxu0 0.0
        %2299 = vmatprep.subr.mxu0 0.0
        %2300 = vmatpush1.xpose.msra.mxu0 0.0
        %2301 = vmatprep.subr.mxu0 0.0
        %2302 = vmatpush1.xpose.msra.mxu0 0.0
        %2303 = vmatprep.subr.mxu0 0.0
        %2304 = vmatpush1.xpose.msra.mxu0 0.0
        %2305 = vmatprep.subr.mxu0 0.0
        %2306 = vmatpush1.xpose.msra.mxu0 0.0
        %2307 = vmatprep.subr.mxu0 0.0
        %2308 = vmatpush1.xpose.msra.mxu0 0.0
        %2309 = vmatprep.subr.mxu0 0.0
        %2310 = vmatpush1.xpose.msra.mxu0 0.0
        %2311 = vmatprep.subr.mxu0 0.0
        %2312 = vmatpush1.xpose.msra.mxu0 0.0
        %2313 = vmatprep.subr.mxu0 0.0
        %2314 = vmatpush1.xpose.msra.mxu0 0.0
        %2315 = vmatprep.subr.mxu0 0.0
        %2316 = vmatpush1.xpose.msra.mxu0 0.0
        %2317 = vmatprep.subr.mxu0 0.0
        %2318 = vmatpush1.xpose.msra.mxu0 0.0
        %2319 = vmatprep.subr.mxu0 0.0
        %2320 = vmatpush1.xpose.msra.mxu0 0.0
        %2321 = vmatprep.subr.mxu0 0.0
        %2322 = vmatpush1.xpose.msra.mxu0 0.0
        %2323 = vmatprep.subr.mxu0 0.0
        %2324 = vmatpush1.xpose.msra.mxu0 0.0
        %2325 = vmatprep.subr.mxu0 0.0
        %2326 = vmatpush1.xpose.msra.mxu0 0.0
        %2327 = vmatprep.subr.mxu0 0.0
        %2328 = vmatpush1.xpose.msra.mxu0 0.0
        %2329 = vmatprep.subr.mxu0 0.0
        %2330 = vmatpush1.xpose.msra.mxu0 0.0
        %2331 = vmatprep.subr.mxu0 0.0
        %2332 = vmatpush1.xpose.msra.mxu0 0.0
        %2333 = vmatprep.subr.mxu0 0.0
        %2334 = vmatpush1.xpose.msra.mxu0 0.0
        %2335 = vmatprep.subr.mxu0 0.0
        %2336 = vmatpush1.xpose.msra.mxu0 0.0
        %2337 = vmatprep.subr.mxu0 0.0
        %2338 = vmatpush1.xpose.msra.mxu0 0.0
        %2339 = vmatprep.subr.mxu0 0.0
        %2340 = vmatpush1.xpose.msra.mxu0 0.0
        %2341 = vmatprep.subr.mxu0 0.0
        %2342 = vmatpush1.xpose.msra.mxu0 0.0
        %2343 = vmatprep.subr.mxu0 0.0
        %2344 = vmatpush1.xpose.msra.mxu0 0.0
        %2345 = vmatprep.subr.mxu0 0.0
        %2346 = vmatpush1.xpose.msra.mxu0 0.0
        %2347 = vmatprep.subr.mxu0 0.0
        %2348 = vmatpush1.xpose.msra.mxu0 0.0
        %2349 = vmatprep.subr.mxu0 0.0
        %2350 = vmatpush1.xpose.msra.mxu0 0.0
        %2351 = vmatprep.mubr.f32.mxu0 0.0
        %2352 = vmatmul.mubr.f32.gmra.mrb[0].mxu0 %v2279
        %v2353 = vpop.f32.mrb[0].mxu0
        %v2354 = vadd.f32 0.0, %v2353
        %v2355 = vpop.f32.mrb[0].mxu0
        %2356 = vmatprep.mubr.f32.mxu0 0.0
        %2357 = vmatmul.mubr.f32.gmra.mrb[0].mxu0 %v2281
        %v2358 = vpop.f32.mrb[0].mxu0
        %v2359 = vadd.f32 0.0, %v2358
        %v2360 = vpop.f32.mrb[0].mxu0
        %2361 = vdwg.mxu0
        %v2362 = vmul.f32 %v2354, 0.35355338
        %v2363 = vmul.f32 %v2359, 0.35355338
        %v2364 = vadd.f32 %v2362, %v2163
        %v2365 = vadd.f32 %v2363, %v2163
        %v2366 = vsel %vm2167, %v2364, -inf
        %2367 = vmax.xlane.f32.xlu0 %v2366
        %v2368 = vpop.xlane.xlu0 %2367
        %v2369 = vsel %vm2167, %v2365, -inf
        %2370 = vmax.xlane.f32.xlu0 %v2369
        %v2371 = vpop.xlane.xlu0 %2370
        %v2372 = vsub.f32 %v2364, %v2368
        %v2373 = vsub.f32 %v2365, %v2371
        %v2374 = vmul.f32 %v2372, 1.442695
        %v2375 = vpow.pop %v2374
        %v2376 = vmul.f32 %v2373, 1.442695
        %v2377 = vpow.pop %v2376
        %v2378 = vsel %vm2167, %v2375, 0.0
        %2379 = vadd.xlane.f32.xlu0 %v2378
        %v2380 = vpop.xlane.xlu0 %2379
        %v2381 = vsel %vm2167, %v2377, 0.0
        %2382 = vadd.xlane.f32.xlu0 %v2381
        %v2383 = vpop.xlane.xlu0 %2382
        %v2384 = vrcp.pop %v2380
        %v2385 = vmul.f32 %v2375, %v2384
        %v2386 = vrcp.pop %v2383
        %v2387 = vmul.f32 %v2377, %v2386
        %2390 = vrot.lane.b32.xlu0 %v2058, 120
        %v2391 = vpop.permute.xlu0 %2390
        %2392 = vrot.lane.b32.xlu0 %v2063, 120
        %v2393 = vpop.permute.xlu0 %2392
        %v2397 = vsel %vm2167, %v2385, 0
        %v2400 = vsel %vm2167, %v2387, 0
        %2402 = vmatprep.subr.mxu0 0.0
        %2403 = vmatpush1.msra.mxu0 %v2391
        %2404 = vmatprep.subr.mxu0 0.0
        %2405 = vmatpush1.msra.mxu0 %v2393
        %2406 = vmatprep.subr.mxu0 0.0
        %2407 = vmatpush1.msra.mxu0 0.0
        %2408 = vmatprep.subr.mxu0 0.0
        %2409 = vmatpush1.msra.mxu0 0.0
        %2410 = vmatprep.subr.mxu0 0.0
        %2411 = vmatpush1.msra.mxu0 0.0
        %2412 = vmatprep.subr.mxu0 0.0
        %2413 = vmatpush1.msra.mxu0 0.0
        %2414 = vmatprep.subr.mxu0 0.0
        %2415 = vmatpush1.msra.mxu0 0.0
        %2416 = vmatprep.subr.mxu0 0.0
        %2417 = vmatpush1.msra.mxu0 0.0
        %2418 = vmatprep.subr.mxu0 0.0
        %2419 = vmatpush1.msra.mxu0 0.0
        %2420 = vmatprep.subr.mxu0 0.0
        %2421 = vmatpush1.msra.mxu0 0.0
        %2422 = vmatprep.subr.mxu0 0.0
        %2423 = vmatpush1.msra.mxu0 0.0
        %2424 = vmatprep.subr.mxu0 0.0
        %2425 = vmatpush1.msra.mxu0 0.0
        %2426 = vmatprep.subr.mxu0 0.0
        %2427 = vmatpush1.msra.mxu0 0.0
        %2428 = vmatprep.subr.mxu0 0.0
        %2429 = vmatpush1.msra.mxu0 0.0
        %2430 = vmatprep.subr.mxu0 0.0
        %2431 = vmatpush1.msra.mxu0 0.0
        %2432 = vmatprep.subr.mxu0 0.0
        %2433 = vmatpush1.msra.mxu0 0.0
        %2434 = vmatprep.subr.mxu0 0.0
        %2435 = vmatpush1.msra.mxu0 0.0
        %2436 = vmatprep.subr.mxu0 0.0
        %2437 = vmatpush1.msra.mxu0 0.0
        %2438 = vmatprep.subr.mxu0 0.0
        %2439 = vmatpush1.msra.mxu0 0.0
        %2440 = vmatprep.subr.mxu0 0.0
        %2441 = vmatpush1.msra.mxu0 0.0
        %2442 = vmatprep.subr.mxu0 0.0
        %2443 = vmatpush1.msra.mxu0 0.0
        %2444 = vmatprep.subr.mxu0 0.0
        %2445 = vmatpush1.msra.mxu0 0.0
        %2446 = vmatprep.subr.mxu0 0.0
        %2447 = vmatpush1.msra.mxu0 0.0
        %2448 = vmatprep.subr.mxu0 0.0
        %2449 = vmatpush1.msra.mxu0 0.0
        %2450 = vmatprep.subr.mxu0 0.0
        %2451 = vmatpush1.msra.mxu0 0.0
        %2452 = vmatprep.subr.mxu0 0.0
        %2453 = vmatpush1.msra.mxu0 0.0
        %2454 = vmatprep.subr.mxu0 0.0
        %2455 = vmatpush1.msra.mxu0 0.0
        %2456 = vmatprep.subr.mxu0 0.0
        %2457 = vmatpush1.msra.mxu0 0.0
        %2458 = vmatprep.subr.mxu0 0.0
        %2459 = vmatpush1.msra.mxu0 0.0
        %2460 = vmatprep.subr.mxu0 0.0
        %2461 = vmatpush1.msra.mxu0 0.0
        %2462 = vmatprep.subr.mxu0 0.0
        %2463 = vmatpush1.msra.mxu0 0.0
        %2464 = vmatprep.subr.mxu0 0.0
        %2465 = vmatpush1.msra.mxu0 0.0
        %2466 = vmatprep.mubr.f32.mxu0 0.0
        %2467 = vmatmul.mubr.f32.gmra.mrb[0].mxu0 %v2397
        %v2468 = vpop.f32.mrb[0].mxu0
        %v2469 = vadd.f32 0.0, %v2468
        %v2470 = vpop.f32.mrb[0].mxu0
        %2471 = vmatprep.mubr.f32.mxu0 0.0
        %2472 = vmatmul.mubr.f32.gmra.mrb[0].mxu0 %v2400
        %v2473 = vpop.f32.mrb[0].mxu0
        %v2474 = vadd.f32 0.0, %v2473
        %v2475 = vpop.f32.mrb[0].mxu0
        %2476 = vdwg.mxu0
        %2477 = vrot.lane.b32.xlu0 %v1886, 112
        %v2478 = vpop.permute.xlu0 %2477
        %2479 = vrot.lane.b32.xlu0 %v1891, 112
        %v2480 = vpop.permute.xlu0 %2479
        %2481 = vrot.lane.b32.xlu0 %v1972, 112
        %v2482 = vpop.permute.xlu0 %2481
        %2483 = vrot.lane.b32.xlu0 %v1977, 112
        %v2484 = vpop.permute.xlu0 %2483
        %v2485 = vsel %vm2069, %v2478, 0
        %v2487 = vsel %vm2069, %v2480, 0
        %v2489 = vsel %vm2069, %v2482, 0
        %v2491 = vsel %vm2069, %v2484, 0
        %2493 = vmatprep.subr.mxu0 0.0
        %2494 = vmatpush1.xpose.msra.mxu0 %v2489
        %2495 = vmatprep.subr.mxu0 0.0
        %2496 = vmatpush1.xpose.msra.mxu0 %v2491
        %2497 = vmatprep.subr.mxu0 0.0
        %2498 = vmatpush1.xpose.msra.mxu0 0.0
        %2499 = vmatprep.subr.mxu0 0.0
        %2500 = vmatpush1.xpose.msra.mxu0 0.0
        %2501 = vmatprep.subr.mxu0 0.0
        %2502 = vmatpush1.xpose.msra.mxu0 0.0
        %2503 = vmatprep.subr.mxu0 0.0
        %2504 = vmatpush1.xpose.msra.mxu0 0.0
        %2505 = vmatprep.subr.mxu0 0.0
        %2506 = vmatpush1.xpose.msra.mxu0 0.0
        %2507 = vmatprep.subr.mxu0 0.0
        %2508 = vmatpush1.xpose.msra.mxu0 0.0
        %2509 = vmatprep.subr.mxu0 0.0
        %2510 = vmatpush1.xpose.msra.mxu0 0.0
        %2511 = vmatprep.subr.mxu0 0.0
        %2512 = vmatpush1.xpose.msra.mxu0 0.0
        %2513 = vmatprep.subr.mxu0 0.0
        %2514 = vmatpush1.xpose.msra.mxu0 0.0
        %2515 = vmatprep.subr.mxu0 0.0
        %2516 = vmatpush1.xpose.msra.mxu0 0.0
        %2517 = vmatprep.subr.mxu0 0.0
        %2518 = vmatpush1.xpose.msra.mxu0 0.0
        %2519 = vmatprep.subr.mxu0 0.0
        %2520 = vmatpush1.xpose.msra.mxu0 0.0
        %2521 = vmatprep.subr.mxu0 0.0
        %2522 = vmatpush1.xpose.msra.mxu0 0.0
        %2523 = vmatprep.subr.mxu0 0.0
        %2524 = vmatpush1.xpose.msra.mxu0 0.0
        %2525 = vmatprep.subr.mxu0 0.0
        %2526 = vmatpush1.xpose.msra.mxu0 0.0
        %2527 = vmatprep.subr.mxu0 0.0
        %2528 = vmatpush1.xpose.msra.mxu0 0.0
        %2529 = vmatprep.subr.mxu0 0.0
        %2530 = vmatpush1.xpose.msra.mxu0 0.0
        %2531 = vmatprep.subr.mxu0 0.0
        %2532 = vmatpush1.xpose.msra.mxu0 0.0
        %2533 = vmatprep.subr.mxu0 0.0
        %2534 = vmatpush1.xpose.msra.mxu0 0.0
        %2535 = vmatprep.subr.mxu0 0.0
        %2536 = vmatpush1.xpose.msra.mxu0 0.0
        %2537 = vmatprep.subr.mxu0 0.0
        %2538 = vmatpush1.xpose.msra.mxu0 0.0
        %2539 = vmatprep.subr.mxu0 0.0
        %2540 = vmatpush1.xpose.msra.mxu0 0.0
        %2541 = vmatprep.subr.mxu0 0.0
        %2542 = vmatpush1.xpose.msra.mxu0 0.0
        %2543 = vmatprep.subr.mxu0 0.0
        %2544 = vmatpush1.xpose.msra.mxu0 0.0
        %2545 = vmatprep.subr.mxu0 0.0
        %2546 = vmatpush1.xpose.msra.mxu0 0.0
        %2547 = vmatprep.subr.mxu0 0.0
        %2548 = vmatpush1.xpose.msra.mxu0 0.0
        %2549 = vmatprep.subr.mxu0 0.0
        %2550 = vmatpush1.xpose.msra.mxu0 0.0
        %2551 = vmatprep.subr.mxu0 0.0
        %2552 = vmatpush1.xpose.msra.mxu0 0.0
        %2553 = vmatprep.subr.mxu0 0.0
        %2554 = vmatpush1.xpose.msra.mxu0 0.0
        %2555 = vmatprep.subr.mxu0 0.0
        %2556 = vmatpush1.xpose.msra.mxu0 0.0
        %2557 = vmatprep.mubr.f32.mxu0 0.0
        %2558 = vmatmul.mubr.f32.gmra.mrb[0].mxu0 %v2485
        %v2559 = vpop.f32.mrb[0].mxu0
        %v2560 = vadd.f32 0.0, %v2559
        %v2561 = vpop.f32.mrb[0].mxu0
        %2562 = vmatprep.mubr.f32.mxu0 0.0
        %2563 = vmatmul.mubr.f32.gmra.mrb[0].mxu0 %v2487
        %v2564 = vpop.f32.mrb[0].mxu0
        %v2565 = vadd.f32 0.0, %v2564
        %v2566 = vpop.f32.mrb[0].mxu0
        %2567 = vdwg.mxu0
        %v2568 = vmul.f32 %v2560, 0.35355338
        %v2569 = vmul.f32 %v2565, 0.35355338
        %v2570 = vadd.f32 %v2568, %v2163
        %v2571 = vadd.f32 %v2569, %v2163
        %v2572 = vsel %vm2167, %v2570, -inf
        %2573 = vmax.xlane.f32.xlu0 %v2572
        %v2574 = vpop.xlane.xlu0 %2573
        %v2575 = vsel %vm2167, %v2571, -inf
        %2576 = vmax.xlane.f32.xlu0 %v2575
        %v2577 = vpop.xlane.xlu0 %2576
        %v2578 = vsub.f32 %v2570, %v2574
        %v2579 = vsub.f32 %v2571, %v2577
        %v2580 = vmul.f32 %v2578, 1.442695
        %v2581 = vpow.pop %v2580
        %v2582 = vmul.f32 %v2579, 1.442695
        %v2583 = vpow.pop %v2582
        %v2584 = vsel %vm2167, %v2581, 0.0
        %2585 = vadd.xlane.f32.xlu0 %v2584
        %v2586 = vpop.xlane.xlu0 %2585
        %v2587 = vsel %vm2167, %v2583, 0.0
        %2588 = vadd.xlane.f32.xlu0 %v2587
        %v2589 = vpop.xlane.xlu0 %2588
        %v2590 = vrcp.pop %v2586
        %v2591 = vmul.f32 %v2581, %v2590
        %v2592 = vrcp.pop %v2589
        %v2593 = vmul.f32 %v2583, %v2592
        %2594 = vrot.lane.b32.xlu0 %v2058, 112
        %v2595 = vpop.permute.xlu0 %2594
        %2596 = vrot.lane.b32.xlu0 %v2063, 112
        %v2597 = vpop.permute.xlu0 %2596
        %v2601 = vsel %vm2167, %v2591, 0
        %v2604 = vsel %vm2167, %v2593, 0
        %2606 = vmatprep.subr.mxu0 0.0
        %2607 = vmatpush1.msra.mxu0 %v2595
        %2608 = vmatprep.subr.mxu0 0.0
        %2609 = vmatpush1.msra.mxu0 %v2597
        %2610 = vmatprep.subr.mxu0 0.0
        %2611 = vmatpush1.msra.mxu0 0.0
        %2612 = vmatprep.subr.mxu0 0.0
        %2613 = vmatpush1.msra.mxu0 0.0
        %2614 = vmatprep.subr.mxu0 0.0
        %2615 = vmatpush1.msra.mxu0 0.0
        %2616 = vmatprep.subr.mxu0 0.0
        %2617 = vmatpush1.msra.mxu0 0.0
        %2618 = vmatprep.subr.mxu0 0.0
        %2619 = vmatpush1.msra.mxu0 0.0
        %2620 = vmatprep.subr.mxu0 0.0
        %2621 = vmatpush1.msra.mxu0 0.0
        %2622 = vmatprep.subr.mxu0 0.0
        %2623 = vmatpush1.msra.mxu0 0.0
        %2624 = vmatprep.subr.mxu0 0.0
        %2625 = vmatpush1.msra.mxu0 0.0
        %2626 = vmatprep.subr.mxu0 0.0
        %2627 = vmatpush1.msra.mxu0 0.0
        %2628 = vmatprep.subr.mxu0 0.0
        %2629 = vmatpush1.msra.mxu0 0.0
        %2630 = vmatprep.subr.mxu0 0.0
        %2631 = vmatpush1.msra.mxu0 0.0
        %2632 = vmatprep.subr.mxu0 0.0
        %2633 = vmatpush1.msra.mxu0 0.0
        %2634 = vmatprep.subr.mxu0 0.0
        %2635 = vmatpush1.msra.mxu0 0.0
        %2636 = vmatprep.subr.mxu0 0.0
        %2637 = vmatpush1.msra.mxu0 0.0
        %2638 = vmatprep.subr.mxu0 0.0
        %2639 = vmatpush1.msra.mxu0 0.0
        %2640 = vmatprep.subr.mxu0 0.0
        %2641 = vmatpush1.msra.mxu0 0.0
        %2642 = vmatprep.subr.mxu0 0.0
        %2643 = vmatpush1.msra.mxu0 0.0
        %2644 = vmatprep.subr.mxu0 0.0
        %2645 = vmatpush1.msra.mxu0 0.0
        %2646 = vmatprep.subr.mxu0 0.0
        %2647 = vmatpush1.msra.mxu0 0.0
        %2648 = vmatprep.subr.mxu0 0.0
        %2649 = vmatpush1.msra.mxu0 0.0
        %2650 = vmatprep.subr.mxu0 0.0
        %2651 = vmatpush1.msra.mxu0 0.0
        %2652 = vmatprep.subr.mxu0 0.0
        %2653 = vmatpush1.msra.mxu0 0.0
        %2654 = vmatprep.subr.mxu0 0.0
        %2655 = vmatpush1.msra.mxu0 0.0
        %2656 = vmatprep.subr.mxu0 0.0
        %2657 = vmatpush1.msra.mxu0 0.0
        %2658 = vmatprep.subr.mxu0 0.0
        %2659 = vmatpush1.msra.mxu0 0.0
        %2660 = vmatprep.subr.mxu0 0.0
        %2661 = vmatpush1.msra.mxu0 0.0
        %2662 = vmatprep.subr.mxu0 0.0
        %2663 = vmatpush1.msra.mxu0 0.0
        %2664 = vmatprep.subr.mxu0 0.0
        %2665 = vmatpush1.msra.mxu0 0.0
        %2666 = vmatprep.subr.mxu0 0.0
        %2667 = vmatpush1.msra.mxu0 0.0
        %2668 = vmatprep.subr.mxu0 0.0
        %2669 = vmatpush1.msra.mxu0 0.0
        %2670 = vmatprep.mubr.f32.mxu0 0.0
        %2671 = vmatmul.mubr.f32.gmra.mrb[0].mxu0 %v2601
        %v2672 = vpop.f32.mrb[0].mxu0
        %v2673 = vadd.f32 0.0, %v2672
        %v2674 = vpop.f32.mrb[0].mxu0
        %2675 = vmatprep.mubr.f32.mxu0 0.0
        %2676 = vmatmul.mubr.f32.gmra.mrb[0].mxu0 %v2604
        %v2677 = vpop.f32.mrb[0].mxu0
        %v2678 = vadd.f32 0.0, %v2677
        %v2679 = vpop.f32.mrb[0].mxu0
        %2680 = vdwg.mxu0
        %2681 = vrot.lane.b32.xlu0 %v1886, 104
        %v2682 = vpop.permute.xlu0 %2681
        %2683 = vrot.lane.b32.xlu0 %v1891, 104
        %v2684 = vpop.permute.xlu0 %2683
        %2685 = vrot.lane.b32.xlu0 %v1972, 104
        %v2686 = vpop.permute.xlu0 %2685
        %2687 = vrot.lane.b32.xlu0 %v1977, 104
        %v2688 = vpop.permute.xlu0 %2687
        %v2689 = vsel %vm2069, %v2682, 0
        %v2691 = vsel %vm2069, %v2684, 0
        %v2693 = vsel %vm2069, %v2686, 0
        %v2695 = vsel %vm2069, %v2688, 0
        %2697 = vmatprep.subr.mxu0 0.0
        %2698 = vmatpush1.xpose.msra.mxu0 %v2693
        %2699 = vmatprep.subr.mxu0 0.0
        %2700 = vmatpush1.xpose.msra.mxu0 %v2695
        %2701 = vmatprep.subr.mxu0 0.0
        %2702 = vmatpush1.xpose.msra.mxu0 0.0
        %2703 = vmatprep.subr.mxu0 0.0
        %2704 = vmatpush1.xpose.msra.mxu0 0.0
        %2705 = vmatprep.subr.mxu0 0.0
        %2706 = vmatpush1.xpose.msra.mxu0 0.0
        %2707 = vmatprep.subr.mxu0 0.0
        %2708 = vmatpush1.xpose.msra.mxu0 0.0
        %2709 = vmatprep.subr.mxu0 0.0
        %2710 = vmatpush1.xpose.msra.mxu0 0.0
        %2711 = vmatprep.subr.mxu0 0.0
        %2712 = vmatpush1.xpose.msra.mxu0 0.0
        %2713 = vmatprep.subr.mxu0 0.0
        %2714 = vmatpush1.xpose.msra.mxu0 0.0
        %2715 = vmatprep.subr.mxu0 0.0
        %2716 = vmatpush1.xpose.msra.mxu0 0.0
        %2717 = vmatprep.subr.mxu0 0.0
        %2718 = vmatpush1.xpose.msra.mxu0 0.0
        %2719 = vmatprep.subr.mxu0 0.0
        %2720 = vmatpush1.xpose.msra.mxu0 0.0
        %2721 = vmatprep.subr.mxu0 0.0
        %2722 = vmatpush1.xpose.msra.mxu0 0.0
        %2723 = vmatprep.subr.mxu0 0.0
        %2724 = vmatpush1.xpose.msra.mxu0 0.0
        %2725 = vmatprep.subr.mxu0 0.0
        %2726 = vmatpush1.xpose.msra.mxu0 0.0
        %2727 = vmatprep.subr.mxu0 0.0
        %2728 = vmatpush1.xpose.msra.mxu0 0.0
        %2729 = vmatprep.subr.mxu0 0.0
        %2730 = vmatpush1.xpose.msra.mxu0 0.0
        %2731 = vmatprep.subr.mxu0 0.0
        %2732 = vmatpush1.xpose.msra.mxu0 0.0
        %2733 = vmatprep.subr.mxu0 0.0
        %2734 = vmatpush1.xpose.msra.mxu0 0.0
        %2735 = vmatprep.subr.mxu0 0.0
        %2736 = vmatpush1.xpose.msra.mxu0 0.0
        %2737 = vmatprep.subr.mxu0 0.0
        %2738 = vmatpush1.xpose.msra.mxu0 0.0
        %2739 = vmatprep.subr.mxu0 0.0
        %2740 = vmatpush1.xpose.msra.mxu0 0.0
        %2741 = vmatprep.subr.mxu0 0.0
        %2742 = vmatpush1.xpose.msra.mxu0 0.0
        %2743 = vmatprep.subr.mxu0 0.0
        %2744 = vmatpush1.xpose.msra.mxu0 0.0
        %2745 = vmatprep.subr.mxu0 0.0
        %2746 = vmatpush1.xpose.msra.mxu0 0.0
        %2747 = vmatprep.subr.mxu0 0.0
        %2748 = vmatpush1.xpose.msra.mxu0 0.0
        %2749 = vmatprep.subr.mxu0 0.0
        %2750 = vmatpush1.xpose.msra.mxu0 0.0
        %2751 = vmatprep.subr.mxu0 0.0
        %2752 = vmatpush1.xpose.msra.mxu0 0.0
        %2753 = vmatprep.subr.mxu0 0.0
        %2754 = vmatpush1.xpose.msra.mxu0 0.0
        %2755 = vmatprep.subr.mxu0 0.0
        %2756 = vmatpush1.xpose.msra.mxu0 0.0
        %2757 = vmatprep.subr.mxu0 0.0
        %2758 = vmatpush1.xpose.msra.mxu0 0.0
        %2759 = vmatprep.subr.mxu0 0.0
        %2760 = vmatpush1.xpose.msra.mxu0 0.0
        %2761 = vmatprep.mubr.f32.mxu0 0.0
        %2762 = vmatmul.mubr.f32.gmra.mrb[0].mxu0 %v2689
        %v2763 = vpop.f32.mrb[0].mxu0
        %v2764 = vadd.f32 0.0, %v2763
        %v2765 = vpop.f32.mrb[0].mxu0
        %2766 = vmatprep.mubr.f32.mxu0 0.0
        %2767 = vmatmul.mubr.f32.gmra.mrb[0].mxu0 %v2691
        %v2768 = vpop.f32.mrb[0].mxu0
        %v2769 = vadd.f32 0.0, %v2768
        %v2770 = vpop.f32.mrb[0].mxu0
        %2771 = vdwg.mxu0
        %v2772 = vmul.f32 %v2764, 0.35355338
        %v2773 = vmul.f32 %v2769, 0.35355338
        %v2774 = vadd.f32 %v2772, %v2163
        %v2775 = vadd.f32 %v2773, %v2163
        %v2776 = vsel %vm2167, %v2774, -inf
        %2777 = vmax.xlane.f32.xlu0 %v2776
        %v2778 = vpop.xlane.xlu0 %2777
        %v2779 = vsel %vm2167, %v2775, -inf
        %2780 = vmax.xlane.f32.xlu0 %v2779
        %v2781 = vpop.xlane.xlu0 %2780
        %v2782 = vsub.f32 %v2774, %v2778
        %v2783 = vsub.f32 %v2775, %v2781
        %v2784 = vmul.f32 %v2782, 1.442695
        %v2785 = vpow.pop %v2784
        %v2786 = vmul.f32 %v2783, 1.442695
        %v2787 = vpow.pop %v2786
        %v2788 = vsel %vm2167, %v2785, 0.0
        %2789 = vadd.xlane.f32.xlu0 %v2788
        %v2790 = vpop.xlane.xlu0 %2789
        %v2791 = vsel %vm2167, %v2787, 0.0
        %2792 = vadd.xlane.f32.xlu0 %v2791
        %v2793 = vpop.xlane.xlu0 %2792
        %v2794 = vrcp.pop %v2790
        %v2795 = vmul.f32 %v2785, %v2794
        %v2796 = vrcp.pop %v2793
        %v2797 = vmul.f32 %v2787, %v2796
        %2798 = vrot.lane.b32.xlu0 %v2058, 104
        %v2799 = vpop.permute.xlu0 %2798
        %2800 = vrot.lane.b32.xlu0 %v2063, 104
        %v2801 = vpop.permute.xlu0 %2800
        %v2805 = vsel %vm2167, %v2795, 0
        %v2808 = vsel %vm2167, %v2797, 0
        %2810 = vmatprep.subr.mxu0 0.0
        %2811 = vmatpush1.msra.mxu0 %v2799
        %2812 = vmatprep.subr.mxu0 0.0
        %2813 = vmatpush1.msra.mxu0 %v2801
        %2814 = vmatprep.subr.mxu0 0.0
        %2815 = vmatpush1.msra.mxu0 0.0
        %2816 = vmatprep.subr.mxu0 0.0
        %2817 = vmatpush1.msra.mxu0 0.0
        %2818 = vmatprep.subr.mxu0 0.0
        %2819 = vmatpush1.msra.mxu0 0.0
        %2820 = vmatprep.subr.mxu0 0.0
        %2821 = vmatpush1.msra.mxu0 0.0
        %2822 = vmatprep.subr.mxu0 0.0
        %2823 = vmatpush1.msra.mxu0 0.0
        %2824 = vmatprep.subr.mxu0 0.0
        %2825 = vmatpush1.msra.mxu0 0.0
        %2826 = vmatprep.subr.mxu0 0.0
        %2827 = vmatpush1.msra.mxu0 0.0
        %2828 = vmatprep.subr.mxu0 0.0
        %2829 = vmatpush1.msra.mxu0 0.0
        %2830 = vmatprep.subr.mxu0 0.0
        %2831 = vmatpush1.msra.mxu0 0.0
        %2832 = vmatprep.subr.mxu0 0.0
        %2833 = vmatpush1.msra.mxu0 0.0
        %2834 = vmatprep.subr.mxu0 0.0
        %2835 = vmatpush1.msra.mxu0 0.0
        %2836 = vmatprep.subr.mxu0 0.0
        %2837 = vmatpush1.msra.mxu0 0.0
        %2838 = vmatprep.subr.mxu0 0.0
        %2839 = vmatpush1.msra.mxu0 0.0
        %2840 = vmatprep.subr.mxu0 0.0
        %2841 = vmatpush1.msra.mxu0 0.0
        %2842 = vmatprep.subr.mxu0 0.0
        %2843 = vmatpush1.msra.mxu0 0.0
        %2844 = vmatprep.subr.mxu0 0.0
        %2845 = vmatpush1.msra.mxu0 0.0
        %2846 = vmatprep.subr.mxu0 0.0
        %2847 = vmatpush1.msra.mxu0 0.0
        %2848 = vmatprep.subr.mxu0 0.0
        %2849 = vmatpush1.msra.mxu0 0.0
        %2850 = vmatprep.subr.mxu0 0.0
        %2851 = vmatpush1.msra.mxu0 0.0
        %2852 = vmatprep.subr.mxu0 0.0
        %2853 = vmatpush1.msra.mxu0 0.0
        %2854 = vmatprep.subr.mxu0 0.0
        %2855 = vmatpush1.msra.mxu0 0.0
        %2856 = vmatprep.subr.mxu0 0.0
        %2857 = vmatpush1.msra.mxu0 0.0
        %2858 = vmatprep.subr.mxu0 0.0
        %2859 = vmatpush1.msra.mxu0 0.0
        %2860 = vmatprep.subr.mxu0 0.0
        %2861 = vmatpush1.msra.mxu0 0.0
        %2862 = vmatprep.subr.mxu0 0.0
        %2863 = vmatpush1.msra.mxu0 0.0
        %2864 = vmatprep.subr.mxu0 0.0
        %2865 = vmatpush1.msra.mxu0 0.0
        %2866 = vmatprep.subr.mxu0 0.0
        %2867 = vmatpush1.msra.mxu0 0.0
        %2868 = vmatprep.subr.mxu0 0.0
        %2869 = vmatpush1.msra.mxu0 0.0
        %2870 = vmatprep.subr.mxu0 0.0
        %2871 = vmatpush1.msra.mxu0 0.0
        %2872 = vmatprep.subr.mxu0 0.0
        %2873 = vmatpush1.msra.mxu0 0.0
        %2874 = vmatprep.mubr.f32.mxu0 0.0
        %2875 = vmatmul.mubr.f32.gmra.mrb[0].mxu0 %v2805
        %v2876 = vpop.f32.mrb[0].mxu0
        %v2877 = vadd.f32 0.0, %v2876
        %v2878 = vpop.f32.mrb[0].mxu0
        %2879 = vmatprep.mubr.f32.mxu0 0.0
        %2880 = vmatmul.mubr.f32.gmra.mrb[0].mxu0 %v2808
        %v2881 = vpop.f32.mrb[0].mxu0
        %v2882 = vadd.f32 0.0, %v2881
        %v2883 = vpop.f32.mrb[0].mxu0
        %2884 = vdwg.mxu0
        %2887 = vrot.lane.b32.xlu0 %v2469, 8
        %v2888 = vpop.permute.xlu0 %2887
        %2889 = vrot.lane.b32.xlu0 %v2474, 8
        %v2890 = vpop.permute.xlu0 %2889
        %2895 = vrot.lane.b32.xlu0 %v2673, 16
        %v2896 = vpop.permute.xlu0 %2895
        %2897 = vrot.lane.b32.xlu0 %v2678, 16
        %v2898 = vpop.permute.xlu0 %2897
        %2903 = vrot.lane.b32.xlu0 %v2877, 24
        %v2904 = vpop.permute.xlu0 %2903
        %2905 = vrot.lane.b32.xlu0 %v2882, 24
        %v2906 = vpop.permute.xlu0 %2905
        %v2909 = vsel %vm2069, %v2263, %v2888
        %v2910 = vsel %vm2069, %v2268, %v2890
        %v2911 = vsel %vm2167, %v2909, %v2896
        %v2912 = vsel %vm2167, %v2910, %v2898
        %vm2913 = vcmask 195584
        %v2914 = vsel %vm2913, %v2911, %v2904
        %v2915 = vsel %vm2913, %v2912, %v2906
        %v2916 = vadd.f32 %v2914, %v1756
        %v2917 = vadd.f32 %v2915, %v1757
        %v2918 = vld [vmem:[%s15] sm:$0x1]
        %v2919 = vld [vmem:[%s16] sm:$0x1]
        %v2920 = vsel %vm748, %v2916, 0.0
        %2921 = vadd.xlane.f32.xlu0 %v2920
        %v2922 = vpop.xlane.xlu0 %2921
        %v2923 = vsel %vm748, %v2917, 0.0
        %2924 = vadd.xlane.f32.xlu0 %v2923
        %v2925 = vpop.xlane.xlu0 %2924
        %v2926 = vmul.f32 %v2922, %v755
        %v2927 = vmul.f32 %v2925, %v755
        %v2928 = vsub.f32 %v2916, %v2926
        %v2929 = vsub.f32 %v2917, %v2927
        %v2930 = vmul.f32 %v2928, %v2928
        %v2931 = vmul.f32 %v2929, %v2929
        %v2932 = vsel %vm748, %v2930, 0.0
        %2933 = vadd.xlane.f32.xlu0 %v2932
        %v2934 = vpop.xlane.xlu0 %2933
        %v2935 = vsel %vm748, %v2931, 0.0
        %2936 = vadd.xlane.f32.xlu0 %v2935
        %v2937 = vpop.xlane.xlu0 %2936
        %v2938 = vmul.f32 %v2934, %v755
        %v2939 = vmul.f32 %v2937, %v755
        %v2940 = vadd.f32 %v2938, 1e-06
        %v2941 = vadd.f32 %v2939, 1e-06
        %v2942 = vrsqrt.pop %v2940
        %v2943 = vrsqrt.pop %v2941
        %v2944 = vmul.f32 %v2928, %v2942
        %v2945 = vmul.f32 %v2929, %v2943
        %v2947 = vlaneseq
        %v2948 = vshrl.u32 %v2947, 7
        %v2949 = vsub.s32 0, %v2948
        %v2950 = vrot.slane %v2918, %v2949
        %v2952 = vmul.f32 %v2944, %v2950
        %v2953 = vmul.f32 %v2945, %v2950
        %v2955 = vlaneseq
        %v2956 = vshrl.u32 %v2955, 7
        %v2957 = vsub.s32 0, %v2956
        %v2958 = vrot.slane %v2919, %v2957
        %v2960 = vadd.f32 %v2952, %v2958
        %v2961 = vadd.f32 %v2953, %v2958
        %v2962 = vld [vmem:[#allocation16] sm:$0xff]
        %v2963 = vld [vmem:[#allocation16 + $0x8] sm:$0xff]
        %v2964 = vld [vmem:[#allocation16 + $0x10] sm:$0xff]
        %v2965 = vld [vmem:[#allocation16 + $0x18] sm:$0xff]
        %v2966 = vld [vmem:[%s18] sm:$0x1]
        %v2968 = vlaneseq
        %v2969 = vshrl.u32 %v2968, 7
        %v2970 = vsub.s32 0, %v2969
        %v2971 = vrot.slane %v2966, %v2970
        %v2974 = vsel %vm748, %v2960, 0
        %v2977 = vsel %vm748, %v2961, 0
        %2979 = vmatprep.subr.mxu0 0.0
        %2980 = vmatpush1.msra.mxu0 %v2962
        %2981 = vmatprep.subr.mxu0 0.0
        %2982 = vmatpush1.msra.mxu0 %v2963
        %2983 = vmatprep.subr.mxu0 0.0
        %2984 = vmatpush1.msra.mxu0 %v2964
        %2985 = vmatprep.subr.mxu0 0.0
        %2986 = vmatpush1.msra.mxu0 %v2965
        %2987 = vmatprep.subr.mxu0 0.0
        %2988 = vmatpush1.msra.mxu0 0.0
        %2989 = vmatprep.subr.mxu0 0.0
        %2990 = vmatpush1.msra.mxu0 0.0
        %2991 = vmatprep.subr.mxu0 0.0
        %2992 = vmatpush1.msra.mxu0 0.0
        %2993 = vmatprep.subr.mxu0 0.0
        %2994 = vmatpush1.msra.mxu0 0.0
        %2995 = vmatprep.subr.mxu0 0.0
        %2996 = vmatpush1.msra.mxu0 0.0
        %2997 = vmatprep.subr.mxu0 0.0
        %2998 = vmatpush1.msra.mxu0 0.0
        %2999 = vmatprep.subr.mxu0 0.0
        %3000 = vmatpush1.msra.mxu0 0.0
        %3001 = vmatprep.subr.mxu0 0.0
        %3002 = vmatpush1.msra.mxu0 0.0
        %3003 = vmatprep.subr.mxu0 0.0
        %3004 = vmatpush1.msra.mxu0 0.0
        %3005 = vmatprep.subr.mxu0 0.0
        %3006 = vmatpush1.msra.mxu0 0.0
        %3007 = vmatprep.subr.mxu0 0.0
        %3008 = vmatpush1.msra.mxu0 0.0
        %3009 = vmatprep.subr.mxu0 0.0
        %3010 = vmatpush1.msra.mxu0 0.0
        %3011 = vmatprep.subr.mxu0 0.0
        %3012 = vmatpush1.msra.mxu0 0.0
        %3013 = vmatprep.subr.mxu0 0.0
        %3014 = vmatpush1.msra.mxu0 0.0
        %3015 = vmatprep.subr.mxu0 0.0
        %3016 = vmatpush1.msra.mxu0 0.0
        %3017 = vmatprep.subr.mxu0 0.0
        %3018 = vmatpush1.msra.mxu0 0.0
        %3019 = vmatprep.subr.mxu0 0.0
        %3020 = vmatpush1.msra.mxu0 0.0
        %3021 = vmatprep.subr.mxu0 0.0
        %3022 = vmatpush1.msra.mxu0 0.0
        %3023 = vmatprep.subr.mxu0 0.0
        %3024 = vmatpush1.msra.mxu0 0.0
        %3025 = vmatprep.subr.mxu0 0.0
        %3026 = vmatpush1.msra.mxu0 0.0
        %3027 = vmatprep.subr.mxu0 0.0
        %3028 = vmatpush1.msra.mxu0 0.0
        %3029 = vmatprep.subr.mxu0 0.0
        %3030 = vmatpush1.msra.mxu0 0.0
        %3031 = vmatprep.subr.mxu0 0.0
        %3032 = vmatpush1.msra.mxu0 0.0
        %3033 = vmatprep.subr.mxu0 0.0
        %3034 = vmatpush1.msra.mxu0 0.0
        %3035 = vmatprep.subr.mxu0 0.0
        %3036 = vmatpush1.msra.mxu0 0.0
        %3037 = vmatprep.subr.mxu0 0.0
        %3038 = vmatpush1.msra.mxu0 0.0
        %3039 = vmatprep.subr.mxu0 0.0
        %3040 = vmatpush1.msra.mxu0 0.0
        %3041 = vmatprep.subr.mxu0 0.0
        %3042 = vmatpush1.msra.mxu0 0.0
        %3043 = vmatprep.mubr.f32.mxu0 0.0
        %3044 = vmatmul.mubr.f32.gmra.mrb[0].mxu0 %v2974
        %v3045 = vpop.f32.mrb[0].mxu0
        %v3046 = vadd.f32 %v2971, %v3045
        %v3047 = vpop.f32.mrb[0].mxu0
        %3048 = vmatprep.mubr.f32.mxu0 0.0
        %3049 = vmatmul.mubr.f32.gmra.mrb[0].mxu0 %v2977
        %v3050 = vpop.f32.mrb[0].mxu0
        %v3051 = vadd.f32 %v2971, %v3050
        %v3052 = vpop.f32.mrb[0].mxu0
        %3053 = vdwg.mxu0
        %v3054 = vadd.f32 %v3046, %v2916
        %v3055 = vadd.f32 %v3051, %v2917
        %3056 = vst.msk [vmem:[%s735] sm:$0xff] %vm748, %v3054
        %3057 = vst.msk [vmem:[%s735 + $0x8] sm:$0xff] %vm748, %v3055
        %s3058 = sand.u32 %s457, 1
        %s3059 = scalar_lea.sflag [#allocation4], %s3058
        %s3060 = sand.u32 %s457, 1
        %s3061 = smul.addr %s3060, 16
        %s3062 = scalar_lea.vmem [#allocation17], %s3061
        // Predicated region
        $region133: #{tpu_custom_call.1} parent=95 // pred_check
          %p3063 = pneg %p467
        $region134: #{tpu_custom_call.1} parent=95 // pred_check_branch
          %3065 = sbr.rel (%p3063) target = $region136
        $region135: #{tpu_custom_call.1} parent=95 // pred_region
          %s3067 = ssub.s32 256, 256
          %3068 = vsyncadd %s3059, %s3067
          %s3069 = smul.addr %s40, 2
          %s3070 = smul.addr %s3069, 128
          %s3071 = scalar_lea.hbm %s19, %s3070
          %s3072 = sshll.u32 %s3062, 4
          %s3073 = int_to_ptr.vmem [resolvable:$true] %s3072
          %3078 = dma.vmem_to_hbm [thread:$0]  %s3073, 256, %s3071, %s3059, 128, 128, 8
        $region136: #{tpu_custom_call.1} parent=95 // pred_fallthru
          _
      $region96: #{tpu_custom_call.1} parent=5 // pred_fallthru
        _
      %p3079 = scmp.le.s32.totalorder 2, %s35
      // Predicated region
      $region137: #{tpu_custom_call.1} parent=5 // pred_check
        %p3080 = pneg %p3079
      $region138: #{tpu_custom_call.1} parent=5 // pred_check_branch
        %3082 = sbr.rel (%p3080) target = $region140
      $region139: #{tpu_custom_call.1} parent=5 // pred_region
        %s3083 = ssub.s32 %s35, 2
        // Predicated region
        $region141: #{tpu_custom_call.1} parent=139 // pred_check
          %p3084 = pneg %p473
        $region142: #{tpu_custom_call.1} parent=139 // pred_check_branch
          %3086 = sbr.rel (%p3084) target = $region144
        $region143: #{tpu_custom_call.1} parent=139 // pred_region
          %s3087 = sand.u32 %s458, 1
          %s3088 = scalar_lea.sflag [#allocation4], %s3087
          %s3089 = sand.u32 %s458, 1
          %s3090 = smul.addr %s3089, 16
          %s3091 = scalar_lea.vmem [#allocation17], %s3090
          %3092 = dma.done %s3088, 256
        $region144: #{tpu_custom_call.1} parent=139 // pred_fallthru
          _
      $region140: #{tpu_custom_call.1} parent=5 // pred_fallthru
        _
    $region6: #{tpu_custom_call.1} parent=1 // loop_footer
      %s39 = sadd.s32 1, %s35
    $region7: #{tpu_custom_call.1} parent=1 // loop_footer_branch
      %34 = sbr.rel target = $region3
    $region8: #{tpu_custom_call.1} parent=1 // loop_exit
      _
    %3093 = vsyncpa [#allocation3], 1
    %s3094 = scalar_lea.sflag [#allocation3], 1
    %3095 = vsyncpa %s3094, 1
    %3096 = vsyncpa [#allocation6], 1
    %3097 = vsyncpa [#allocation9], 1
    %3098 = vsyncpa [#allocation12], 1
    %3099 = vsyncpa [#allocation15], 1
    %3100 = vsyncpa [#allocation4], 1
    %s3101 = scalar_lea.sflag [#allocation4], 1
    %3102 = vsyncpa %s3101, 1

</llo_original>
